<compile_context>
chip_gen: v7x
topology: tpu7x:2x2x1
jax: 0.10.0
libtpu: 0.0.40
codegen_flags: <defaults>
</compile_context>

<pallas_src>
import functools

import jax
import jax.numpy as jnp
import numpy as np
from jax import lax
from jax.experimental import pallas as pl
from jax.experimental.pallas import tpu as pltpu


# ---------------------------------------------------------------------------
# Fused kernel: one grid step = (batch n, Cout tile c, row-block r).
# Produces TS output-row-pairs x W output-col-pairs, stored parity-separated:
#   o_ref[0, 2*a + b, i*W + j, :] == out[n, 2*(r*TS+i)+a, 2*j+b, c-tile]
# ---------------------------------------------------------------------------
def _fused_upsample_conv_kernel(xm_ref, h0_ref, h1_ref, w_ref, b_ref, o_ref,
                                rows_ref, *, ts, w):
    # xm_ref : (1, TS, W+2, Cin)   zero-padded source rows [r*TS, r*TS+TS)
    # h0_ref : (1, 1,  W+2, Cin)   padded source row r*TS+TS      (halo)
    # h1_ref : (1, 1,  W+2, Cin)   padded source row r*TS+TS+1    (halo)
    # w_ref  : (16, Cin, TCout)    combined sub-pixel weights Wc[(a,b,s,t)]
    # b_ref  : (1, TCout)          bias (f32)
    # o_ref  : (1, 4, TS*W, TCout) output block, parity p = 2*a + b
    # rows_ref: VMEM scratch (TS+2, W+2, Cin)
    cin = xm_ref.shape[3]
    cout = o_ref.shape[3]

    # Assemble the TS+2 contiguous padded source rows this row-block needs.
    rows_ref[pl.ds(0, ts)] = xm_ref[0]
    rows_ref[pl.ds(ts, 1)] = h0_ref[0]
    rows_ref[pl.ds(ts + 1, 1)] = h1_ref[0]

    bias = b_ref[...].astype(jnp.float32)                      # (1, TCout)

    for a in range(2):                                         # output-row parity
        for b in range(2):                                     # output-col parity
            acc = jnp.zeros((ts * w, cout), jnp.float32)
            for s in range(2):                                 # 2x2 effective taps
                for t in range(2):
                    idx = ((a * 2 + b) * 2 + s) * 2 + t
                    patch = rows_ref[pl.ds(a + s, ts), pl.ds(b + t, w), :]
                    acc = acc + jnp.dot(patch.reshape(ts * w, cin), w_ref[idx],
                                        preferred_element_type=jnp.float32)
            o_ref[0, 2 * a + b] = (acc + bias).astype(o_ref.dtype)


def _pick_divisor(n, cap):
    for cand in range(min(n, cap), 0, -1):
        if n % cand == 0:
            return cand
    return 1


# ---------------------------------------------------------------------------
# Full forward: Custom_Upsample2D(use_conv=True, use_conv_transpose=False,
#               output_size=None) -> nearest-2x upsample, then 3x3 same conv.
# Input/output are NCHW (PyTorch convention).
# ---------------------------------------------------------------------------
def custom_upsample2d(x_nchw, w_oihw, bias, *, row_tile=8, cout_tile=256,
                      interpret=False):
    N, Cin, H, W = x_nchw.shape
    Cout, Cin_w, KH, KW = w_oihw.shape
    assert (KH, KW) == (3, 3) and Cin_w == Cin
    # TODO(synk): add a per-row fallback for W % 8 != 0 (sublane-unaligned (TS,W)->(TS*W) merge).
    assert W % 8 == 0, "kernel assumes W is a multiple of 8 (TPU sublane)"

    # Nearest-neighbor upsample is bit-exact in bf16, so torch's bf16->f32->bf16
    # round-trip is a numerical no-op: keep the input dtype end-to-end (halves HBM
    # traffic and doubles MXU rate for bf16 on v6e/v7x).
    compute_dtype = x_nchw.dtype

    TS = _pick_divisor(H, row_tile)          # source rows per grid step
    TCout = _pick_divisor(Cout, cout_tile)   # output-channel tile
    # TODO(synk): also tile Cin (accumulating grid axis) for Cin*TCout weight tiles > VMEM.

    # ---- layout + 1-pixel zero pad at SOURCE resolution (1/4 of the output) ----
    x_nhwc = jnp.transpose(x_nchw, (0, 2, 3, 1))
    xp = jnp.pad(x_nhwc, ((0, 0), (1, 1), (1, 1), (0, 0)))      # (N, H+2, W+2, Cin)

    # ---- fold the nearest-2x upsample into the 3x3 conv weights ----------------
    # A[a, s, ky] = 1 iff original row-tap ky reads source-row offset (a+s-1) for
    # output-row parity a (identical matrix for columns).
    A = jnp.array([[[1., 0., 0.], [0., 1., 1.]],
                   [[1., 1., 0.], [0., 0., 1.]]], jnp.float32)
    w_hwio = jnp.transpose(w_oihw, (2, 3, 1, 0)).astype(jnp.float32)   # (3,3,Cin,Cout)
    wc = jnp.einsum('ask,btl,klio->abstio', A, A, w_hwio)              # (2,2,2,2,Cin,Cout)
    wc = wc.reshape(16, Cin, Cout).astype(compute_dtype)
    b2 = bias.reshape(1, Cout).astype(jnp.float32)

    grid = (N, Cout // TCout, H // TS)       # row-block axis innermost: weights stay resident
    kernel = functools.partial(_fused_upsample_conv_kernel, ts=TS, w=W)

    out = pl.pallas_call(
        kernel,
        out_shape=jax.ShapeDtypeStruct((N, 4, H * W, Cout), compute_dtype),
        grid=grid,
        in_specs=[
            # main TS padded rows of this row-block
            pl.BlockSpec((1, TS, W + 2, Cin), lambda n, c, r: (n, r, 0, 0)),
            # 2-row bottom halo (block size 1 along H => block index == row index)
            pl.BlockSpec((1, 1, W + 2, Cin), lambda n, c, r: (n, (r + 1) * TS, 0, 0)),
            pl.BlockSpec((1, 1, W + 2, Cin), lambda n, c, r: (n, (r + 1) * TS + 1, 0, 0)),
            # combined weights / bias, tiled over Cout
            pl.BlockSpec((16, Cin, TCout), lambda n, c, r: (0, 0, c)),
            pl.BlockSpec((1, TCout), lambda n, c, r: (0, c)),
        ],
        out_specs=pl.BlockSpec((1, 4, TS * W, TCout), lambda n, c, r: (n, 0, r, c)),
        scratch_shapes=[pltpu.VMEM((TS + 2, W + 2, Cin), compute_dtype)],
        compiler_params=pltpu.CompilerParams(
            dimension_semantics=("parallel", "parallel", "parallel"),
            vmem_limit_bytes=64 * 1024 * 1024),
        interpret=interpret,
    )(xp, xp, xp, wc, b2)

    # (N, 4, H*W, Cout) -> (N, Cout, 2H, 2W).  This single XLA transpose replaces the
    # NHWC->NCHW transpose the module interface requires anyway (skip it entirely if
    # the consumer accepts NHWC).
    out = out.reshape(N, 2, 2, H, W, Cout)
    out = jnp.transpose(out, (0, 5, 3, 1, 4, 2)).reshape(N, Cout, 2 * H, 2 * W)
    return out


if __name__ == "__main__":
    key = jax.random.PRNGKey(0)
    N, C, H, W = 2, 4, 16, 16
    Cout = C                                      # out_channels = channels

    kx, kw, kb = jax.random.split(key, 3)
    x = jax.random.normal(kx, (N, C, H, W), dtype=jnp.float32)
    w_oihw = 0.1 * jax.random.normal(kw, (Cout, C, 3, 3), dtype=jnp.float32)
    bias = 0.1 * jax.random.normal(kb, (Cout,), dtype=jnp.float32)

    out = custom_upsample2d(x, w_oihw, bias)
    out = jax.block_until_ready(out)

    # Pure-JAX reference (same semantics as the PyTorch module: F.interpolate
    # nearest x2 followed by Conv2d(3x3, padding=1)).
    up_ref = jnp.repeat(jnp.repeat(x, 2, axis=2), 2, axis=3)
    ref = lax.conv_general_dilated(
        up_ref, w_oihw, window_strides=(1, 1), padding="SAME",
        dimension_numbers=("NCHW", "OIHW", "NCHW"),
    ) + bias[None, :, None, None]

    np.testing.assert_allclose(np.asarray(out), np.asarray(ref),
                               rtol=2e-3, atol=2e-3)
    print("KERNEL_OK")
</pallas_src>

<mosaic_0001>
module attributes {stable_mosaic.version = 11 : i64} {
  func.func @_fused_upsample_conv_kernel(%arg0: i32, %arg1: i32, %arg2: i32, %arg3: memref<1x8x18x4xf32, #tpu.memory_space<vmem>>, %arg4: memref<1x1x18x4xf32, #tpu.memory_space<vmem>>, %arg5: memref<1x1x18x4xf32, #tpu.memory_space<vmem>>, %arg6: memref<16x4x4xf32, #tpu.memory_space<vmem>>, %arg7: memref<1x4xf32, #tpu.memory_space<vmem>>, %arg8: memref<1x4x128x4xf32, #tpu.memory_space<vmem>>, %arg9: memref<10x18x4xf32, #tpu.memory_space<vmem>>) attributes {dimension_semantics = [#tpu.dimension_semantics<parallel>, #tpu.dimension_semantics<parallel>, #tpu.dimension_semantics<parallel>], iteration_bounds = array<i64: 2, 1, 2>, scalar_prefetch = 0 : i64, scratch_operands = 1 : i64, tpu.core_type = #tpu.core_type<tc>, window_params = [{transform_indices = @transform_0, window_bounds = array<i64: 1, 8, 18, 4>}, {transform_indices = @transform_1, window_bounds = array<i64: 1, 1, 18, 4>}, {transform_indices = @transform_2, window_bounds = array<i64: 1, 1, 18, 4>}, {transform_indices = @transform_3, window_bounds = array<i64: 16, 4, 4>}, {transform_indices = @transform_4, window_bounds = array<i64: 1, 4>}, {transform_indices = @transform_5, window_bounds = array<i64: 1, 4, 128, 4>}]} {
    %c0 = arith.constant 0 : index
    %c0_0 = arith.constant 0 : index
    %c0_1 = arith.constant 0 : index
    %c0_2 = arith.constant 0 : index
    %0 = vector.load %arg3[%c0, %c0_0, %c0_1, %c0_2] : memref<1x8x18x4xf32, #tpu.memory_space<vmem>>, vector<1x8x18x4xf32>
    %1 = vector.shape_cast %0 : vector<1x8x18x4xf32> to vector<8x18x4xf32>
    %c0_3 = arith.constant 0 : index
    %c0_4 = arith.constant 0 : index
    %c0_5 = arith.constant 0 : index
    %2 = vector.load %arg9[%c0_3, %c0_4, %c0_5] : memref<10x18x4xf32, #tpu.memory_space<vmem>>, vector<8x18x4xf32>
    tpu.vector_store %arg9[%c0_3, %c0_4, %c0_5], %1 {strides = array<i32>} : memref<10x18x4xf32, #tpu.memory_space<vmem>>, vector<8x18x4xf32>,
    %c0_6 = arith.constant 0 : index
    %c0_7 = arith.constant 0 : index
    %c0_8 = arith.constant 0 : index
    %c0_9 = arith.constant 0 : index
    %3 = vector.load %arg4[%c0_6, %c0_7, %c0_8, %c0_9] : memref<1x1x18x4xf32, #tpu.memory_space<vmem>>, vector<1x1x18x4xf32>
    %4 = vector.shape_cast %3 : vector<1x1x18x4xf32> to vector<1x18x4xf32>
    %c8 = arith.constant 8 : index
    %c0_10 = arith.constant 0 : index
    %c0_11 = arith.constant 0 : index
    %5 = vector.load %arg9[%c8, %c0_10, %c0_11] : memref<10x18x4xf32, #tpu.memory_space<vmem>>, vector<1x18x4xf32>
    tpu.vector_store %arg9[%c8, %c0_10, %c0_11], %4 {strides = array<i32>} : memref<10x18x4xf32, #tpu.memory_space<vmem>>, vector<1x18x4xf32>,
    %c0_12 = arith.constant 0 : index
    %c0_13 = arith.constant 0 : index
    %c0_14 = arith.constant 0 : index
    %c0_15 = arith.constant 0 : index
    %6 = vector.load %arg5[%c0_12, %c0_13, %c0_14, %c0_15] : memref<1x1x18x4xf32, #tpu.memory_space<vmem>>, vector<1x1x18x4xf32>
    %7 = vector.shape_cast %6 : vector<1x1x18x4xf32> to vector<1x18x4xf32>
    %c9 = arith.constant 9 : index
    %c0_16 = arith.constant 0 : index
    %c0_17 = arith.constant 0 : index
    %8 = vector.load %arg9[%c9, %c0_16, %c0_17] : memref<10x18x4xf32, #tpu.memory_space<vmem>>, vector<1x18x4xf32>
    tpu.vector_store %arg9[%c9, %c0_16, %c0_17], %7 {strides = array<i32>} : memref<10x18x4xf32, #tpu.memory_space<vmem>>, vector<1x18x4xf32>,
    %c0_18 = arith.constant 0 : index
    %c0_19 = arith.constant 0 : index
    %9 = vector.load %arg7[%c0_18, %c0_19] : memref<1x4xf32, #tpu.memory_space<vmem>>, vector<1x4xf32>
    %cst = arith.constant 0.000000e+00 : f32
    %10 = vector.broadcast %cst : f32 to vector<128x4xf32>
    %c0_20 = arith.constant 0 : index
    %c0_21 = arith.constant 0 : index
    %c0_22 = arith.constant 0 : index
    %11 = vector.load %arg9[%c0_20, %c0_21, %c0_22] : memref<10x18x4xf32, #tpu.memory_space<vmem>>, vector<8x16x4xf32>
    %12 = vector.shape_cast %11 : vector<8x16x4xf32> to vector<128x4xf32>
    %c0_23 = arith.constant 0 : index
    %c0_24 = arith.constant 0 : index
    %c0_25 = arith.constant 0 : index
    %13 = vector.load %arg6[%c0_23, %c0_24, %c0_25] : memref<16x4x4xf32, #tpu.memory_space<vmem>>, vector<1x4x4xf32>
    %14 = vector.shape_cast %13 : vector<1x4x4xf32> to vector<4x4xf32>
    %cst_26 = arith.constant dense<0.000000e+00> : vector<128x4xf32>
    %15 = tpu.matmul %12, %14, %cst_26 {dimension_numbers = #tpu.dot_dimension_numbers<[1], [0], [0], [1], [0, 0, 1, 1], [], []>} : vector<128x4xf32>, vector<4x4xf32>, vector<128x4xf32> -> vector<128x4xf32>
    %16 = arith.addf %10, %15 : vector<128x4xf32>
    %c0_27 = arith.constant 0 : index
    %c1 = arith.constant 1 : index
    %c0_28 = arith.constant 0 : index
    %17 = vector.load %arg9[%c0_27, %c1, %c0_28] : memref<10x18x4xf32, #tpu.memory_space<vmem>>, vector<8x16x4xf32>
    %18 = vector.shape_cast %17 : vector<8x16x4xf32> to vector<128x4xf32>
    %c1_29 = arith.constant 1 : index
    %c0_30 = arith.constant 0 : index
    %c0_31 = arith.constant 0 : index
    %19 = vector.load %arg6[%c1_29, %c0_30, %c0_31] : memref<16x4x4xf32, #tpu.memory_space<vmem>>, vector<1x4x4xf32>
    %20 = vector.shape_cast %19 : vector<1x4x4xf32> to vector<4x4xf32>
    %cst_32 = arith.constant dense<0.000000e+00> : vector<128x4xf32>
    %21 = tpu.matmul %18, %20, %cst_32 {dimension_numbers = #tpu.dot_dimension_numbers<[1], [0], [0], [1], [0, 0, 1, 1], [], []>} : vector<128x4xf32>, vector<4x4xf32>, vector<128x4xf32> -> vector<128x4xf32>
    %22 = arith.addf %16, %21 : vector<128x4xf32>
    %c1_33 = arith.constant 1 : index
    %c0_34 = arith.constant 0 : index
    %c0_35 = arith.constant 0 : index
    %23 = vector.load %arg9[%c1_33, %c0_34, %c0_35] : memref<10x18x4xf32, #tpu.memory_space<vmem>>, vector<8x16x4xf32>
    %24 = vector.shape_cast %23 : vector<8x16x4xf32> to vector<128x4xf32>
    %c2 = arith.constant 2 : index
    %c0_36 = arith.constant 0 : index
    %c0_37 = arith.constant 0 : index
    %25 = vector.load %arg6[%c2, %c0_36, %c0_37] : memref<16x4x4xf32, #tpu.memory_space<vmem>>, vector<1x4x4xf32>
    %26 = vector.shape_cast %25 : vector<1x4x4xf32> to vector<4x4xf32>
    %cst_38 = arith.constant dense<0.000000e+00> : vector<128x4xf32>
    %27 = tpu.matmul %24, %26, %cst_38 {dimension_numbers = #tpu.dot_dimension_numbers<[1], [0], [0], [1], [0, 0, 1, 1], [], []>} : vector<128x4xf32>, vector<4x4xf32>, vector<128x4xf32> -> vector<128x4xf32>
    %28 = arith.addf %22, %27 : vector<128x4xf32>
    %c1_39 = arith.constant 1 : index
    %c1_40 = arith.constant 1 : index
    %c0_41 = arith.constant 0 : index
    %29 = vector.load %arg9[%c1_39, %c1_40, %c0_41] : memref<10x18x4xf32, #tpu.memory_space<vmem>>, vector<8x16x4xf32>
    %30 = vector.shape_cast %29 : vector<8x16x4xf32> to vector<128x4xf32>
    %c3 = arith.constant 3 : index
    %c0_42 = arith.constant 0 : index
    %c0_43 = arith.constant 0 : index
    %31 = vector.load %arg6[%c3, %c0_42, %c0_43] : memref<16x4x4xf32, #tpu.memory_space<vmem>>, vector<1x4x4xf32>
    %32 = vector.shape_cast %31 : vector<1x4x4xf32> to vector<4x4xf32>
    %cst_44 = arith.constant dense<0.000000e+00> : vector<128x4xf32>
    %33 = tpu.matmul %30, %32, %cst_44 {dimension_numbers = #tpu.dot_dimension_numbers<[1], [0], [0], [1], [0, 0, 1, 1], [], []>} : vector<128x4xf32>, vector<4x4xf32>, vector<128x4xf32> -> vector<128x4xf32>
    %34 = arith.addf %28, %33 : vector<128x4xf32>
    %35 = vector.broadcast %9 : vector<1x4xf32> to vector<128x4xf32>
    %36 = arith.addf %34, %35 : vector<128x4xf32>
    %c0_45 = arith.constant 0 : index
    %c0_46 = arith.constant 0 : index
    %c0_47 = arith.constant 0 : index
    %c0_48 = arith.constant 0 : index
    %37 = vector.load %arg8[%c0_45, %c0_46, %c0_47, %c0_48] : memref<1x4x128x4xf32, #tpu.memory_space<vmem>>, vector<1x1x128x4xf32>
    %38 = vector.shape_cast %37 : vector<1x1x128x4xf32> to vector<128x4xf32>
    %39 = vector.shape_cast %36 : vector<128x4xf32> to vector<1x1x128x4xf32>
    tpu.vector_store %arg8[%c0_45, %c0_46, %c0_47, %c0_48], %39 {strides = array<i32>} : memref<1x4x128x4xf32, #tpu.memory_space<vmem>>, vector<1x1x128x4xf32>,
    %cst_49 = arith.constant 0.000000e+00 : f32
    %40 = vector.broadcast %cst_49 : f32 to vector<128x4xf32>
    %c0_50 = arith.constant 0 : index
    %c1_51 = arith.constant 1 : index
    %c0_52 = arith.constant 0 : index
    %41 = vector.load %arg9[%c0_50, %c1_51, %c0_52] : memref<10x18x4xf32, #tpu.memory_space<vmem>>, vector<8x16x4xf32>
    %42 = vector.shape_cast %41 : vector<8x16x4xf32> to vector<128x4xf32>
    %c4 = arith.constant 4 : index
    %c0_53 = arith.constant 0 : index
    %c0_54 = arith.constant 0 : index
    %43 = vector.load %arg6[%c4, %c0_53, %c0_54] : memref<16x4x4xf32, #tpu.memory_space<vmem>>, vector<1x4x4xf32>
    %44 = vector.shape_cast %43 : vector<1x4x4xf32> to vector<4x4xf32>
    %cst_55 = arith.constant dense<0.000000e+00> : vector<128x4xf32>
    %45 = tpu.matmul %42, %44, %cst_55 {dimension_numbers = #tpu.dot_dimension_numbers<[1], [0], [0], [1], [0, 0, 1, 1], [], []>} : vector<128x4xf32>, vector<4x4xf32>, vector<128x4xf32> -> vector<128x4xf32>
    %46 = arith.addf %40, %45 : vector<128x4xf32>
    %c0_56 = arith.constant 0 : index
    %c2_57 = arith.constant 2 : index
    %c0_58 = arith.constant 0 : index
    %47 = vector.load %arg9[%c0_56, %c2_57, %c0_58] : memref<10x18x4xf32, #tpu.memory_space<vmem>>, vector<8x16x4xf32>
    %48 = vector.shape_cast %47 : vector<8x16x4xf32> to vector<128x4xf32>
    %c5 = arith.constant 5 : index
    %c0_59 = arith.constant 0 : index
    %c0_60 = arith.constant 0 : index
    %49 = vector.load %arg6[%c5, %c0_59, %c0_60] : memref<16x4x4xf32, #tpu.memory_space<vmem>>, vector<1x4x4xf32>
    %50 = vector.shape_cast %49 : vector<1x4x4xf32> to vector<4x4xf32>
    %cst_61 = arith.constant dense<0.000000e+00> : vector<128x4xf32>
    %51 = tpu.matmul %48, %50, %cst_61 {dimension_numbers = #tpu.dot_dimension_numbers<[1], [0], [0], [1], [0, 0, 1, 1], [], []>} : vector<128x4xf32>, vector<4x4xf32>, vector<128x4xf32> -> vector<128x4xf32>
    %52 = arith.addf %46, %51 : vector<128x4xf32>
    %c1_62 = arith.constant 1 : index
    %c1_63 = arith.constant 1 : index
    %c0_64 = arith.constant 0 : index
    %53 = vector.load %arg9[%c1_62, %c1_63, %c0_64] : memref<10x18x4xf32, #tpu.memory_space<vmem>>, vector<8x16x4xf32>
    %54 = vector.shape_cast %53 : vector<8x16x4xf32> to vector<128x4xf32>
    %c6 = arith.constant 6 : index
    %c0_65 = arith.constant 0 : index
    %c0_66 = arith.constant 0 : index
    %55 = vector.load %arg6[%c6, %c0_65, %c0_66] : memref<16x4x4xf32, #tpu.memory_space<vmem>>, vector<1x4x4xf32>
    %56 = vector.shape_cast %55 : vector<1x4x4xf32> to vector<4x4xf32>
    %cst_67 = arith.constant dense<0.000000e+00> : vector<128x4xf32>
    %57 = tpu.matmul %54, %56, %cst_67 {dimension_numbers = #tpu.dot_dimension_numbers<[1], [0], [0], [1], [0, 0, 1, 1], [], []>} : vector<128x4xf32>, vector<4x4xf32>, vector<128x4xf32> -> vector<128x4xf32>
    %58 = arith.addf %52, %57 : vector<128x4xf32>
    %c1_68 = arith.constant 1 : index
    %c2_69 = arith.constant 2 : index
    %c0_70 = arith.constant 0 : index
    %59 = vector.load %arg9[%c1_68, %c2_69, %c0_70] : memref<10x18x4xf32, #tpu.memory_space<vmem>>, vector<8x16x4xf32>
    %60 = vector.shape_cast %59 : vector<8x16x4xf32> to vector<128x4xf32>
    %c7 = arith.constant 7 : index
    %c0_71 = arith.constant 0 : index
    %c0_72 = arith.constant 0 : index
    %61 = vector.load %arg6[%c7, %c0_71, %c0_72] : memref<16x4x4xf32, #tpu.memory_space<vmem>>, vector<1x4x4xf32>
    %62 = vector.shape_cast %61 : vector<1x4x4xf32> to vector<4x4xf32>
    %cst_73 = arith.constant dense<0.000000e+00> : vector<128x4xf32>
    %63 = tpu.matmul %60, %62, %cst_73 {dimension_numbers = #tpu.dot_dimension_numbers<[1], [0], [0], [1], [0, 0, 1, 1], [], []>} : vector<128x4xf32>, vector<4x4xf32>, vector<128x4xf32> -> vector<128x4xf32>
    %64 = arith.addf %58, %63 : vector<128x4xf32>
    %65 = vector.broadcast %9 : vector<1x4xf32> to vector<128x4xf32>
    %66 = arith.addf %64, %65 : vector<128x4xf32>
    %c0_74 = arith.constant 0 : index
    %c1_75 = arith.constant 1 : index
    %c0_76 = arith.constant 0 : index
    %c0_77 = arith.constant 0 : index
    %67 = vector.load %arg8[%c0_74, %c1_75, %c0_76, %c0_77] : memref<1x4x128x4xf32, #tpu.memory_space<vmem>>, vector<1x1x128x4xf32>
    %68 = vector.shape_cast %67 : vector<1x1x128x4xf32> to vector<128x4xf32>
    %69 = vector.shape_cast %66 : vector<128x4xf32> to vector<1x1x128x4xf32>
    tpu.vector_store %arg8[%c0_74, %c1_75, %c0_76, %c0_77], %69 {strides = array<i32>} : memref<1x4x128x4xf32, #tpu.memory_space<vmem>>, vector<1x1x128x4xf32>,
    %cst_78 = arith.constant 0.000000e+00 : f32
    %70 = vector.broadcast %cst_78 : f32 to vector<128x4xf32>
    %c1_79 = arith.constant 1 : index
    %c0_80 = arith.constant 0 : index
    %c0_81 = arith.constant 0 : index
    %71 = vector.load %arg9[%c1_79, %c0_80, %c0_81] : memref<10x18x4xf32, #tpu.memory_space<vmem>>, vector<8x16x4xf32>
    %72 = vector.shape_cast %71 : vector<8x16x4xf32> to vector<128x4xf32>
    %c8_82 = arith.constant 8 : index
    %c0_83 = arith.constant 0 : index
    %c0_84 = arith.constant 0 : index
    %73 = vector.load %arg6[%c8_82, %c0_83, %c0_84] : memref<16x4x4xf32, #tpu.memory_space<vmem>>, vector<1x4x4xf32>
    %74 = vector.shape_cast %73 : vector<1x4x4xf32> to vector<4x4xf32>
    %cst_85 = arith.constant dense<0.000000e+00> : vector<128x4xf32>
    %75 = tpu.matmul %72, %74, %cst_85 {dimension_numbers = #tpu.dot_dimension_numbers<[1], [0], [0], [1], [0, 0, 1, 1], [], []>} : vector<128x4xf32>, vector<4x4xf32>, vector<128x4xf32> -> vector<128x4xf32>
    %76 = arith.addf %70, %75 : vector<128x4xf32>
    %c1_86 = arith.constant 1 : index
    %c1_87 = arith.constant 1 : index
    %c0_88 = arith.constant 0 : index
    %77 = vector.load %arg9[%c1_86, %c1_87, %c0_88] : memref<10x18x4xf32, #tpu.memory_space<vmem>>, vector<8x16x4xf32>
    %78 = vector.shape_cast %77 : vector<8x16x4xf32> to vector<128x4xf32>
    %c9_89 = arith.constant 9 : index
    %c0_90 = arith.constant 0 : index
    %c0_91 = arith.constant 0 : index
    %79 = vector.load %arg6[%c9_89, %c0_90, %c0_91] : memref<16x4x4xf32, #tpu.memory_space<vmem>>, vector<1x4x4xf32>
    %80 = vector.shape_cast %79 : vector<1x4x4xf32> to vector<4x4xf32>
    %cst_92 = arith.constant dense<0.000000e+00> : vector<128x4xf32>
    %81 = tpu.matmul %78, %80, %cst_92 {dimension_numbers = #tpu.dot_dimension_numbers<[1], [0], [0], [1], [0, 0, 1, 1], [], []>} : vector<128x4xf32>, vector<4x4xf32>, vector<128x4xf32> -> vector<128x4xf32>
    %82 = arith.addf %76, %81 : vector<128x4xf32>
    %c2_93 = arith.constant 2 : index
    %c0_94 = arith.constant 0 : index
    %c0_95 = arith.constant 0 : index
    %83 = vector.load %arg9[%c2_93, %c0_94, %c0_95] : memref<10x18x4xf32, #tpu.memory_space<vmem>>, vector<8x16x4xf32>
    %84 = vector.shape_cast %83 : vector<8x16x4xf32> to vector<128x4xf32>
    %c10 = arith.constant 10 : index
    %c0_96 = arith.constant 0 : index
    %c0_97 = arith.constant 0 : index
    %85 = vector.load %arg6[%c10, %c0_96, %c0_97] : memref<16x4x4xf32, #tpu.memory_space<vmem>>, vector<1x4x4xf32>
    %86 = vector.shape_cast %85 : vector<1x4x4xf32> to vector<4x4xf32>
    %cst_98 = arith.constant dense<0.000000e+00> : vector<128x4xf32>
    %87 = tpu.matmul %84, %86, %cst_98 {dimension_numbers = #tpu.dot_dimension_numbers<[1], [0], [0], [1], [0, 0, 1, 1], [], []>} : vector<128x4xf32>, vector<4x4xf32>, vector<128x4xf32> -> vector<128x4xf32>
    %88 = arith.addf %82, %87 : vector<128x4xf32>
    %c2_99 = arith.constant 2 : index
    %c1_100 = arith.constant 1 : index
    %c0_101 = arith.constant 0 : index
    %89 = vector.load %arg9[%c2_99, %c1_100, %c0_101] : memref<10x18x4xf32, #tpu.memory_space<vmem>>, vector<8x16x4xf32>
    %90 = vector.shape_cast %89 : vector<8x16x4xf32> to vector<128x4xf32>
    %c11 = arith.constant 11 : index
    %c0_102 = arith.constant 0 : index
    %c0_103 = arith.constant 0 : index
    %91 = vector.load %arg6[%c11, %c0_102, %c0_103] : memref<16x4x4xf32, #tpu.memory_space<vmem>>, vector<1x4x4xf32>
    %92 = vector.shape_cast %91 : vector<1x4x4xf32> to vector<4x4xf32>
    %cst_104 = arith.constant dense<0.000000e+00> : vector<128x4xf32>
    %93 = tpu.matmul %90, %92, %cst_104 {dimension_numbers = #tpu.dot_dimension_numbers<[1], [0], [0], [1], [0, 0, 1, 1], [], []>} : vector<128x4xf32>, vector<4x4xf32>, vector<128x4xf32> -> vector<128x4xf32>
    %94 = arith.addf %88, %93 : vector<128x4xf32>
    %95 = vector.broadcast %9 : vector<1x4xf32> to vector<128x4xf32>
    %96 = arith.addf %94, %95 : vector<128x4xf32>
    %c0_105 = arith.constant 0 : index
    %c2_106 = arith.constant 2 : index
    %c0_107 = arith.constant 0 : index
    %c0_108 = arith.constant 0 : index
    %97 = vector.load %arg8[%c0_105, %c2_106, %c0_107, %c0_108] : memref<1x4x128x4xf32, #tpu.memory_space<vmem>>, vector<1x1x128x4xf32>
    %98 = vector.shape_cast %97 : vector<1x1x128x4xf32> to vector<128x4xf32>
    %99 = vector.shape_cast %96 : vector<128x4xf32> to vector<1x1x128x4xf32>
    tpu.vector_store %arg8[%c0_105, %c2_106, %c0_107, %c0_108], %99 {strides = array<i32>} : memref<1x4x128x4xf32, #tpu.memory_space<vmem>>, vector<1x1x128x4xf32>,
    %cst_109 = arith.constant 0.000000e+00 : f32
    %100 = vector.broadcast %cst_109 : f32 to vector<128x4xf32>
    %c1_110 = arith.constant 1 : index
    %c1_111 = arith.constant 1 : index
    %c0_112 = arith.constant 0 : index
    %101 = vector.load %arg9[%c1_110, %c1_111, %c0_112] : memref<10x18x4xf32, #tpu.memory_space<vmem>>, vector<8x16x4xf32>
    %102 = vector.shape_cast %101 : vector<8x16x4xf32> to vector<128x4xf32>
    %c12 = arith.constant 12 : index
    %c0_113 = arith.constant 0 : index
    %c0_114 = arith.constant 0 : index
    %103 = vector.load %arg6[%c12, %c0_113, %c0_114] : memref<16x4x4xf32, #tpu.memory_space<vmem>>, vector<1x4x4xf32>
    %104 = vector.shape_cast %103 : vector<1x4x4xf32> to vector<4x4xf32>
    %cst_115 = arith.constant dense<0.000000e+00> : vector<128x4xf32>
    %105 = tpu.matmul %102, %104, %cst_115 {dimension_numbers = #tpu.dot_dimension_numbers<[1], [0], [0], [1], [0, 0, 1, 1], [], []>} : vector<128x4xf32>, vector<4x4xf32>, vector<128x4xf32> -> vector<128x4xf32>
    %106 = arith.addf %100, %105 : vector<128x4xf32>
    %c1_116 = arith.constant 1 : index
    %c2_117 = arith.constant 2 : index
    %c0_118 = arith.constant 0 : index
    %107 = vector.load %arg9[%c1_116, %c2_117, %c0_118] : memref<10x18x4xf32, #tpu.memory_space<vmem>>, vector<8x16x4xf32>
    %108 = vector.shape_cast %107 : vector<8x16x4xf32> to vector<128x4xf32>
    %c13 = arith.constant 13 : index
    %c0_119 = arith.constant 0 : index
    %c0_120 = arith.constant 0 : index
    %109 = vector.load %arg6[%c13, %c0_119, %c0_120] : memref<16x4x4xf32, #tpu.memory_space<vmem>>, vector<1x4x4xf32>
    %110 = vector.shape_cast %109 : vector<1x4x4xf32> to vector<4x4xf32>
    %cst_121 = arith.constant dense<0.000000e+00> : vector<128x4xf32>
    %111 = tpu.matmul %108, %110, %cst_121 {dimension_numbers = #tpu.dot_dimension_numbers<[1], [0], [0], [1], [0, 0, 1, 1], [], []>} : vector<128x4xf32>, vector<4x4xf32>, vector<128x4xf32> -> vector<128x4xf32>
    %112 = arith.addf %106, %111 : vector<128x4xf32>
    %c2_122 = arith.constant 2 : index
    %c1_123 = arith.constant 1 : index
    %c0_124 = arith.constant 0 : index
    %113 = vector.load %arg9[%c2_122, %c1_123, %c0_124] : memref<10x18x4xf32, #tpu.memory_space<vmem>>, vector<8x16x4xf32>
    %114 = vector.shape_cast %113 : vector<8x16x4xf32> to vector<128x4xf32>
    %c14 = arith.constant 14 : index
    %c0_125 = arith.constant 0 : index
    %c0_126 = arith.constant 0 : index
    %115 = vector.load %arg6[%c14, %c0_125, %c0_126] : memref<16x4x4xf32, #tpu.memory_space<vmem>>, vector<1x4x4xf32>
    %116 = vector.shape_cast %115 : vector<1x4x4xf32> to vector<4x4xf32>
    %cst_127 = arith.constant dense<0.000000e+00> : vector<128x4xf32>
    %117 = tpu.matmul %114, %116, %cst_127 {dimension_numbers = #tpu.dot_dimension_numbers<[1], [0], [0], [1], [0, 0, 1, 1], [], []>} : vector<128x4xf32>, vector<4x4xf32>, vector<128x4xf32> -> vector<128x4xf32>
    %118 = arith.addf %112, %117 : vector<128x4xf32>
    %c2_128 = arith.constant 2 : index
    %c2_129 = arith.constant 2 : index
    %c0_130 = arith.constant 0 : index
    %119 = vector.load %arg9[%c2_128, %c2_129, %c0_130] : memref<10x18x4xf32, #tpu.memory_space<vmem>>, vector<8x16x4xf32>
    %120 = vector.shape_cast %119 : vector<8x16x4xf32> to vector<128x4xf32>
    %c15 = arith.constant 15 : index
    %c0_131 = arith.constant 0 : index
    %c0_132 = arith.constant 0 : index
    %121 = vector.load %arg6[%c15, %c0_131, %c0_132] : memref<16x4x4xf32, #tpu.memory_space<vmem>>, vector<1x4x4xf32>
    %122 = vector.shape_cast %121 : vector<1x4x4xf32> to vector<4x4xf32>
    %cst_133 = arith.constant dense<0.000000e+00> : vector<128x4xf32>
    %123 = tpu.matmul %120, %122, %cst_133 {dimension_numbers = #tpu.dot_dimension_numbers<[1], [0], [0], [1], [0, 0, 1, 1], [], []>} : vector<128x4xf32>, vector<4x4xf32>, vector<128x4xf32> -> vector<128x4xf32>
    %124 = arith.addf %118, %123 : vector<128x4xf32>
    %125 = vector.broadcast %9 : vector<1x4xf32> to vector<128x4xf32>
    %126 = arith.addf %124, %125 : vector<128x4xf32>
    %c0_134 = arith.constant 0 : index
    %c3_135 = arith.constant 3 : index
    %c0_136 = arith.constant 0 : index
    %c0_137 = arith.constant 0 : index
    %127 = vector.load %arg8[%c0_134, %c3_135, %c0_136, %c0_137] : memref<1x4x128x4xf32, #tpu.memory_space<vmem>>, vector<1x1x128x4xf32>
    %128 = vector.shape_cast %127 : vector<1x1x128x4xf32> to vector<128x4xf32>
    %129 = vector.shape_cast %126 : vector<128x4xf32> to vector<1x1x128x4xf32>
    tpu.vector_store %arg8[%c0_134, %c3_135, %c0_136, %c0_137], %129 {strides = array<i32>} : memref<1x4x128x4xf32, #tpu.memory_space<vmem>>, vector<1x1x128x4xf32>,
    return
  }
  func.func @transform_0(%arg0: i32, %arg1: i32, %arg2: i32) -> (i32, i32, i32, i32) {
    %c0_i32 = arith.constant 0 : i32
    %c0_i32_0 = arith.constant 0 : i32
    %c0_i32_1 = arith.constant 0 : i32
    return %arg0, %arg2, %c0_i32, %c0_i32_0 : i32, i32, i32, i32
  }
  func.func @transform_1(%arg0: i32, %arg1: i32, %arg2: i32) -> (i32, i32, i32, i32) {
    %c1_i32 = arith.constant 1 : i32
    %0 = arith.addi %arg2, %c1_i32 : i32
    %c8_i32 = arith.constant 8 : i32
    %1 = arith.muli %0, %c8_i32 : i32
    %c0_i32 = arith.constant 0 : i32
    %c0_i32_0 = arith.constant 0 : i32
    %c0_i32_1 = arith.constant 0 : i32
    return %arg0, %1, %c0_i32, %c0_i32_0 : i32, i32, i32, i32
  }
  func.func @transform_2(%arg0: i32, %arg1: i32, %arg2: i32) -> (i32, i32, i32, i32) {
    %c1_i32 = arith.constant 1 : i32
    %0 = arith.addi %arg2, %c1_i32 : i32
    %c8_i32 = arith.constant 8 : i32
    %1 = arith.muli %0, %c8_i32 : i32
    %c1_i32_0 = arith.constant 1 : i32
    %2 = arith.addi %1, %c1_i32_0 : i32
    %c0_i32 = arith.constant 0 : i32
    %c0_i32_1 = arith.constant 0 : i32
    %c0_i32_2 = arith.constant 0 : i32
    return %arg0, %2, %c0_i32, %c0_i32_1 : i32, i32, i32, i32
  }
  func.func @transform_3(%arg0: i32, %arg1: i32, %arg2: i32) -> (i32, i32, i32) {
    %c0_i32 = arith.constant 0 : i32
    %c0_i32_0 = arith.constant 0 : i32
    %c0_i32_1 = arith.constant 0 : i32
    return %c0_i32, %c0_i32_0, %arg1 : i32, i32, i32
  }
  func.func @transform_4(%arg0: i32, %arg1: i32, %arg2: i32) -> (i32, i32) {
    %c0_i32 = arith.constant 0 : i32
    %c0_i32_0 = arith.constant 0 : i32
    return %c0_i32, %arg1 : i32, i32
  }
  func.func @transform_5(%arg0: i32, %arg1: i32, %arg2: i32) -> (i32, i32, i32, i32) {
    %c0_i32 = arith.constant 0 : i32
    %c0_i32_0 = arith.constant 0 : i32
    return %arg0, %c0_i32, %arg2, %arg1 : i32, i32, i32, i32
  }
}

</mosaic_0001>

<llo_original>
// kernel: tpu_custom_call.1
$region0: #{tpu_custom_call.1}
  #allocation0 [shape = 'u32[]', space=smem, size = 0x4, offset = 0x4, fixed_abs, tag = 'smem constant byte address 0x4 - core index']
  #allocation1 [shape = 'u32[144,128]{1,0:T(1,128)}', space=vmem, size = 0x12000, scoped, tag = 'internal scratch']
  #allocation2 [shape = 'f32[10,18,4]{2,1,0:T(8,128)}', space=vmem, size = 0x1e000, scoped, tag = 'scratch operand']
  #allocation13 [shape = 's32[]', space=sflag, size = 0x4, offset = 0, fixed_abs, tag = 'sflag constant byte address 0x0 - dummy sync flag']
  %s0 = inlined_call_operand.hbm [shape: f32[2,18,18,4], index: 0, kind: input, shape index: {}]
  %s1 = inlined_call_operand.hbm [shape: f32[2,18,18,4], index: 1, kind: input, shape index: {}]
  %s2 = inlined_call_operand.hbm [shape: f32[2,18,18,4], index: 2, kind: input, shape index: {}]
  %s3 = inlined_call_operand.hbm [shape: f32[16,4,4], index: 3, kind: input, shape index: {}]
  %s4 = inlined_call_operand.hbm [shape: f32[1,4], index: 4, kind: input, shape index: {}]
  %s5 = inlined_call_operand.hbm [shape: f32[2,4,256,4], index: 5, kind: output, shape index: {}]
  %s6 = sld [smem:[#allocation0]]
  $region73: #{tpu_custom_call.1} parent=0
    _
  %s8 = ssub.s32 1, %s6
  %s9 = scalar_select 0, %s8, %s6
  $region1: #{tpu_custom_call.1} parent=0
    #allocation3 [shape = 'u8[196608]{0}', space=vmem, size = 0x30000, scoped, tag = 'input window, operand 0']
    #allocation4 [shape = 's32[2]{0}', space=sflag, size = 0x8, scoped, tag = 'scoped memory for tpu_custom_call.1']
    #allocation5 [shape = 's32[2]{0}', space=sflag, size = 0x8, scoped, tag = 'scoped memory for tpu_custom_call.1']
    #allocation6 [shape = 'u8[24576]{0}', space=vmem, size = 0x6000, scoped, tag = 'input window, operand 1']
    #allocation7 [shape = 's32[2]{0}', space=sflag, size = 0x8, scoped, tag = 'scoped memory for tpu_custom_call.1']
    #allocation8 [shape = 'u8[24576]{0}', space=vmem, size = 0x6000, scoped, tag = 'input window, operand 2']
    #allocation9 [shape = 'u8[32768]{0}', space=vmem, size = 0x8000, scoped, tag = 'input window, operand 3, single buffered']
    #allocation10 [shape = 's32[1]{0}', space=sflag, size = 0x4, scoped, tag = 'scoped memory for tpu_custom_call.1']
    #allocation11 [shape = 'u8[512]{0}', space=vmem, size = 0x400, scoped, tag = 'input window, operand 4, single buffered']
    #allocation12 [shape = 'u8[524288]{0}', space=vmem, size = 0x80000, scoped, tag = 'output window, operand 0']
    %10 = vsyncpa [#allocation4], 0
    %s11 = scalar_lea.sflag [#allocation4], 1
    %12 = vsyncpa %s11, 0
    %13 = vsyncpa [#allocation7], 0
    %s14 = scalar_lea.sflag [#allocation7], 1
    %15 = vsyncpa %s14, 0
    %16 = vsyncpa [#allocation10], 0
    %17 = vsyncpa [#allocation5], 0
    %s18 = scalar_lea.sflag [#allocation5], 1
    %19 = vsyncpa %s18, 0
    loop: start=0, step=1, limit=6
    $region2: #{tpu_custom_call.1} parent=1 // loop_pre_header
      _
    $region3: #{tpu_custom_call.1} parent=1 // loop_header
      %s21 = sphi 0, %s25
      %p22 = scmp.ge.s32.totalorder %s21, 6
      %s28 = sphi 0, %s47
      %s29 = sphi 0, %s43
      %s30 = sphi 0, %s39
      %s31 = sphi 0, %s28
      %s32 = sphi 0, %s29
      %s33 = sphi 0, %s30
      %s34 = sphi 0, %s31
      %s35 = sphi 0, %s32
      %s36 = sphi 0, %s33
      %s52 = sphi 0, %s54
      %s55 = sphi 0, %s52
      %s56 = sphi 0, %s55
      %s72 = sphi 0, %s56
      %s84 = sphi 0, %s86
      %s87 = sphi 0, %s84
      %s88 = sphi 0, %s87
      %s104 = sphi 0, %s88
      %s118 = sphi 0, %s120
      %s121 = sphi 0, %s118
      %s122 = sphi 0, %s121
      %s138 = sphi 0, %s122
      %s144 = sphi 0, %s146
      %s147 = sphi 0, %s144
      %s148 = sphi 0, %s147
      %s164 = sphi 0, %s148
      %s170 = sphi 0, %s172
      %s173 = sphi 0, %s170
      %s174 = sphi 0, %s173
      %s190 = sphi 0, %s174
      %s200 = sphi 0, %s202
      %s203 = sphi 0, %s200
      %s204 = sphi 0, %s203
      %s220 = sphi 0, %s204
    $region4: #{tpu_custom_call.1} parent=1 // loop_header_branch
      %24 = sbr.rel (%p22) target = $region8
    $region5: #{tpu_custom_call.1} parent=1 // loop_body
      %s26 = ssub.s32 %s21, 1
      %s27 = ssub.s32 %s21, 2
      %s37 = sadd.s32 1, %s30
      %p38 = scmp.ge.s32.totalorder %s37, 2
      %s39 = scalar_select %p38, 0, %s37
      %s40 = sadd.s32 1, %s29
      %s41 = scalar_select %p38, %s40, %s29
      %p42 = scmp.ge.s32.totalorder %s41, 1
      %s43 = scalar_select %p42, 0, %s41
      %s44 = sadd.s32 1, %s28
      %s45 = scalar_select %p42, %s44, %s28
      %p46 = scmp.ge.s32.totalorder %s45, 2
      %s47 = scalar_select %p46, 0, %s45
      %s48 = ssub.s32 %s28, %s47
      %s49 = ssub.s32 %s30, %s39
      %s50 = sor.u32 %s48, %s49
      %p51 = scmp.eq.s32.totalorder %s50, 0
      %s53 = sadd.s32 %s52, 1
      %s54 = scalar_select %p51, %s52, %s53
      %p57 = pneg %p51
      %p58 = scmp.eq.s32.totalorder %s21, 3
      %p59 = por %p57, %p58
      %p60 = scmp.ne.s32.totalorder %s52, %s55
      %p61 = scmp.eq.s32.totalorder %s21, 0
      %p62 = por %p60, %p61
      %p63 = scmp.ne.s32.totalorder %s52, %s55
      %p64 = scmp.eq.s32.totalorder %s26, 3
      %p65 = por %p63, %p64
      %p66 = scmp.ne.s32.totalorder %s55, %s56
      %p67 = scmp.eq.s32.totalorder %s26, 0
      %p68 = por %p66, %p67
      %p69 = scmp.ne.s32.totalorder %s55, %s56
      %p70 = scmp.eq.s32.totalorder %s27, 3
      %p71 = por %p69, %p70
      %p73 = scmp.ne.s32.totalorder %s56, %s72
      %p74 = scmp.eq.s32.totalorder %s27, 0
      %p75 = por %p73, %p74
      %s76 = sadd.s32 %s30, 1
      %s77 = smul.u32 %s76, 8
      %s78 = sadd.s32 %s39, 1
      %s79 = smul.u32 %s78, 8
      %s80 = ssub.s32 %s28, %s47
      %s81 = ssub.s32 %s77, %s79
      %s82 = sor.u32 %s80, %s81
      %p83 = scmp.eq.s32.totalorder %s82, 0
      %s85 = sadd.s32 %s84, 1
      %s86 = scalar_select %p83, %s84, %s85
      %p89 = pneg %p83
      %p90 = scmp.eq.s32.totalorder %s21, 3
      %p91 = por %p89, %p90
      %p92 = scmp.ne.s32.totalorder %s84, %s87
      %p93 = scmp.eq.s32.totalorder %s21, 0
      %p94 = por %p92, %p93
      %p95 = scmp.ne.s32.totalorder %s84, %s87
      %p96 = scmp.eq.s32.totalorder %s26, 3
      %p97 = por %p95, %p96
      %p98 = scmp.ne.s32.totalorder %s87, %s88
      %p99 = scmp.eq.s32.totalorder %s26, 0
      %p100 = por %p98, %p99
      %p101 = scmp.ne.s32.totalorder %s87, %s88
      %p102 = scmp.eq.s32.totalorder %s27, 3
      %p103 = por %p101, %p102
      %p105 = scmp.ne.s32.totalorder %s88, %s104
      %p106 = scmp.eq.s32.totalorder %s27, 0
      %p107 = por %p105, %p106
      %s108 = sadd.s32 %s30, 1
      %s109 = smul.u32 %s108, 8
      %s110 = sadd.s32 %s109, 1
      %s111 = sadd.s32 %s39, 1
      %s112 = smul.u32 %s111, 8
      %s113 = sadd.s32 %s112, 1
      %s114 = ssub.s32 %s28, %s47
      %s115 = ssub.s32 %s110, %s113
      %s116 = sor.u32 %s114, %s115
      %p117 = scmp.eq.s32.totalorder %s116, 0
      %s119 = sadd.s32 %s118, 1
      %s120 = scalar_select %p117, %s118, %s119
      %p123 = pneg %p117
      %p124 = scmp.eq.s32.totalorder %s21, 3
      %p125 = por %p123, %p124
      %p126 = scmp.ne.s32.totalorder %s118, %s121
      %p127 = scmp.eq.s32.totalorder %s21, 0
      %p128 = por %p126, %p127
      %p129 = scmp.ne.s32.totalorder %s118, %s121
      %p130 = scmp.eq.s32.totalorder %s26, 3
      %p131 = por %p129, %p130
      %p132 = scmp.ne.s32.totalorder %s121, %s122
      %p133 = scmp.eq.s32.totalorder %s26, 0
      %p134 = por %p132, %p133
      %p135 = scmp.ne.s32.totalorder %s121, %s122
      %p136 = scmp.eq.s32.totalorder %s27, 3
      %p137 = por %p135, %p136
      %p139 = scmp.ne.s32.totalorder %s122, %s138
      %p140 = scmp.eq.s32.totalorder %s27, 0
      %p141 = por %p139, %p140
      %s142 = ssub.s32 %s29, %s43
      %p143 = scmp.eq.s32.totalorder %s142, 0
      %s145 = sadd.s32 %s144, 1
      %s146 = scalar_select %p143, %s144, %s145
      %p149 = pneg %p143
      %p150 = scmp.eq.s32.totalorder %s21, 3
      %p151 = por %p149, %p150
      %p152 = scmp.ne.s32.totalorder %s144, %s147
      %p153 = scmp.eq.s32.totalorder %s21, 0
      %p154 = por %p152, %p153
      %p155 = scmp.ne.s32.totalorder %s144, %s147
      %p156 = scmp.eq.s32.totalorder %s26, 3
      %p157 = por %p155, %p156
      %p158 = scmp.ne.s32.totalorder %s147, %s148
      %p159 = scmp.eq.s32.totalorder %s26, 0
      %p160 = por %p158, %p159
      %p161 = scmp.ne.s32.totalorder %s147, %s148
      %p162 = scmp.eq.s32.totalorder %s27, 3
      %p163 = por %p161, %p162
      %p165 = scmp.ne.s32.totalorder %s148, %s164
      %p166 = scmp.eq.s32.totalorder %s27, 0
      %p167 = por %p165, %p166
      %s168 = ssub.s32 %s29, %s43
      %p169 = scmp.eq.s32.totalorder %s168, 0
      %s171 = sadd.s32 %s170, 1
      %s172 = scalar_select %p169, %s170, %s171
      %p175 = pneg %p169
      %p176 = scmp.eq.s32.totalorder %s21, 3
      %p177 = por %p175, %p176
      %p178 = scmp.ne.s32.totalorder %s170, %s173
      %p179 = scmp.eq.s32.totalorder %s21, 0
      %p180 = por %p178, %p179
      %p181 = scmp.ne.s32.totalorder %s170, %s173
      %p182 = scmp.eq.s32.totalorder %s26, 3
      %p183 = por %p181, %p182
      %p184 = scmp.ne.s32.totalorder %s173, %s174
      %p185 = scmp.eq.s32.totalorder %s26, 0
      %p186 = por %p184, %p185
      %p187 = scmp.ne.s32.totalorder %s173, %s174
      %p188 = scmp.eq.s32.totalorder %s27, 3
      %p189 = por %p187, %p188
      %p191 = scmp.ne.s32.totalorder %s174, %s190
      %p192 = scmp.eq.s32.totalorder %s27, 0
      %p193 = por %p191, %p192
      %s194 = ssub.s32 %s28, %s47
      %s195 = ssub.s32 %s30, %s39
      %s196 = sor.u32 %s194, %s195
      %s197 = ssub.s32 %s29, %s43
      %s198 = sor.u32 %s196, %s197
      %p199 = scmp.eq.s32.totalorder %s198, 0
      %s201 = sadd.s32 %s200, 1
      %s202 = scalar_select %p199, %s200, %s201
      %p205 = pneg %p199
      %p206 = scmp.eq.s32.totalorder %s21, 3
      %p207 = por %p205, %p206
      %p208 = scmp.ne.s32.totalorder %s200, %s203
      %p209 = scmp.eq.s32.totalorder %s21, 0
      %p210 = por %p208, %p209
      %p211 = scmp.ne.s32.totalorder %s200, %s203
      %p212 = scmp.eq.s32.totalorder %s26, 3
      %p213 = por %p211, %p212
      %p214 = scmp.ne.s32.totalorder %s203, %s204
      %p215 = scmp.eq.s32.totalorder %s26, 0
      %p216 = por %p214, %p215
      %p217 = scmp.ne.s32.totalorder %s203, %s204
      %p218 = scmp.eq.s32.totalorder %s27, 3
      %p219 = por %p217, %p218
      %p221 = scmp.ne.s32.totalorder %s204, %s220
      %p222 = scmp.eq.s32.totalorder %s27, 0
      %p223 = por %p221, %p222
      %p224 = scmp.le.s32.totalorder 1, %s21
      %p225 = scmp.lt.s32.totalorder %s21, 5
      %p226 = pnand %p224, %p225
      %p227 = pneg %p226
      // Predicated region
      $region9: #{tpu_custom_call.1} parent=5 // pred_check
        _
      $region10: #{tpu_custom_call.1} parent=5 // pred_check_branch
        %229 = sbr.rel (%p226) target = $region12
      $region11: #{tpu_custom_call.1} parent=5 // pred_region
        %s230 = ssub.s32 %s21, 1
        // Predicated region
        $region13: #{tpu_custom_call.1} parent=11 // pred_check
          %p231 = pneg %p160
        $region14: #{tpu_custom_call.1} parent=11 // pred_check_branch
          %233 = sbr.rel (%p231) target = $region16
        $region15: #{tpu_custom_call.1} parent=11 // pred_region
          %s235 = ssub.s32 1024, 1024
          %236 = vsyncadd [#allocation10], %s235
          %s237 = smul.addr %s32, 64
          %s238 = scalar_lea.hbm %s3, %s237
          %s239 = sshll.u32 [#allocation9], 4
          %s240 = int_to_ptr.vmem [resolvable:$true] %s239
          %245 = dma.hbm_to_vmem [thread:$0]  %s238, 1024, %s240, [#allocation10], 64, 64, 4
        $region16: #{tpu_custom_call.1} parent=11 // pred_fallthru
          _
        // Predicated region
        $region17: #{tpu_custom_call.1} parent=11 // pred_check
          %p246 = pneg %p186
        $region18: #{tpu_custom_call.1} parent=11 // pred_check_branch
          %248 = sbr.rel (%p246) target = $region20
        $region19: #{tpu_custom_call.1} parent=11 // pred_region
          %s250 = ssub.s32 16, 16
          %251 = vsyncadd [#allocation10], %s250
          %s252 = smul.addr %s32, 16
          %s253 = scalar_lea.hbm %s4, %s252
          %s255 = sshll.u32 [#allocation11], 4
          %s256 = int_to_ptr.vmem [resolvable:$true] %s255
          %258 = dma.hbm_to_vmem [thread:$0]  %s253, 16, %s256, [#allocation10]
        $region20: #{tpu_custom_call.1} parent=11 // pred_fallthru
          _
      $region12: #{tpu_custom_call.1} parent=5 // pred_fallthru
        _
      %p259 = scmp.lt.s32.totalorder %s21, 4
      // Predicated region
      $region21: #{tpu_custom_call.1} parent=5 // pred_check
        %p260 = pneg %p259
      $region22: #{tpu_custom_call.1} parent=5 // pred_check_branch
        %262 = sbr.rel (%p260) target = $region24
      $region23: #{tpu_custom_call.1} parent=5 // pred_region
        // Predicated region
        $region25: #{tpu_custom_call.1} parent=23 // pred_check
          %p263 = pneg %p62
        $region26: #{tpu_custom_call.1} parent=23 // pred_check_branch
          %265 = sbr.rel (%p263) target = $region28
        $region27: #{tpu_custom_call.1} parent=23 // pred_region
          %s266 = sand.u32 %s52, 1
          %s267 = scalar_lea.sflag [#allocation4], %s266
          %s268 = sand.u32 %s52, 1
          %s269 = smul.addr %s268, 192
          %s270 = scalar_lea.vmem [#allocation3], %s269
          %s271 = smul.u32 8, %s30
          %s272 = ssub.s32 18, %s271
          %p273 = scmp.lt.s32.totalorder %s272, 8
          %s274 = scalar_select %p273, %s272, 8
          %s275 = smul.u32 128, %s274
          %s276 = smul.u32 %s275, 3
          %s278 = ssub.s32 3072, %s276
          %279 = vsyncadd %s267, %s278
          %p280 = scmp.ne.s32.totalorder 0, %s276
          %s281 = smul.addr %s271, 3
          %s282 = smul.addr %s28, 54
          %s283 = sadd.s32 %s281, %s282
          %s284 = smul.addr %s283, 128
          %s285 = scalar_lea.hbm %s0, %s284
          %s286 = smul.u32 %s274, 3
          %s287 = smul.u32 8, %s286
          %s288 = sshll.u32 %s270, 4
          %s289 = int_to_ptr.vmem [resolvable:$true] %s288
          %s290 = sshll.u32 %s287, 4
          %294 = dma.hbm_to_vmem [thread:$0]  (%p280), %s285, %s290, %s289, %s267, 128, 128, 8
        $region28: #{tpu_custom_call.1} parent=23 // pred_fallthru
          _
        // Predicated region
        $region29: #{tpu_custom_call.1} parent=23 // pred_check
          %p295 = pneg %p94
        $region30: #{tpu_custom_call.1} parent=23 // pred_check_branch
          %297 = sbr.rel (%p295) target = $region32
        $region31: #{tpu_custom_call.1} parent=23 // pred_region
          %s298 = sand.u32 %s21, 1
          %s299 = scalar_lea.sflag [#allocation7], %s298
          %s300 = sand.u32 %s84, 1
          %s301 = smul.addr %s300, 24
          %s302 = scalar_lea.vmem [#allocation6], %s301
          %s303 = sadd.s32 %s30, 1
          %s304 = smul.u32 %s303, 8
          %s306 = ssub.s32 384, 384
          %307 = vsyncadd %s299, %s306
          %s308 = smul.addr %s304, 3
          %s309 = smul.addr %s28, 54
          %s310 = sadd.s32 %s308, %s309
          %s311 = smul.addr %s310, 128
          %s312 = scalar_lea.hbm %s1, %s311
          %s313 = sshll.u32 %s302, 4
          %s314 = int_to_ptr.vmem [resolvable:$true] %s313
          %319 = dma.hbm_to_vmem [thread:$0]  %s312, 384, %s314, %s299, 128, 128, 8
        $region32: #{tpu_custom_call.1} parent=23 // pred_fallthru
          _
        // Predicated region
        $region33: #{tpu_custom_call.1} parent=23 // pred_check
          %p320 = pneg %p128
        $region34: #{tpu_custom_call.1} parent=23 // pred_check_branch
          %322 = sbr.rel (%p320) target = $region36
        $region35: #{tpu_custom_call.1} parent=23 // pred_region
          %s323 = sand.u32 %s21, 1
          %s324 = scalar_lea.sflag [#allocation7], %s323
          %s325 = sand.u32 %s118, 1
          %s326 = smul.addr %s325, 24
          %s327 = scalar_lea.vmem [#allocation8], %s326
          %s328 = sadd.s32 %s30, 1
          %s329 = smul.u32 %s328, 8
          %s330 = sadd.s32 %s329, 1
          %s332 = ssub.s32 384, 384
          %333 = vsyncadd %s324, %s332
          %s334 = smul.addr %s330, 3
          %s335 = smul.addr %s28, 54
          %s336 = sadd.s32 %s334, %s335
          %s337 = smul.addr %s336, 128
          %s338 = scalar_lea.hbm %s2, %s337
          %s339 = sshll.u32 %s327, 4
          %s340 = int_to_ptr.vmem [resolvable:$true] %s339
          %345 = dma.hbm_to_vmem [thread:$0]  %s338, 384, %s340, %s324, 128, 128, 8
        $region36: #{tpu_custom_call.1} parent=23 // pred_fallthru
          _
      $region24: #{tpu_custom_call.1} parent=5 // pred_fallthru
        _
      %p346 = scmp.le.s32.totalorder 1, %s21
      %p347 = scmp.lt.s32.totalorder %s21, 5
      %p348 = pnand %p346, %p347
      %p349 = pneg %p348
      // Predicated region
      $region37: #{tpu_custom_call.1} parent=5 // pred_check
        _
      $region38: #{tpu_custom_call.1} parent=5 // pred_check_branch
        %351 = sbr.rel (%p348) target = $region40
      $region39: #{tpu_custom_call.1} parent=5 // pred_region
        %s352 = ssub.s32 %s21, 1
        %s353 = sand.u32 %s55, 1
        %s354 = scalar_lea.sflag [#allocation4], %s353
        %s355 = sand.u32 %s55, 1
        %s356 = smul.addr %s355, 192
        %s357 = scalar_lea.vmem [#allocation3], %s356
        // Predicated region
        $region41: #{tpu_custom_call.1} parent=39 // pred_check
          %p358 = pneg %p68
        $region42: #{tpu_custom_call.1} parent=39 // pred_check_branch
          %360 = sbr.rel (%p358) target = $region44
        $region43: #{tpu_custom_call.1} parent=39 // pred_region
          %361 = dma.done %s354, 3072
        $region44: #{tpu_custom_call.1} parent=39 // pred_fallthru
          _
        %s362 = sand.u32 %s26, 1
        %s363 = scalar_lea.sflag [#allocation7], %s362
        %s364 = sand.u32 %s87, 1
        %s365 = smul.addr %s364, 24
        %s366 = scalar_lea.vmem [#allocation6], %s365
        // Predicated region
        $region45: #{tpu_custom_call.1} parent=39 // pred_check
          %p367 = pneg %p100
        $region46: #{tpu_custom_call.1} parent=39 // pred_check_branch
          %369 = sbr.rel (%p367) target = $region48
        $region47: #{tpu_custom_call.1} parent=39 // pred_region
          %370 = dma.done %s363, 384
        $region48: #{tpu_custom_call.1} parent=39 // pred_fallthru
          _
        %s371 = sand.u32 %s26, 1
        %s372 = scalar_lea.sflag [#allocation7], %s371
        %s373 = sand.u32 %s121, 1
        %s374 = smul.addr %s373, 24
        %s375 = scalar_lea.vmem [#allocation8], %s374
        // Predicated region
        $region49: #{tpu_custom_call.1} parent=39 // pred_check
          %p376 = pneg %p134
        $region50: #{tpu_custom_call.1} parent=39 // pred_check_branch
          %378 = sbr.rel (%p376) target = $region52
        $region51: #{tpu_custom_call.1} parent=39 // pred_region
          %379 = dma.done %s372, 384
        $region52: #{tpu_custom_call.1} parent=39 // pred_fallthru
          _
        // Predicated region
        $region53: #{tpu_custom_call.1} parent=39 // pred_check
          %p380 = pneg %p160
        $region54: #{tpu_custom_call.1} parent=39 // pred_check_branch
          %382 = sbr.rel (%p380) target = $region56
        $region55: #{tpu_custom_call.1} parent=39 // pred_region
          %383 = dma.done [#allocation10], 1024
        $region56: #{tpu_custom_call.1} parent=39 // pred_fallthru
          _
        // Predicated region
        $region57: #{tpu_custom_call.1} parent=39 // pred_check
          %p384 = pneg %p186
        $region58: #{tpu_custom_call.1} parent=39 // pred_check_branch
          %386 = sbr.rel (%p384) target = $region60
        $region59: #{tpu_custom_call.1} parent=39 // pred_region
          %387 = dma.done [#allocation10], 16
        $region60: #{tpu_custom_call.1} parent=39 // pred_fallthru
          _
        %s388 = sand.u32 %s55, 1
        %s389 = scalar_lea.sflag [#allocation4], %s388
        %s390 = sand.u32 %s55, 1
        %s391 = smul.addr %s390, 192
        %s392 = scalar_lea.vmem [#allocation3], %s391
        %p393 = pneg %p68
        %p394 = pneg %p65
        %s395 = sand.u32 %s26, 1
        %s396 = scalar_lea.sflag [#allocation7], %s395
        %s397 = sand.u32 %s87, 1
        %s398 = smul.addr %s397, 24
        %s399 = scalar_lea.vmem [#allocation6], %s398
        %p400 = pneg %p100
        %p401 = pneg %p97
        %s402 = sand.u32 %s26, 1
        %s403 = scalar_lea.sflag [#allocation7], %s402
        %s404 = sand.u32 %s121, 1
        %s405 = smul.addr %s404, 24
        %s406 = scalar_lea.vmem [#allocation8], %s405
        %p407 = pneg %p134
        %p408 = pneg %p131
        %p409 = pneg %p160
        %p410 = pneg %p157
        %p411 = pneg %p186
        %p412 = pneg %p183
        %p413 = pneg %p216
        %p414 = pneg %p213
        %s415 = sand.u32 %s203, 1
        %s416 = scalar_lea.sflag [#allocation5], %s415
        %s417 = sand.u32 %s203, 1
        %s418 = smul.addr %s417, 512
        %s419 = scalar_lea.vmem [#allocation12], %s418
        %s420 = smul.u32 8, %s33
        %s421 = ssub.s32 18, %s420
        %p422 = scmp.lt.s32.totalorder %s421, 8
        %s423 = scalar_select %p422, %s421, 8
        %s424 = smul.u32 128, %s423
        %s425 = smul.u32 %s424, 3
        %s426 = sadd.s32 %s33, 1
        %s427 = smul.u32 %s426, 8
        %s428 = sadd.s32 %s33, 1
        %s429 = smul.u32 %s428, 8
        %s430 = sadd.s32 %s429, 1
        %s431 = smul.u32 16, %s33
        %v432 = vld [vmem:[%s357] sm:$0xff]
        %v433 = vld [vmem:[%s357 + $0x8] sm:$0xff]
        %v434 = vld [vmem:[%s357 + $0x10] sm:$0x3]
        %v435 = vld [vmem:[%s357 + $0x18] sm:$0xff]
        %v436 = vld [vmem:[%s357 + $0x20] sm:$0xff]
        %v437 = vld [vmem:[%s357 + $0x28] sm:$0x3]
        %v438 = vld [vmem:[%s357 + $0x30] sm:$0xff]
        %v439 = vld [vmem:[%s357 + $0x38] sm:$0xff]
        %v440 = vld [vmem:[%s357 + $0x40] sm:$0x3]
        %v441 = vld [vmem:[%s357 + $0x48] sm:$0xff]
        %v442 = vld [vmem:[%s357 + $0x50] sm:$0xff]
        %v443 = vld [vmem:[%s357 + $0x58] sm:$0x3]
        %v444 = vld [vmem:[%s357 + $0x60] sm:$0xff]
        %v445 = vld [vmem:[%s357 + $0x68] sm:$0xff]
        %v446 = vld [vmem:[%s357 + $0x70] sm:$0x3]
        %v447 = vld [vmem:[%s357 + $0x78] sm:$0xff]
        %v448 = vld [vmem:[%s357 + $0x80] sm:$0xff]
        %v449 = vld [vmem:[%s357 + $0x88] sm:$0x3]
        %v450 = vld [vmem:[%s357 + $0x90] sm:$0xff]
        %v451 = vld [vmem:[%s357 + $0x98] sm:$0xff]
        %v452 = vld [vmem:[%s357 + $0xa0] sm:$0x3]
        %v453 = vld [vmem:[%s357 + $0xa8] sm:$0xff]
        %v454 = vld [vmem:[%s357 + $0xb0] sm:$0xff]
        %v455 = vld [vmem:[%s357 + $0xb8] sm:$0x3]
        %vm456 = vcmask 31744
        %457 = vst.msk [vmem:[#allocation2] sm:$0xff] %vm456, %v432
        %458 = vst.msk [vmem:[#allocation2 + $0x8] sm:$0xff] %vm456, %v433
        %vm459 = vcmask 25600
        %460 = vst.msk [vmem:[#allocation2 + $0x10] sm:$0x3] %vm459, %v434
        %461 = vst.msk [vmem:[#allocation2 + $0x18] sm:$0xff] %vm456, %v435
        %462 = vst.msk [vmem:[#allocation2 + $0x20] sm:$0xff] %vm456, %v436
        %463 = vst.msk [vmem:[#allocation2 + $0x28] sm:$0x3] %vm459, %v437
        %464 = vst.msk [vmem:[#allocation2 + $0x30] sm:$0xff] %vm456, %v438
        %465 = vst.msk [vmem:[#allocation2 + $0x38] sm:$0xff] %vm456, %v439
        %466 = vst.msk [vmem:[#allocation2 + $0x40] sm:$0x3] %vm459, %v440
        %467 = vst.msk [vmem:[#allocation2 + $0x48] sm:$0xff] %vm456, %v441
        %468 = vst.msk [vmem:[#allocation2 + $0x50] sm:$0xff] %vm456, %v442
        %469 = vst.msk [vmem:[#allocation2 + $0x58] sm:$0x3] %vm459, %v443
        %470 = vst.msk [vmem:[#allocation2 + $0x60] sm:$0xff] %vm456, %v444
        %471 = vst.msk [vmem:[#allocation2 + $0x68] sm:$0xff] %vm456, %v445
        %472 = vst.msk [vmem:[#allocation2 + $0x70] sm:$0x3] %vm459, %v446
        %473 = vst.msk [vmem:[#allocation2 + $0x78] sm:$0xff] %vm456, %v447
        %474 = vst.msk [vmem:[#allocation2 + $0x80] sm:$0xff] %vm456, %v448
        %475 = vst.msk [vmem:[#allocation2 + $0x88] sm:$0x3] %vm459, %v449
        %476 = vst.msk [vmem:[#allocation2 + $0x90] sm:$0xff] %vm456, %v450
        %477 = vst.msk [vmem:[#allocation2 + $0x98] sm:$0xff] %vm456, %v451
        %478 = vst.msk [vmem:[#allocation2 + $0xa0] sm:$0x3] %vm459, %v452
        %479 = vst.msk [vmem:[#allocation2 + $0xa8] sm:$0xff] %vm456, %v453
        %480 = vst.msk [vmem:[#allocation2 + $0xb0] sm:$0xff] %vm456, %v454
        %481 = vst.msk [vmem:[#allocation2 + $0xb8] sm:$0x3] %vm459, %v455
        %v482 = vld [vmem:[%s366] sm:$0xff]
        %v483 = vld [vmem:[%s366 + $0x8] sm:$0xff]
        %v484 = vld [vmem:[%s366 + $0x10] sm:$0x3]
        %s485 = scalar_lea.vmem [#allocation2], 192
        %486 = vst.msk [vmem:[%s485] sm:$0xff] %vm456, %v482
        %487 = vst.msk [vmem:[%s485 + $0x8] sm:$0xff] %vm456, %v483
        %488 = vst.msk [vmem:[%s485 + $0x10] sm:$0x3] %vm459, %v484
        %v489 = vld [vmem:[%s375] sm:$0xff]
        %v490 = vld [vmem:[%s375 + $0x8] sm:$0xff]
        %v491 = vld [vmem:[%s375 + $0x10] sm:$0x3]
        %s492 = scalar_lea.vmem [#allocation2], 216
        %493 = vst.msk [vmem:[%s492] sm:$0xff] %vm456, %v489
        %494 = vst.msk [vmem:[%s492 + $0x8] sm:$0xff] %vm456, %v490
        %495 = vst.msk [vmem:[%s492 + $0x10] sm:$0x3] %vm459, %v491
        %v496 = vld [vmem:[#allocation11] sm:$0x1]
        %v497 = vld [vmem:[#allocation2] sm:$0xff]
        %v498 = vld [vmem:[#allocation2 + $0x8] sm:$0xff]
        %v499 = vld [vmem:[#allocation2 + $0x18] sm:$0xff]
        %v500 = vld [vmem:[#allocation2 + $0x20] sm:$0xff]
        %v501 = vld [vmem:[#allocation2 + $0x30] sm:$0xff]
        %v502 = vld [vmem:[#allocation2 + $0x38] sm:$0xff]
        %v503 = vld [vmem:[#allocation2 + $0x48] sm:$0xff]
        %v504 = vld [vmem:[#allocation2 + $0x50] sm:$0xff]
        %v505 = vld [vmem:[#allocation2 + $0x60] sm:$0xff]
        %v506 = vld [vmem:[#allocation2 + $0x68] sm:$0xff]
        %v507 = vld [vmem:[#allocation2 + $0x78] sm:$0xff]
        %v508 = vld [vmem:[#allocation2 + $0x80] sm:$0xff]
        %v509 = vld [vmem:[#allocation2 + $0x90] sm:$0xff]
        %v510 = vld [vmem:[#allocation2 + $0x98] sm:$0xff]
        %v511 = vld [vmem:[#allocation2 + $0xa8] sm:$0xff]
        %v512 = vld [vmem:[#allocation2 + $0xb0] sm:$0xff]
        %v513 = vld [vmem:[#allocation9] sm:$0xf]
        %v514 = vld [vmem:[#allocation2 + $0x1] sm:$0xff]
        %v515 = vld [vmem:[#allocation2 + $0x9] sm:$0xff]
        %v516 = vld [vmem:[#allocation2 + $0x19] sm:$0xff]
        %v517 = vld [vmem:[#allocation2 + $0x21] sm:$0xff]
        %v518 = vld [vmem:[#allocation2 + $0x31] sm:$0xff]
        %v519 = vld [vmem:[#allocation2 + $0x39] sm:$0xff]
        %v520 = vld [vmem:[#allocation2 + $0x49] sm:$0xff]
        %v521 = vld [vmem:[#allocation2 + $0x51] sm:$0xff]
        %v522 = vld [vmem:[#allocation2 + $0x61] sm:$0xff]
        %v523 = vld [vmem:[#allocation2 + $0x69] sm:$0xff]
        %v524 = vld [vmem:[#allocation2 + $0x79] sm:$0xff]
        %v525 = vld [vmem:[#allocation2 + $0x81] sm:$0xff]
        %v526 = vld [vmem:[#allocation2 + $0x91] sm:$0xff]
        %v527 = vld [vmem:[#allocation2 + $0x99] sm:$0xff]
        %v528 = vld [vmem:[#allocation2 + $0xa9] sm:$0xff]
        %v529 = vld [vmem:[#allocation2 + $0xb1] sm:$0xff]
        %s530 = scalar_lea.vmem [#allocation9], 4
        %v531 = vld [vmem:[%s530] sm:$0xf]
        %v533 = vsel %vm456, %v514, 0
        %v536 = vsel %vm456, %v515, 0
        %v539 = vsel %vm456, %v516, 0
        %v542 = vsel %vm456, %v517, 0
        %v545 = vsel %vm456, %v518, 0
        %v548 = vsel %vm456, %v519, 0
        %v551 = vsel %vm456, %v520, 0
        %v554 = vsel %vm456, %v521, 0
        %v557 = vsel %vm456, %v522, 0
        %v560 = vsel %vm456, %v523, 0
        %v563 = vsel %vm456, %v524, 0
        %v566 = vsel %vm456, %v525, 0
        %v569 = vsel %vm456, %v526, 0
        %v572 = vsel %vm456, %v527, 0
        %v575 = vsel %vm456, %v528, 0
        %v578 = vsel %vm456, %v529, 0
        %vm580 = vcmask 1043456
        %v582 = vsel %vm580, %v531, 0
        %584 = vmatprep.subr.mxu0 0.0
        %585 = vmatpush1.msra.mxu0 %v582
        %586 = vmatprep.subr.mxu0 0.0
        %587 = vmatpush1.msra.mxu0 0.0
        %588 = vmatprep.subr.mxu0 0.0
        %589 = vmatpush1.msra.mxu0 0.0
        %590 = vmatprep.subr.mxu0 0.0
        %591 = vmatpush1.msra.mxu0 0.0
        %592 = vmatprep.subr.mxu0 0.0
        %593 = vmatpush1.msra.mxu0 0.0
        %594 = vmatprep.subr.mxu0 0.0
        %595 = vmatpush1.msra.mxu0 0.0
        %596 = vmatprep.subr.mxu0 0.0
        %597 = vmatpush1.msra.mxu0 0.0
        %598 = vmatprep.subr.mxu0 0.0
        %599 = vmatpush1.msra.mxu0 0.0
        %600 = vmatprep.subr.mxu0 0.0
        %601 = vmatpush1.msra.mxu0 0.0
        %602 = vmatprep.subr.mxu0 0.0
        %603 = vmatpush1.msra.mxu0 0.0
        %604 = vmatprep.subr.mxu0 0.0
        %605 = vmatpush1.msra.mxu0 0.0
        %606 = vmatprep.subr.mxu0 0.0
        %607 = vmatpush1.msra.mxu0 0.0
        %608 = vmatprep.subr.mxu0 0.0
        %609 = vmatpush1.msra.mxu0 0.0
        %610 = vmatprep.subr.mxu0 0.0
        %611 = vmatpush1.msra.mxu0 0.0
        %612 = vmatprep.subr.mxu0 0.0
        %613 = vmatpush1.msra.mxu0 0.0
        %614 = vmatprep.subr.mxu0 0.0
        %615 = vmatpush1.msra.mxu0 0.0
        %616 = vmatprep.subr.mxu0 0.0
        %617 = vmatpush1.msra.mxu0 0.0
        %618 = vmatprep.subr.mxu0 0.0
        %619 = vmatpush1.msra.mxu0 0.0
        %620 = vmatprep.subr.mxu0 0.0
        %621 = vmatpush1.msra.mxu0 0.0
        %622 = vmatprep.subr.mxu0 0.0
        %623 = vmatpush1.msra.mxu0 0.0
        %624 = vmatprep.subr.mxu0 0.0
        %625 = vmatpush1.msra.mxu0 0.0
        %626 = vmatprep.subr.mxu0 0.0
        %627 = vmatpush1.msra.mxu0 0.0
        %628 = vmatprep.subr.mxu0 0.0
        %629 = vmatpush1.msra.mxu0 0.0
        %630 = vmatprep.subr.mxu0 0.0
        %631 = vmatpush1.msra.mxu0 0.0
        %632 = vmatprep.subr.mxu0 0.0
        %633 = vmatpush1.msra.mxu0 0.0
        %634 = vmatprep.subr.mxu0 0.0
        %635 = vmatpush1.msra.mxu0 0.0
        %636 = vmatprep.subr.mxu0 0.0
        %637 = vmatpush1.msra.mxu0 0.0
        %638 = vmatprep.subr.mxu0 0.0
        %639 = vmatpush1.msra.mxu0 0.0
        %640 = vmatprep.subr.mxu0 0.0
        %641 = vmatpush1.msra.mxu0 0.0
        %642 = vmatprep.subr.mxu0 0.0
        %643 = vmatpush1.msra.mxu0 0.0
        %644 = vmatprep.subr.mxu0 0.0
        %645 = vmatpush1.msra.mxu0 0.0
        %646 = vmatprep.subr.mxu0 0.0
        %647 = vmatpush1.msra.mxu0 0.0
        %648 = vmatprep.mubr.f32.mxu0 0.0
        %649 = vmatmul.mubr.f32.gmra.mrb[0].mxu0 %v533
        %v650 = vpop.f32.mrb[0].mxu0
        %v651 = vadd.f32 0.0, %v650
        %v652 = vpop.f32.mrb[0].mxu0
        %653 = vmatprep.mubr.f32.mxu0 0.0
        %654 = vmatmul.mubr.f32.gmra.mrb[0].mxu0 %v536
        %v655 = vpop.f32.mrb[0].mxu0
        %v656 = vadd.f32 0.0, %v655
        %v657 = vpop.f32.mrb[0].mxu0
        %658 = vmatprep.mubr.f32.mxu0 0.0
        %659 = vmatmul.mubr.f32.gmra.mrb[0].mxu0 %v539
        %v660 = vpop.f32.mrb[0].mxu0
        %v661 = vadd.f32 0.0, %v660
        %v662 = vpop.f32.mrb[0].mxu0
        %663 = vmatprep.mubr.f32.mxu0 0.0
        %664 = vmatmul.mubr.f32.gmra.mrb[0].mxu0 %v542
        %v665 = vpop.f32.mrb[0].mxu0
        %v666 = vadd.f32 0.0, %v665
        %v667 = vpop.f32.mrb[0].mxu0
        %668 = vmatprep.mubr.f32.mxu0 0.0
        %669 = vmatmul.mubr.f32.gmra.mrb[0].mxu0 %v545
        %v670 = vpop.f32.mrb[0].mxu0
        %v671 = vadd.f32 0.0, %v670
        %v672 = vpop.f32.mrb[0].mxu0
        %673 = vmatprep.mubr.f32.mxu0 0.0
        %674 = vmatmul.mubr.f32.gmra.mrb[0].mxu0 %v548
        %v675 = vpop.f32.mrb[0].mxu0
        %v676 = vadd.f32 0.0, %v675
        %v677 = vpop.f32.mrb[0].mxu0
        %678 = vmatprep.mubr.f32.mxu0 0.0
        %679 = vmatmul.mubr.f32.gmra.mrb[0].mxu0 %v551
        %v680 = vpop.f32.mrb[0].mxu0
        %v681 = vadd.f32 0.0, %v680
        %v682 = vpop.f32.mrb[0].mxu0
        %683 = vmatprep.mubr.f32.mxu0 0.0
        %684 = vmatmul.mubr.f32.gmra.mrb[0].mxu0 %v554
        %v685 = vpop.f32.mrb[0].mxu0
        %v686 = vadd.f32 0.0, %v685
        %v687 = vpop.f32.mrb[0].mxu0
        %688 = vmatprep.mubr.f32.mxu0 0.0
        %689 = vmatmul.mubr.f32.gmra.mrb[0].mxu0 %v557
        %v690 = vpop.f32.mrb[0].mxu0
        %v691 = vadd.f32 0.0, %v690
        %v692 = vpop.f32.mrb[0].mxu0
        %693 = vmatprep.mubr.f32.mxu0 0.0
        %694 = vmatmul.mubr.f32.gmra.mrb[0].mxu0 %v560
        %v695 = vpop.f32.mrb[0].mxu0
        %v696 = vadd.f32 0.0, %v695
        %v697 = vpop.f32.mrb[0].mxu0
        %698 = vmatprep.mubr.f32.mxu0 0.0
        %699 = vmatmul.mubr.f32.gmra.mrb[0].mxu0 %v563
        %v700 = vpop.f32.mrb[0].mxu0
        %v701 = vadd.f32 0.0, %v700
        %v702 = vpop.f32.mrb[0].mxu0
        %703 = vmatprep.mubr.f32.mxu0 0.0
        %704 = vmatmul.mubr.f32.gmra.mrb[0].mxu0 %v566
        %v705 = vpop.f32.mrb[0].mxu0
        %v706 = vadd.f32 0.0, %v705
        %v707 = vpop.f32.mrb[0].mxu0
        %708 = vmatprep.mubr.f32.mxu0 0.0
        %709 = vmatmul.mubr.f32.gmra.mrb[0].mxu0 %v569
        %v710 = vpop.f32.mrb[0].mxu0
        %v711 = vadd.f32 0.0, %v710
        %v712 = vpop.f32.mrb[0].mxu0
        %713 = vmatprep.mubr.f32.mxu0 0.0
        %714 = vmatmul.mubr.f32.gmra.mrb[0].mxu0 %v572
        %v715 = vpop.f32.mrb[0].mxu0
        %v716 = vadd.f32 0.0, %v715
        %v717 = vpop.f32.mrb[0].mxu0
        %718 = vmatprep.mubr.f32.mxu0 0.0
        %719 = vmatmul.mubr.f32.gmra.mrb[0].mxu0 %v575
        %v720 = vpop.f32.mrb[0].mxu0
        %v721 = vadd.f32 0.0, %v720
        %v722 = vpop.f32.mrb[0].mxu0
        %723 = vmatprep.mubr.f32.mxu0 0.0
        %724 = vmatmul.mubr.f32.gmra.mrb[0].mxu0 %v578
        %v725 = vpop.f32.mrb[0].mxu0
        %v726 = vadd.f32 0.0, %v725
        %v727 = vpop.f32.mrb[0].mxu0
        %728 = vdwg.mxu0
        %v730 = vsel %vm456, %v497, 0
        %v733 = vsel %vm456, %v498, 0
        %v736 = vsel %vm456, %v499, 0
        %v739 = vsel %vm456, %v500, 0
        %v742 = vsel %vm456, %v501, 0
        %v745 = vsel %vm456, %v502, 0
        %v748 = vsel %vm456, %v503, 0
        %v751 = vsel %vm456, %v504, 0
        %v754 = vsel %vm456, %v505, 0
        %v757 = vsel %vm456, %v506, 0
        %v760 = vsel %vm456, %v507, 0
        %v763 = vsel %vm456, %v508, 0
        %v766 = vsel %vm456, %v509, 0
        %v769 = vsel %vm456, %v510, 0
        %v772 = vsel %vm456, %v511, 0
        %v775 = vsel %vm456, %v512, 0
        %v778 = vsel %vm580, %v513, 0
        %780 = vmatprep.subr.mxu0 0.0
        %781 = vmatpush1.msra.mxu0 %v778
        %782 = vmatprep.subr.mxu0 0.0
        %783 = vmatpush1.msra.mxu0 0.0
        %784 = vmatprep.subr.mxu0 0.0
        %785 = vmatpush1.msra.mxu0 0.0
        %786 = vmatprep.subr.mxu0 0.0
        %787 = vmatpush1.msra.mxu0 0.0
        %788 = vmatprep.subr.mxu0 0.0
        %789 = vmatpush1.msra.mxu0 0.0
        %790 = vmatprep.subr.mxu0 0.0
        %791 = vmatpush1.msra.mxu0 0.0
        %792 = vmatprep.subr.mxu0 0.0
        %793 = vmatpush1.msra.mxu0 0.0
        %794 = vmatprep.subr.mxu0 0.0
        %795 = vmatpush1.msra.mxu0 0.0
        %796 = vmatprep.subr.mxu0 0.0
        %797 = vmatpush1.msra.mxu0 0.0
        %798 = vmatprep.subr.mxu0 0.0
        %799 = vmatpush1.msra.mxu0 0.0
        %800 = vmatprep.subr.mxu0 0.0
        %801 = vmatpush1.msra.mxu0 0.0
        %802 = vmatprep.subr.mxu0 0.0
        %803 = vmatpush1.msra.mxu0 0.0
        %804 = vmatprep.subr.mxu0 0.0
        %805 = vmatpush1.msra.mxu0 0.0
        %806 = vmatprep.subr.mxu0 0.0
        %807 = vmatpush1.msra.mxu0 0.0
        %808 = vmatprep.subr.mxu0 0.0
        %809 = vmatpush1.msra.mxu0 0.0
        %810 = vmatprep.subr.mxu0 0.0
        %811 = vmatpush1.msra.mxu0 0.0
        %812 = vmatprep.subr.mxu0 0.0
        %813 = vmatpush1.msra.mxu0 0.0
        %814 = vmatprep.subr.mxu0 0.0
        %815 = vmatpush1.msra.mxu0 0.0
        %816 = vmatprep.subr.mxu0 0.0
        %817 = vmatpush1.msra.mxu0 0.0
        %818 = vmatprep.subr.mxu0 0.0
        %819 = vmatpush1.msra.mxu0 0.0
        %820 = vmatprep.subr.mxu0 0.0
        %821 = vmatpush1.msra.mxu0 0.0
        %822 = vmatprep.subr.mxu0 0.0
        %823 = vmatpush1.msra.mxu0 0.0
        %824 = vmatprep.subr.mxu0 0.0
        %825 = vmatpush1.msra.mxu0 0.0
        %826 = vmatprep.subr.mxu0 0.0
        %827 = vmatpush1.msra.mxu0 0.0
        %828 = vmatprep.subr.mxu0 0.0
        %829 = vmatpush1.msra.mxu0 0.0
        %830 = vmatprep.subr.mxu0 0.0
        %831 = vmatpush1.msra.mxu0 0.0
        %832 = vmatprep.subr.mxu0 0.0
        %833 = vmatpush1.msra.mxu0 0.0
        %834 = vmatprep.subr.mxu0 0.0
        %835 = vmatpush1.msra.mxu0 0.0
        %836 = vmatprep.subr.mxu0 0.0
        %837 = vmatpush1.msra.mxu0 0.0
        %838 = vmatprep.subr.mxu0 0.0
        %839 = vmatpush1.msra.mxu0 0.0
        %840 = vmatprep.subr.mxu0 0.0
        %841 = vmatpush1.msra.mxu0 0.0
        %842 = vmatprep.subr.mxu0 0.0
        %843 = vmatpush1.msra.mxu0 0.0
        %844 = vmatprep.mubr.f32.mxu0 0.0
        %845 = vmatmul.mubr.f32.gmra.mrb[0].mxu0 %v730
        %v846 = vpop.f32.mrb[0].mxu0
        %v847 = vadd.f32 %v651, %v846
        %v848 = vpop.f32.mrb[0].mxu0
        %849 = vmatprep.mubr.f32.mxu0 0.0
        %850 = vmatmul.mubr.f32.gmra.mrb[0].mxu0 %v733
        %v851 = vpop.f32.mrb[0].mxu0
        %v852 = vadd.f32 %v656, %v851
        %v853 = vpop.f32.mrb[0].mxu0
        %854 = vmatprep.mubr.f32.mxu0 0.0
        %855 = vmatmul.mubr.f32.gmra.mrb[0].mxu0 %v736
        %v856 = vpop.f32.mrb[0].mxu0
        %v857 = vadd.f32 %v661, %v856
        %v858 = vpop.f32.mrb[0].mxu0
        %859 = vmatprep.mubr.f32.mxu0 0.0
        %860 = vmatmul.mubr.f32.gmra.mrb[0].mxu0 %v739
        %v861 = vpop.f32.mrb[0].mxu0
        %v862 = vadd.f32 %v666, %v861
        %v863 = vpop.f32.mrb[0].mxu0
        %864 = vmatprep.mubr.f32.mxu0 0.0
        %865 = vmatmul.mubr.f32.gmra.mrb[0].mxu0 %v742
        %v866 = vpop.f32.mrb[0].mxu0
        %v867 = vadd.f32 %v671, %v866
        %v868 = vpop.f32.mrb[0].mxu0
        %869 = vmatprep.mubr.f32.mxu0 0.0
        %870 = vmatmul.mubr.f32.gmra.mrb[0].mxu0 %v745
        %v871 = vpop.f32.mrb[0].mxu0
        %v872 = vadd.f32 %v676, %v871
        %v873 = vpop.f32.mrb[0].mxu0
        %874 = vmatprep.mubr.f32.mxu0 0.0
        %875 = vmatmul.mubr.f32.gmra.mrb[0].mxu0 %v748
        %v876 = vpop.f32.mrb[0].mxu0
        %v877 = vadd.f32 %v681, %v876
        %v878 = vpop.f32.mrb[0].mxu0
        %879 = vmatprep.mubr.f32.mxu0 0.0
        %880 = vmatmul.mubr.f32.gmra.mrb[0].mxu0 %v751
        %v881 = vpop.f32.mrb[0].mxu0
        %v882 = vadd.f32 %v686, %v881
        %v883 = vpop.f32.mrb[0].mxu0
        %884 = vmatprep.mubr.f32.mxu0 0.0
        %885 = vmatmul.mubr.f32.gmra.mrb[0].mxu0 %v754
        %v886 = vpop.f32.mrb[0].mxu0
        %v887 = vadd.f32 %v691, %v886
        %v888 = vpop.f32.mrb[0].mxu0
        %889 = vmatprep.mubr.f32.mxu0 0.0
        %890 = vmatmul.mubr.f32.gmra.mrb[0].mxu0 %v757
        %v891 = vpop.f32.mrb[0].mxu0
        %v892 = vadd.f32 %v696, %v891
        %v893 = vpop.f32.mrb[0].mxu0
        %894 = vmatprep.mubr.f32.mxu0 0.0
        %895 = vmatmul.mubr.f32.gmra.mrb[0].mxu0 %v760
        %v896 = vpop.f32.mrb[0].mxu0
        %v897 = vadd.f32 %v701, %v896
        %v898 = vpop.f32.mrb[0].mxu0
        %899 = vmatprep.mubr.f32.mxu0 0.0
        %900 = vmatmul.mubr.f32.gmra.mrb[0].mxu0 %v763
        %v901 = vpop.f32.mrb[0].mxu0
        %v902 = vadd.f32 %v706, %v901
        %v903 = vpop.f32.mrb[0].mxu0
        %904 = vmatprep.mubr.f32.mxu0 0.0
        %905 = vmatmul.mubr.f32.gmra.mrb[0].mxu0 %v766
        %v906 = vpop.f32.mrb[0].mxu0
        %v907 = vadd.f32 %v711, %v906
        %v908 = vpop.f32.mrb[0].mxu0
        %909 = vmatprep.mubr.f32.mxu0 0.0
        %910 = vmatmul.mubr.f32.gmra.mrb[0].mxu0 %v769
        %v911 = vpop.f32.mrb[0].mxu0
        %v912 = vadd.f32 %v716, %v911
        %v913 = vpop.f32.mrb[0].mxu0
        %914 = vmatprep.mubr.f32.mxu0 0.0
        %915 = vmatmul.mubr.f32.gmra.mrb[0].mxu0 %v772
        %v916 = vpop.f32.mrb[0].mxu0
        %v917 = vadd.f32 %v721, %v916
        %v918 = vpop.f32.mrb[0].mxu0
        %919 = vmatprep.mubr.f32.mxu0 0.0
        %920 = vmatmul.mubr.f32.gmra.mrb[0].mxu0 %v775
        %v921 = vpop.f32.mrb[0].mxu0
        %v922 = vadd.f32 %v726, %v921
        %v923 = vpop.f32.mrb[0].mxu0
        %924 = vdwg.mxu0
        %s925 = scalar_lea.vmem [#allocation2], 24
        %v926 = vld [vmem:[%s925] sm:$0xff]
        %v927 = vld [vmem:[%s925 + $0x8] sm:$0xff]
        %v928 = vld [vmem:[%s925 + $0x18] sm:$0xff]
        %v929 = vld [vmem:[%s925 + $0x20] sm:$0xff]
        %v930 = vld [vmem:[%s925 + $0x30] sm:$0xff]
        %v931 = vld [vmem:[%s925 + $0x38] sm:$0xff]
        %v932 = vld [vmem:[%s925 + $0x48] sm:$0xff]
        %v933 = vld [vmem:[%s925 + $0x50] sm:$0xff]
        %v934 = vld [vmem:[%s925 + $0x60] sm:$0xff]
        %v935 = vld [vmem:[%s925 + $0x68] sm:$0xff]
        %v936 = vld [vmem:[%s925 + $0x78] sm:$0xff]
        %v937 = vld [vmem:[%s925 + $0x80] sm:$0xff]
        %v938 = vld [vmem:[%s925 + $0x90] sm:$0xff]
        %v939 = vld [vmem:[%s925 + $0x98] sm:$0xff]
        %v940 = vld [vmem:[%s925 + $0xa8] sm:$0xff]
        %v941 = vld [vmem:[%s925 + $0xb0] sm:$0xff]
        %s942 = scalar_lea.vmem [#allocation9], 8
        %v943 = vld [vmem:[%s942] sm:$0xf]
        %v945 = vsel %vm456, %v926, 0
        %v948 = vsel %vm456, %v927, 0
        %v951 = vsel %vm456, %v928, 0
        %v954 = vsel %vm456, %v929, 0
        %v957 = vsel %vm456, %v930, 0
        %v960 = vsel %vm456, %v931, 0
        %v963 = vsel %vm456, %v932, 0
        %v966 = vsel %vm456, %v933, 0
        %v969 = vsel %vm456, %v934, 0
        %v972 = vsel %vm456, %v935, 0
        %v975 = vsel %vm456, %v936, 0
        %v978 = vsel %vm456, %v937, 0
        %v981 = vsel %vm456, %v938, 0
        %v984 = vsel %vm456, %v939, 0
        %v987 = vsel %vm456, %v940, 0
        %v990 = vsel %vm456, %v941, 0
        %v993 = vsel %vm580, %v943, 0
        %995 = vmatprep.subr.mxu0 0.0
        %996 = vmatpush1.msra.mxu0 %v993
        %997 = vmatprep.subr.mxu0 0.0
        %998 = vmatpush1.msra.mxu0 0.0
        %999 = vmatprep.subr.mxu0 0.0
        %1000 = vmatpush1.msra.mxu0 0.0
        %1001 = vmatprep.subr.mxu0 0.0
        %1002 = vmatpush1.msra.mxu0 0.0
        %1003 = vmatprep.subr.mxu0 0.0
        %1004 = vmatpush1.msra.mxu0 0.0
        %1005 = vmatprep.subr.mxu0 0.0
        %1006 = vmatpush1.msra.mxu0 0.0
        %1007 = vmatprep.subr.mxu0 0.0
        %1008 = vmatpush1.msra.mxu0 0.0
        %1009 = vmatprep.subr.mxu0 0.0
        %1010 = vmatpush1.msra.mxu0 0.0
        %1011 = vmatprep.subr.mxu0 0.0
        %1012 = vmatpush1.msra.mxu0 0.0
        %1013 = vmatprep.subr.mxu0 0.0
        %1014 = vmatpush1.msra.mxu0 0.0
        %1015 = vmatprep.subr.mxu0 0.0
        %1016 = vmatpush1.msra.mxu0 0.0
        %1017 = vmatprep.subr.mxu0 0.0
        %1018 = vmatpush1.msra.mxu0 0.0
        %1019 = vmatprep.subr.mxu0 0.0
        %1020 = vmatpush1.msra.mxu0 0.0
        %1021 = vmatprep.subr.mxu0 0.0
        %1022 = vmatpush1.msra.mxu0 0.0
        %1023 = vmatprep.subr.mxu0 0.0
        %1024 = vmatpush1.msra.mxu0 0.0
        %1025 = vmatprep.subr.mxu0 0.0
        %1026 = vmatpush1.msra.mxu0 0.0
        %1027 = vmatprep.subr.mxu0 0.0
        %1028 = vmatpush1.msra.mxu0 0.0
        %1029 = vmatprep.subr.mxu0 0.0
        %1030 = vmatpush1.msra.mxu0 0.0
        %1031 = vmatprep.subr.mxu0 0.0
        %1032 = vmatpush1.msra.mxu0 0.0
        %1033 = vmatprep.subr.mxu0 0.0
        %1034 = vmatpush1.msra.mxu0 0.0
        %1035 = vmatprep.subr.mxu0 0.0
        %1036 = vmatpush1.msra.mxu0 0.0
        %1037 = vmatprep.subr.mxu0 0.0
        %1038 = vmatpush1.msra.mxu0 0.0
        %1039 = vmatprep.subr.mxu0 0.0
        %1040 = vmatpush1.msra.mxu0 0.0
        %1041 = vmatprep.subr.mxu0 0.0
        %1042 = vmatpush1.msra.mxu0 0.0
        %1043 = vmatprep.subr.mxu0 0.0
        %1044 = vmatpush1.msra.mxu0 0.0
        %1045 = vmatprep.subr.mxu0 0.0
        %1046 = vmatpush1.msra.mxu0 0.0
        %1047 = vmatprep.subr.mxu0 0.0
        %1048 = vmatpush1.msra.mxu0 0.0
        %1049 = vmatprep.subr.mxu0 0.0
        %1050 = vmatpush1.msra.mxu0 0.0
        %1051 = vmatprep.subr.mxu0 0.0
        %1052 = vmatpush1.msra.mxu0 0.0
        %1053 = vmatprep.subr.mxu0 0.0
        %1054 = vmatpush1.msra.mxu0 0.0
        %1055 = vmatprep.subr.mxu0 0.0
        %1056 = vmatpush1.msra.mxu0 0.0
        %1057 = vmatprep.subr.mxu0 0.0
        %1058 = vmatpush1.msra.mxu0 0.0
        %1059 = vmatprep.mubr.f32.mxu0 0.0
        %1060 = vmatmul.mubr.f32.gmra.mrb[0].mxu0 %v945
        %v1061 = vpop.f32.mrb[0].mxu0
        %v1062 = vadd.f32 0.0, %v1061
        %v1063 = vpop.f32.mrb[0].mxu0
        %1064 = vmatprep.mubr.f32.mxu0 0.0
        %1065 = vmatmul.mubr.f32.gmra.mrb[0].mxu0 %v948
        %v1066 = vpop.f32.mrb[0].mxu0
        %v1067 = vadd.f32 0.0, %v1066
        %v1068 = vpop.f32.mrb[0].mxu0
        %1069 = vmatprep.mubr.f32.mxu0 0.0
        %1070 = vmatmul.mubr.f32.gmra.mrb[0].mxu0 %v951
        %v1071 = vpop.f32.mrb[0].mxu0
        %v1072 = vadd.f32 0.0, %v1071
        %v1073 = vpop.f32.mrb[0].mxu0
        %1074 = vmatprep.mubr.f32.mxu0 0.0
        %1075 = vmatmul.mubr.f32.gmra.mrb[0].mxu0 %v954
        %v1076 = vpop.f32.mrb[0].mxu0
        %v1077 = vadd.f32 0.0, %v1076
        %v1078 = vpop.f32.mrb[0].mxu0
        %1079 = vmatprep.mubr.f32.mxu0 0.0
        %1080 = vmatmul.mubr.f32.gmra.mrb[0].mxu0 %v957
        %v1081 = vpop.f32.mrb[0].mxu0
        %v1082 = vadd.f32 0.0, %v1081
        %v1083 = vpop.f32.mrb[0].mxu0
        %1084 = vmatprep.mubr.f32.mxu0 0.0
        %1085 = vmatmul.mubr.f32.gmra.mrb[0].mxu0 %v960
        %v1086 = vpop.f32.mrb[0].mxu0
        %v1087 = vadd.f32 0.0, %v1086
        %v1088 = vpop.f32.mrb[0].mxu0
        %1089 = vmatprep.mubr.f32.mxu0 0.0
        %1090 = vmatmul.mubr.f32.gmra.mrb[0].mxu0 %v963
        %v1091 = vpop.f32.mrb[0].mxu0
        %v1092 = vadd.f32 0.0, %v1091
        %v1093 = vpop.f32.mrb[0].mxu0
        %1094 = vmatprep.mubr.f32.mxu0 0.0
        %1095 = vmatmul.mubr.f32.gmra.mrb[0].mxu0 %v966
        %v1096 = vpop.f32.mrb[0].mxu0
        %v1097 = vadd.f32 0.0, %v1096
        %v1098 = vpop.f32.mrb[0].mxu0
        %1099 = vmatprep.mubr.f32.mxu0 0.0
        %1100 = vmatmul.mubr.f32.gmra.mrb[0].mxu0 %v969
        %v1101 = vpop.f32.mrb[0].mxu0
        %v1102 = vadd.f32 0.0, %v1101
        %v1103 = vpop.f32.mrb[0].mxu0
        %1104 = vmatprep.mubr.f32.mxu0 0.0
        %1105 = vmatmul.mubr.f32.gmra.mrb[0].mxu0 %v972
        %v1106 = vpop.f32.mrb[0].mxu0
        %v1107 = vadd.f32 0.0, %v1106
        %v1108 = vpop.f32.mrb[0].mxu0
        %1109 = vmatprep.mubr.f32.mxu0 0.0
        %1110 = vmatmul.mubr.f32.gmra.mrb[0].mxu0 %v975
        %v1111 = vpop.f32.mrb[0].mxu0
        %v1112 = vadd.f32 0.0, %v1111
        %v1113 = vpop.f32.mrb[0].mxu0
        %1114 = vmatprep.mubr.f32.mxu0 0.0
        %1115 = vmatmul.mubr.f32.gmra.mrb[0].mxu0 %v978
        %v1116 = vpop.f32.mrb[0].mxu0
        %v1117 = vadd.f32 0.0, %v1116
        %v1118 = vpop.f32.mrb[0].mxu0
        %1119 = vmatprep.mubr.f32.mxu0 0.0
        %1120 = vmatmul.mubr.f32.gmra.mrb[0].mxu0 %v981
        %v1121 = vpop.f32.mrb[0].mxu0
        %v1122 = vadd.f32 0.0, %v1121
        %v1123 = vpop.f32.mrb[0].mxu0
        %1124 = vmatprep.mubr.f32.mxu0 0.0
        %1125 = vmatmul.mubr.f32.gmra.mrb[0].mxu0 %v984
        %v1126 = vpop.f32.mrb[0].mxu0
        %v1127 = vadd.f32 0.0, %v1126
        %v1128 = vpop.f32.mrb[0].mxu0
        %1129 = vmatprep.mubr.f32.mxu0 0.0
        %1130 = vmatmul.mubr.f32.gmra.mrb[0].mxu0 %v987
        %v1131 = vpop.f32.mrb[0].mxu0
        %v1132 = vadd.f32 0.0, %v1131
        %v1133 = vpop.f32.mrb[0].mxu0
        %1134 = vmatprep.mubr.f32.mxu0 0.0
        %1135 = vmatmul.mubr.f32.gmra.mrb[0].mxu0 %v990
        %v1136 = vpop.f32.mrb[0].mxu0
        %v1137 = vadd.f32 0.0, %v1136
        %v1138 = vpop.f32.mrb[0].mxu0
        %1139 = vdwg.mxu0
        %v1140 = vadd.f32 %v847, %v1062
        %v1141 = vadd.f32 %v852, %v1067
        %v1142 = vadd.f32 %v857, %v1072
        %v1143 = vadd.f32 %v862, %v1077
        %v1144 = vadd.f32 %v867, %v1082
        %v1145 = vadd.f32 %v872, %v1087
        %v1146 = vadd.f32 %v877, %v1092
        %v1147 = vadd.f32 %v882, %v1097
        %v1148 = vadd.f32 %v887, %v1102
        %v1149 = vadd.f32 %v892, %v1107
        %v1150 = vadd.f32 %v897, %v1112
        %v1151 = vadd.f32 %v902, %v1117
        %v1152 = vadd.f32 %v907, %v1122
        %v1153 = vadd.f32 %v912, %v1127
        %v1154 = vadd.f32 %v917, %v1132
        %v1155 = vadd.f32 %v922, %v1137
        %v1156 = vld [vmem:[%s925 + $0x1] sm:$0xff]
        %v1157 = vld [vmem:[%s925 + $0x9] sm:$0xff]
        %v1158 = vld [vmem:[%s925 + $0x19] sm:$0xff]
        %v1159 = vld [vmem:[%s925 + $0x21] sm:$0xff]
        %v1160 = vld [vmem:[%s925 + $0x31] sm:$0xff]
        %v1161 = vld [vmem:[%s925 + $0x39] sm:$0xff]
        %v1162 = vld [vmem:[%s925 + $0x49] sm:$0xff]
        %v1163 = vld [vmem:[%s925 + $0x51] sm:$0xff]
        %v1164 = vld [vmem:[%s925 + $0x61] sm:$0xff]
        %v1165 = vld [vmem:[%s925 + $0x69] sm:$0xff]
        %v1166 = vld [vmem:[%s925 + $0x79] sm:$0xff]
        %v1167 = vld [vmem:[%s925 + $0x81] sm:$0xff]
        %v1168 = vld [vmem:[%s925 + $0x91] sm:$0xff]
        %v1169 = vld [vmem:[%s925 + $0x99] sm:$0xff]
        %v1170 = vld [vmem:[%s925 + $0xa9] sm:$0xff]
        %v1171 = vld [vmem:[%s925 + $0xb1] sm:$0xff]
        %s1172 = scalar_lea.vmem [#allocation9], 12
        %v1173 = vld [vmem:[%s1172] sm:$0xf]
        %v1175 = vsel %vm456, %v1156, 0
        %v1178 = vsel %vm456, %v1157, 0
        %v1181 = vsel %vm456, %v1158, 0
        %v1184 = vsel %vm456, %v1159, 0
        %v1187 = vsel %vm456, %v1160, 0
        %v1190 = vsel %vm456, %v1161, 0
        %v1193 = vsel %vm456, %v1162, 0
        %v1196 = vsel %vm456, %v1163, 0
        %v1199 = vsel %vm456, %v1164, 0
        %v1202 = vsel %vm456, %v1165, 0
        %v1205 = vsel %vm456, %v1166, 0
        %v1208 = vsel %vm456, %v1167, 0
        %v1211 = vsel %vm456, %v1168, 0
        %v1214 = vsel %vm456, %v1169, 0
        %v1217 = vsel %vm456, %v1170, 0
        %v1220 = vsel %vm456, %v1171, 0
        %v1223 = vsel %vm580, %v1173, 0
        %1225 = vmatprep.subr.mxu0 0.0
        %1226 = vmatpush1.msra.mxu0 %v1223
        %1227 = vmatprep.subr.mxu0 0.0
        %1228 = vmatpush1.msra.mxu0 0.0
        %1229 = vmatprep.subr.mxu0 0.0
        %1230 = vmatpush1.msra.mxu0 0.0
        %1231 = vmatprep.subr.mxu0 0.0
        %1232 = vmatpush1.msra.mxu0 0.0
        %1233 = vmatprep.subr.mxu0 0.0
        %1234 = vmatpush1.msra.mxu0 0.0
        %1235 = vmatprep.subr.mxu0 0.0
        %1236 = vmatpush1.msra.mxu0 0.0
        %1237 = vmatprep.subr.mxu0 0.0
        %1238 = vmatpush1.msra.mxu0 0.0
        %1239 = vmatprep.subr.mxu0 0.0
        %1240 = vmatpush1.msra.mxu0 0.0
        %1241 = vmatprep.subr.mxu0 0.0
        %1242 = vmatpush1.msra.mxu0 0.0
        %1243 = vmatprep.subr.mxu0 0.0
        %1244 = vmatpush1.msra.mxu0 0.0
        %1245 = vmatprep.subr.mxu0 0.0
        %1246 = vmatpush1.msra.mxu0 0.0
        %1247 = vmatprep.subr.mxu0 0.0
        %1248 = vmatpush1.msra.mxu0 0.0
        %1249 = vmatprep.subr.mxu0 0.0
        %1250 = vmatpush1.msra.mxu0 0.0
        %1251 = vmatprep.subr.mxu0 0.0
        %1252 = vmatpush1.msra.mxu0 0.0
        %1253 = vmatprep.subr.mxu0 0.0
        %1254 = vmatpush1.msra.mxu0 0.0
        %1255 = vmatprep.subr.mxu0 0.0
        %1256 = vmatpush1.msra.mxu0 0.0
        %1257 = vmatprep.subr.mxu0 0.0
        %1258 = vmatpush1.msra.mxu0 0.0
        %1259 = vmatprep.subr.mxu0 0.0
        %1260 = vmatpush1.msra.mxu0 0.0
        %1261 = vmatprep.subr.mxu0 0.0
        %1262 = vmatpush1.msra.mxu0 0.0
        %1263 = vmatprep.subr.mxu0 0.0
        %1264 = vmatpush1.msra.mxu0 0.0
        %1265 = vmatprep.subr.mxu0 0.0
        %1266 = vmatpush1.msra.mxu0 0.0
        %1267 = vmatprep.subr.mxu0 0.0
        %1268 = vmatpush1.msra.mxu0 0.0
        %1269 = vmatprep.subr.mxu0 0.0
        %1270 = vmatpush1.msra.mxu0 0.0
        %1271 = vmatprep.subr.mxu0 0.0
        %1272 = vmatpush1.msra.mxu0 0.0
        %1273 = vmatprep.subr.mxu0 0.0
        %1274 = vmatpush1.msra.mxu0 0.0
        %1275 = vmatprep.subr.mxu0 0.0
        %1276 = vmatpush1.msra.mxu0 0.0
        %1277 = vmatprep.subr.mxu0 0.0
        %1278 = vmatpush1.msra.mxu0 0.0
        %1279 = vmatprep.subr.mxu0 0.0
        %1280 = vmatpush1.msra.mxu0 0.0
        %1281 = vmatprep.subr.mxu0 0.0
        %1282 = vmatpush1.msra.mxu0 0.0
        %1283 = vmatprep.subr.mxu0 0.0
        %1284 = vmatpush1.msra.mxu0 0.0
        %1285 = vmatprep.subr.mxu0 0.0
        %1286 = vmatpush1.msra.mxu0 0.0
        %1287 = vmatprep.subr.mxu0 0.0
        %1288 = vmatpush1.msra.mxu0 0.0
        %1289 = vmatprep.mubr.f32.mxu0 0.0
        %1290 = vmatmul.mubr.f32.gmra.mrb[0].mxu0 %v1175
        %v1291 = vpop.f32.mrb[0].mxu0
        %v1292 = vadd.f32 0.0, %v1291
        %v1293 = vpop.f32.mrb[0].mxu0
        %1294 = vmatprep.mubr.f32.mxu0 0.0
        %1295 = vmatmul.mubr.f32.gmra.mrb[0].mxu0 %v1178
        %v1296 = vpop.f32.mrb[0].mxu0
        %v1297 = vadd.f32 0.0, %v1296
        %v1298 = vpop.f32.mrb[0].mxu0
        %1299 = vmatprep.mubr.f32.mxu0 0.0
        %1300 = vmatmul.mubr.f32.gmra.mrb[0].mxu0 %v1181
        %v1301 = vpop.f32.mrb[0].mxu0
        %v1302 = vadd.f32 0.0, %v1301
        %v1303 = vpop.f32.mrb[0].mxu0
        %1304 = vmatprep.mubr.f32.mxu0 0.0
        %1305 = vmatmul.mubr.f32.gmra.mrb[0].mxu0 %v1184
        %v1306 = vpop.f32.mrb[0].mxu0
        %v1307 = vadd.f32 0.0, %v1306
        %v1308 = vpop.f32.mrb[0].mxu0
        %1309 = vmatprep.mubr.f32.mxu0 0.0
        %1310 = vmatmul.mubr.f32.gmra.mrb[0].mxu0 %v1187
        %v1311 = vpop.f32.mrb[0].mxu0
        %v1312 = vadd.f32 0.0, %v1311
        %v1313 = vpop.f32.mrb[0].mxu0
        %1314 = vmatprep.mubr.f32.mxu0 0.0
        %1315 = vmatmul.mubr.f32.gmra.mrb[0].mxu0 %v1190
        %v1316 = vpop.f32.mrb[0].mxu0
        %v1317 = vadd.f32 0.0, %v1316
        %v1318 = vpop.f32.mrb[0].mxu0
        %1319 = vmatprep.mubr.f32.mxu0 0.0
        %1320 = vmatmul.mubr.f32.gmra.mrb[0].mxu0 %v1193
        %v1321 = vpop.f32.mrb[0].mxu0
        %v1322 = vadd.f32 0.0, %v1321
        %v1323 = vpop.f32.mrb[0].mxu0
        %1324 = vmatprep.mubr.f32.mxu0 0.0
        %1325 = vmatmul.mubr.f32.gmra.mrb[0].mxu0 %v1196
        %v1326 = vpop.f32.mrb[0].mxu0
        %v1327 = vadd.f32 0.0, %v1326
        %v1328 = vpop.f32.mrb[0].mxu0
        %1329 = vmatprep.mubr.f32.mxu0 0.0
        %1330 = vmatmul.mubr.f32.gmra.mrb[0].mxu0 %v1199
        %v1331 = vpop.f32.mrb[0].mxu0
        %v1332 = vadd.f32 0.0, %v1331
        %v1333 = vpop.f32.mrb[0].mxu0
        %1334 = vmatprep.mubr.f32.mxu0 0.0
        %1335 = vmatmul.mubr.f32.gmra.mrb[0].mxu0 %v1202
        %v1336 = vpop.f32.mrb[0].mxu0
        %v1337 = vadd.f32 0.0, %v1336
        %v1338 = vpop.f32.mrb[0].mxu0
        %1339 = vmatprep.mubr.f32.mxu0 0.0
        %1340 = vmatmul.mubr.f32.gmra.mrb[0].mxu0 %v1205
        %v1341 = vpop.f32.mrb[0].mxu0
        %v1342 = vadd.f32 0.0, %v1341
        %v1343 = vpop.f32.mrb[0].mxu0
        %1344 = vmatprep.mubr.f32.mxu0 0.0
        %1345 = vmatmul.mubr.f32.gmra.mrb[0].mxu0 %v1208
        %v1346 = vpop.f32.mrb[0].mxu0
        %v1347 = vadd.f32 0.0, %v1346
        %v1348 = vpop.f32.mrb[0].mxu0
        %1349 = vmatprep.mubr.f32.mxu0 0.0
        %1350 = vmatmul.mubr.f32.gmra.mrb[0].mxu0 %v1211
        %v1351 = vpop.f32.mrb[0].mxu0
        %v1352 = vadd.f32 0.0, %v1351
        %v1353 = vpop.f32.mrb[0].mxu0
        %1354 = vmatprep.mubr.f32.mxu0 0.0
        %1355 = vmatmul.mubr.f32.gmra.mrb[0].mxu0 %v1214
        %v1356 = vpop.f32.mrb[0].mxu0
        %v1357 = vadd.f32 0.0, %v1356
        %v1358 = vpop.f32.mrb[0].mxu0
        %1359 = vmatprep.mubr.f32.mxu0 0.0
        %1360 = vmatmul.mubr.f32.gmra.mrb[0].mxu0 %v1217
        %v1361 = vpop.f32.mrb[0].mxu0
        %v1362 = vadd.f32 0.0, %v1361
        %v1363 = vpop.f32.mrb[0].mxu0
        %1364 = vmatprep.mubr.f32.mxu0 0.0
        %1365 = vmatmul.mubr.f32.gmra.mrb[0].mxu0 %v1220
        %v1366 = vpop.f32.mrb[0].mxu0
        %v1367 = vadd.f32 0.0, %v1366
        %v1368 = vpop.f32.mrb[0].mxu0
        %1369 = vdwg.mxu0
        %v1370 = vadd.f32 %v1140, %v1292
        %v1371 = vadd.f32 %v1141, %v1297
        %v1372 = vadd.f32 %v1142, %v1302
        %v1373 = vadd.f32 %v1143, %v1307
        %v1374 = vadd.f32 %v1144, %v1312
        %v1375 = vadd.f32 %v1145, %v1317
        %v1376 = vadd.f32 %v1146, %v1322
        %v1377 = vadd.f32 %v1147, %v1327
        %v1378 = vadd.f32 %v1148, %v1332
        %v1379 = vadd.f32 %v1149, %v1337
        %v1380 = vadd.f32 %v1150, %v1342
        %v1381 = vadd.f32 %v1151, %v1347
        %v1382 = vadd.f32 %v1152, %v1352
        %v1383 = vadd.f32 %v1153, %v1357
        %v1384 = vadd.f32 %v1154, %v1362
        %v1385 = vadd.f32 %v1155, %v1367
        %v1387 = vlaneseq
        %v1388 = vshrl.u32 %v1387, 7
        %v1389 = vsub.s32 0, %v1388
        %v1390 = vrot.slane %v496, %v1389
        %v1392 = vadd.f32 %v1370, %v1390
        %v1393 = vadd.f32 %v1371, %v1390
        %v1394 = vadd.f32 %v1372, %v1390
        %v1395 = vadd.f32 %v1373, %v1390
        %v1396 = vadd.f32 %v1374, %v1390
        %v1397 = vadd.f32 %v1375, %v1390
        %v1398 = vadd.f32 %v1376, %v1390
        %v1399 = vadd.f32 %v1377, %v1390
        %v1400 = vadd.f32 %v1378, %v1390
        %v1401 = vadd.f32 %v1379, %v1390
        %v1402 = vadd.f32 %v1380, %v1390
        %v1403 = vadd.f32 %v1381, %v1390
        %v1404 = vadd.f32 %v1382, %v1390
        %v1405 = vadd.f32 %v1383, %v1390
        %v1406 = vadd.f32 %v1384, %v1390
        %v1407 = vadd.f32 %v1385, %v1390
        %1408 = vst.msk [vmem:[%s419] sm:$0xff] %vm456, %v1392
        %1409 = vst.msk [vmem:[%s419 + $0x8] sm:$0xff] %vm456, %v1393
        %1410 = vst.msk [vmem:[%s419 + $0x10] sm:$0xff] %vm456, %v1394
        %1411 = vst.msk [vmem:[%s419 + $0x18] sm:$0xff] %vm456, %v1395
        %1412 = vst.msk [vmem:[%s419 + $0x20] sm:$0xff] %vm456, %v1396
        %1413 = vst.msk [vmem:[%s419 + $0x28] sm:$0xff] %vm456, %v1397
        %1414 = vst.msk [vmem:[%s419 + $0x30] sm:$0xff] %vm456, %v1398
        %1415 = vst.msk [vmem:[%s419 + $0x38] sm:$0xff] %vm456, %v1399
        %1416 = vst.msk [vmem:[%s419 + $0x40] sm:$0xff] %vm456, %v1400
        %1417 = vst.msk [vmem:[%s419 + $0x48] sm:$0xff] %vm456, %v1401
        %1418 = vst.msk [vmem:[%s419 + $0x50] sm:$0xff] %vm456, %v1402
        %1419 = vst.msk [vmem:[%s419 + $0x58] sm:$0xff] %vm456, %v1403
        %1420 = vst.msk [vmem:[%s419 + $0x60] sm:$0xff] %vm456, %v1404
        %1421 = vst.msk [vmem:[%s419 + $0x68] sm:$0xff] %vm456, %v1405
        %1422 = vst.msk [vmem:[%s419 + $0x70] sm:$0xff] %vm456, %v1406
        %1423 = vst.msk [vmem:[%s419 + $0x78] sm:$0xff] %vm456, %v1407
        %v1424 = vld [vmem:[#allocation2 + $0x1] sm:$0xff]
        %v1425 = vld [vmem:[#allocation2 + $0x9] sm:$0xff]
        %v1426 = vld [vmem:[#allocation2 + $0x19] sm:$0xff]
        %v1427 = vld [vmem:[#allocation2 + $0x21] sm:$0xff]
        %v1428 = vld [vmem:[#allocation2 + $0x31] sm:$0xff]
        %v1429 = vld [vmem:[#allocation2 + $0x39] sm:$0xff]
        %v1430 = vld [vmem:[#allocation2 + $0x49] sm:$0xff]
        %v1431 = vld [vmem:[#allocation2 + $0x51] sm:$0xff]
        %v1432 = vld [vmem:[#allocation2 + $0x61] sm:$0xff]
        %v1433 = vld [vmem:[#allocation2 + $0x69] sm:$0xff]
        %v1434 = vld [vmem:[#allocation2 + $0x79] sm:$0xff]
        %v1435 = vld [vmem:[#allocation2 + $0x81] sm:$0xff]
        %v1436 = vld [vmem:[#allocation2 + $0x91] sm:$0xff]
        %v1437 = vld [vmem:[#allocation2 + $0x99] sm:$0xff]
        %v1438 = vld [vmem:[#allocation2 + $0xa9] sm:$0xff]
        %v1439 = vld [vmem:[#allocation2 + $0xb1] sm:$0xff]
        %s1440 = scalar_lea.vmem [#allocation9], 16
        %v1441 = vld [vmem:[%s1440] sm:$0xf]
        %v1442 = vld [vmem:[#allocation2 + $0x2] sm:$0xff]
        %v1443 = vld [vmem:[#allocation2 + $0xa] sm:$0xff]
        %v1444 = vld [vmem:[#allocation2 + $0x1a] sm:$0xff]
        %v1445 = vld [vmem:[#allocation2 + $0x22] sm:$0xff]
        %v1446 = vld [vmem:[#allocation2 + $0x32] sm:$0xff]
        %v1447 = vld [vmem:[#allocation2 + $0x3a] sm:$0xff]
        %v1448 = vld [vmem:[#allocation2 + $0x4a] sm:$0xff]
        %v1449 = vld [vmem:[#allocation2 + $0x52] sm:$0xff]
        %v1450 = vld [vmem:[#allocation2 + $0x62] sm:$0xff]
        %v1451 = vld [vmem:[#allocation2 + $0x6a] sm:$0xff]
        %v1452 = vld [vmem:[#allocation2 + $0x7a] sm:$0xff]
        %v1453 = vld [vmem:[#allocation2 + $0x82] sm:$0xff]
        %v1454 = vld [vmem:[#allocation2 + $0x92] sm:$0xff]
        %v1455 = vld [vmem:[#allocation2 + $0x9a] sm:$0xff]
        %v1456 = vld [vmem:[#allocation2 + $0xaa] sm:$0xff]
        %v1457 = vld [vmem:[#allocation2 + $0xb2] sm:$0xff]
        %s1458 = scalar_lea.vmem [#allocation9], 20
        %v1459 = vld [vmem:[%s1458] sm:$0xf]
        %v1461 = vsel %vm456, %v1442, 0
        %v1464 = vsel %vm456, %v1443, 0
        %v1467 = vsel %vm456, %v1444, 0
        %v1470 = vsel %vm456, %v1445, 0
        %v1473 = vsel %vm456, %v1446, 0
        %v1476 = vsel %vm456, %v1447, 0
        %v1479 = vsel %vm456, %v1448, 0
        %v1482 = vsel %vm456, %v1449, 0
        %v1485 = vsel %vm456, %v1450, 0
        %v1488 = vsel %vm456, %v1451, 0
        %v1491 = vsel %vm456, %v1452, 0
        %v1494 = vsel %vm456, %v1453, 0
        %v1497 = vsel %vm456, %v1454, 0
        %v1500 = vsel %vm456, %v1455, 0
        %v1503 = vsel %vm456, %v1456, 0
        %v1506 = vsel %vm456, %v1457, 0
        %v1509 = vsel %vm580, %v1459, 0
        %1511 = vmatprep.subr.mxu0 0.0
        %1512 = vmatpush1.msra.mxu0 %v1509
        %1513 = vmatprep.subr.mxu0 0.0
        %1514 = vmatpush1.msra.mxu0 0.0
        %1515 = vmatprep.subr.mxu0 0.0
        %1516 = vmatpush1.msra.mxu0 0.0
        %1517 = vmatprep.subr.mxu0 0.0
        %1518 = vmatpush1.msra.mxu0 0.0
        %1519 = vmatprep.subr.mxu0 0.0
        %1520 = vmatpush1.msra.mxu0 0.0
        %1521 = vmatprep.subr.mxu0 0.0
        %1522 = vmatpush1.msra.mxu0 0.0
        %1523 = vmatprep.subr.mxu0 0.0
        %1524 = vmatpush1.msra.mxu0 0.0
        %1525 = vmatprep.subr.mxu0 0.0
        %1526 = vmatpush1.msra.mxu0 0.0
        %1527 = vmatprep.subr.mxu0 0.0
        %1528 = vmatpush1.msra.mxu0 0.0
        %1529 = vmatprep.subr.mxu0 0.0
        %1530 = vmatpush1.msra.mxu0 0.0
        %1531 = vmatprep.subr.mxu0 0.0
        %1532 = vmatpush1.msra.mxu0 0.0
        %1533 = vmatprep.subr.mxu0 0.0
        %1534 = vmatpush1.msra.mxu0 0.0
        %1535 = vmatprep.subr.mxu0 0.0
        %1536 = vmatpush1.msra.mxu0 0.0
        %1537 = vmatprep.subr.mxu0 0.0
        %1538 = vmatpush1.msra.mxu0 0.0
        %1539 = vmatprep.subr.mxu0 0.0
        %1540 = vmatpush1.msra.mxu0 0.0
        %1541 = vmatprep.subr.mxu0 0.0
        %1542 = vmatpush1.msra.mxu0 0.0
        %1543 = vmatprep.subr.mxu0 0.0
        %1544 = vmatpush1.msra.mxu0 0.0
        %1545 = vmatprep.subr.mxu0 0.0
        %1546 = vmatpush1.msra.mxu0 0.0
        %1547 = vmatprep.subr.mxu0 0.0
        %1548 = vmatpush1.msra.mxu0 0.0
        %1549 = vmatprep.subr.mxu0 0.0
        %1550 = vmatpush1.msra.mxu0 0.0
        %1551 = vmatprep.subr.mxu0 0.0
        %1552 = vmatpush1.msra.mxu0 0.0
        %1553 = vmatprep.subr.mxu0 0.0
        %1554 = vmatpush1.msra.mxu0 0.0
        %1555 = vmatprep.subr.mxu0 0.0
        %1556 = vmatpush1.msra.mxu0 0.0
        %1557 = vmatprep.subr.mxu0 0.0
        %1558 = vmatpush1.msra.mxu0 0.0
        %1559 = vmatprep.subr.mxu0 0.0
        %1560 = vmatpush1.msra.mxu0 0.0
        %1561 = vmatprep.subr.mxu0 0.0
        %1562 = vmatpush1.msra.mxu0 0.0
        %1563 = vmatprep.subr.mxu0 0.0
        %1564 = vmatpush1.msra.mxu0 0.0
        %1565 = vmatprep.subr.mxu0 0.0
        %1566 = vmatpush1.msra.mxu0 0.0
        %1567 = vmatprep.subr.mxu0 0.0
        %1568 = vmatpush1.msra.mxu0 0.0
        %1569 = vmatprep.subr.mxu0 0.0
        %1570 = vmatpush1.msra.mxu0 0.0
        %1571 = vmatprep.subr.mxu0 0.0
        %1572 = vmatpush1.msra.mxu0 0.0
        %1573 = vmatprep.subr.mxu0 0.0
        %1574 = vmatpush1.msra.mxu0 0.0
        %1575 = vmatprep.mubr.f32.mxu0 0.0
        %1576 = vmatmul.mubr.f32.gmra.mrb[0].mxu0 %v1461
        %v1577 = vpop.f32.mrb[0].mxu0
        %v1578 = vadd.f32 0.0, %v1577
        %v1579 = vpop.f32.mrb[0].mxu0
        %1580 = vmatprep.mubr.f32.mxu0 0.0
        %1581 = vmatmul.mubr.f32.gmra.mrb[0].mxu0 %v1464
        %v1582 = vpop.f32.mrb[0].mxu0
        %v1583 = vadd.f32 0.0, %v1582
        %v1584 = vpop.f32.mrb[0].mxu0
        %1585 = vmatprep.mubr.f32.mxu0 0.0
        %1586 = vmatmul.mubr.f32.gmra.mrb[0].mxu0 %v1467
        %v1587 = vpop.f32.mrb[0].mxu0
        %v1588 = vadd.f32 0.0, %v1587
        %v1589 = vpop.f32.mrb[0].mxu0
        %1590 = vmatprep.mubr.f32.mxu0 0.0
        %1591 = vmatmul.mubr.f32.gmra.mrb[0].mxu0 %v1470
        %v1592 = vpop.f32.mrb[0].mxu0
        %v1593 = vadd.f32 0.0, %v1592
        %v1594 = vpop.f32.mrb[0].mxu0
        %1595 = vmatprep.mubr.f32.mxu0 0.0
        %1596 = vmatmul.mubr.f32.gmra.mrb[0].mxu0 %v1473
        %v1597 = vpop.f32.mrb[0].mxu0
        %v1598 = vadd.f32 0.0, %v1597
        %v1599 = vpop.f32.mrb[0].mxu0
        %1600 = vmatprep.mubr.f32.mxu0 0.0
        %1601 = vmatmul.mubr.f32.gmra.mrb[0].mxu0 %v1476
        %v1602 = vpop.f32.mrb[0].mxu0
        %v1603 = vadd.f32 0.0, %v1602
        %v1604 = vpop.f32.mrb[0].mxu0
        %1605 = vmatprep.mubr.f32.mxu0 0.0
        %1606 = vmatmul.mubr.f32.gmra.mrb[0].mxu0 %v1479
        %v1607 = vpop.f32.mrb[0].mxu0
        %v1608 = vadd.f32 0.0, %v1607
        %v1609 = vpop.f32.mrb[0].mxu0
        %1610 = vmatprep.mubr.f32.mxu0 0.0
        %1611 = vmatmul.mubr.f32.gmra.mrb[0].mxu0 %v1482
        %v1612 = vpop.f32.mrb[0].mxu0
        %v1613 = vadd.f32 0.0, %v1612
        %v1614 = vpop.f32.mrb[0].mxu0
        %1615 = vmatprep.mubr.f32.mxu0 0.0
        %1616 = vmatmul.mubr.f32.gmra.mrb[0].mxu0 %v1485
        %v1617 = vpop.f32.mrb[0].mxu0
        %v1618 = vadd.f32 0.0, %v1617
        %v1619 = vpop.f32.mrb[0].mxu0
        %1620 = vmatprep.mubr.f32.mxu0 0.0
        %1621 = vmatmul.mubr.f32.gmra.mrb[0].mxu0 %v1488
        %v1622 = vpop.f32.mrb[0].mxu0
        %v1623 = vadd.f32 0.0, %v1622
        %v1624 = vpop.f32.mrb[0].mxu0
        %1625 = vmatprep.mubr.f32.mxu0 0.0
        %1626 = vmatmul.mubr.f32.gmra.mrb[0].mxu0 %v1491
        %v1627 = vpop.f32.mrb[0].mxu0
        %v1628 = vadd.f32 0.0, %v1627
        %v1629 = vpop.f32.mrb[0].mxu0
        %1630 = vmatprep.mubr.f32.mxu0 0.0
        %1631 = vmatmul.mubr.f32.gmra.mrb[0].mxu0 %v1494
        %v1632 = vpop.f32.mrb[0].mxu0
        %v1633 = vadd.f32 0.0, %v1632
        %v1634 = vpop.f32.mrb[0].mxu0
        %1635 = vmatprep.mubr.f32.mxu0 0.0
        %1636 = vmatmul.mubr.f32.gmra.mrb[0].mxu0 %v1497
        %v1637 = vpop.f32.mrb[0].mxu0
        %v1638 = vadd.f32 0.0, %v1637
        %v1639 = vpop.f32.mrb[0].mxu0
        %1640 = vmatprep.mubr.f32.mxu0 0.0
        %1641 = vmatmul.mubr.f32.gmra.mrb[0].mxu0 %v1500
        %v1642 = vpop.f32.mrb[0].mxu0
        %v1643 = vadd.f32 0.0, %v1642
        %v1644 = vpop.f32.mrb[0].mxu0
        %1645 = vmatprep.mubr.f32.mxu0 0.0
        %1646 = vmatmul.mubr.f32.gmra.mrb[0].mxu0 %v1503
        %v1647 = vpop.f32.mrb[0].mxu0
        %v1648 = vadd.f32 0.0, %v1647
        %v1649 = vpop.f32.mrb[0].mxu0
        %1650 = vmatprep.mubr.f32.mxu0 0.0
        %1651 = vmatmul.mubr.f32.gmra.mrb[0].mxu0 %v1506
        %v1652 = vpop.f32.mrb[0].mxu0
        %v1653 = vadd.f32 0.0, %v1652
        %v1654 = vpop.f32.mrb[0].mxu0
        %1655 = vdwg.mxu0
        %v1657 = vsel %vm456, %v1424, 0
        %v1660 = vsel %vm456, %v1425, 0
        %v1663 = vsel %vm456, %v1426, 0
        %v1666 = vsel %vm456, %v1427, 0
        %v1669 = vsel %vm456, %v1428, 0
        %v1672 = vsel %vm456, %v1429, 0
        %v1675 = vsel %vm456, %v1430, 0
        %v1678 = vsel %vm456, %v1431, 0
        %v1681 = vsel %vm456, %v1432, 0
        %v1684 = vsel %vm456, %v1433, 0
        %v1687 = vsel %vm456, %v1434, 0
        %v1690 = vsel %vm456, %v1435, 0
        %v1693 = vsel %vm456, %v1436, 0
        %v1696 = vsel %vm456, %v1437, 0
        %v1699 = vsel %vm456, %v1438, 0
        %v1702 = vsel %vm456, %v1439, 0
        %v1705 = vsel %vm580, %v1441, 0
        %1707 = vmatprep.subr.mxu0 0.0
        %1708 = vmatpush1.msra.mxu0 %v1705
        %1709 = vmatprep.subr.mxu0 0.0
        %1710 = vmatpush1.msra.mxu0 0.0
        %1711 = vmatprep.subr.mxu0 0.0
        %1712 = vmatpush1.msra.mxu0 0.0
        %1713 = vmatprep.subr.mxu0 0.0
        %1714 = vmatpush1.msra.mxu0 0.0
        %1715 = vmatprep.subr.mxu0 0.0
        %1716 = vmatpush1.msra.mxu0 0.0
        %1717 = vmatprep.subr.mxu0 0.0
        %1718 = vmatpush1.msra.mxu0 0.0
        %1719 = vmatprep.subr.mxu0 0.0
        %1720 = vmatpush1.msra.mxu0 0.0
        %1721 = vmatprep.subr.mxu0 0.0
        %1722 = vmatpush1.msra.mxu0 0.0
        %1723 = vmatprep.subr.mxu0 0.0
        %1724 = vmatpush1.msra.mxu0 0.0
        %1725 = vmatprep.subr.mxu0 0.0
        %1726 = vmatpush1.msra.mxu0 0.0
        %1727 = vmatprep.subr.mxu0 0.0
        %1728 = vmatpush1.msra.mxu0 0.0
        %1729 = vmatprep.subr.mxu0 0.0
        %1730 = vmatpush1.msra.mxu0 0.0
        %1731 = vmatprep.subr.mxu0 0.0
        %1732 = vmatpush1.msra.mxu0 0.0
        %1733 = vmatprep.subr.mxu0 0.0
        %1734 = vmatpush1.msra.mxu0 0.0
        %1735 = vmatprep.subr.mxu0 0.0
        %1736 = vmatpush1.msra.mxu0 0.0
        %1737 = vmatprep.subr.mxu0 0.0
        %1738 = vmatpush1.msra.mxu0 0.0
        %1739 = vmatprep.subr.mxu0 0.0
        %1740 = vmatpush1.msra.mxu0 0.0
        %1741 = vmatprep.subr.mxu0 0.0
        %1742 = vmatpush1.msra.mxu0 0.0
        %1743 = vmatprep.subr.mxu0 0.0
        %1744 = vmatpush1.msra.mxu0 0.0
        %1745 = vmatprep.subr.mxu0 0.0
        %1746 = vmatpush1.msra.mxu0 0.0
        %1747 = vmatprep.subr.mxu0 0.0
        %1748 = vmatpush1.msra.mxu0 0.0
        %1749 = vmatprep.subr.mxu0 0.0
        %1750 = vmatpush1.msra.mxu0 0.0
        %1751 = vmatprep.subr.mxu0 0.0
        %1752 = vmatpush1.msra.mxu0 0.0
        %1753 = vmatprep.subr.mxu0 0.0
        %1754 = vmatpush1.msra.mxu0 0.0
        %1755 = vmatprep.subr.mxu0 0.0
        %1756 = vmatpush1.msra.mxu0 0.0
        %1757 = vmatprep.subr.mxu0 0.0
        %1758 = vmatpush1.msra.mxu0 0.0
        %1759 = vmatprep.subr.mxu0 0.0
        %1760 = vmatpush1.msra.mxu0 0.0
        %1761 = vmatprep.subr.mxu0 0.0
        %1762 = vmatpush1.msra.mxu0 0.0
        %1763 = vmatprep.subr.mxu0 0.0
        %1764 = vmatpush1.msra.mxu0 0.0
        %1765 = vmatprep.subr.mxu0 0.0
        %1766 = vmatpush1.msra.mxu0 0.0
        %1767 = vmatprep.subr.mxu0 0.0
        %1768 = vmatpush1.msra.mxu0 0.0
        %1769 = vmatprep.subr.mxu0 0.0
        %1770 = vmatpush1.msra.mxu0 0.0
        %1771 = vmatprep.mubr.f32.mxu0 0.0
        %1772 = vmatmul.mubr.f32.gmra.mrb[0].mxu0 %v1657
        %v1773 = vpop.f32.mrb[0].mxu0
        %v1774 = vadd.f32 %v1578, %v1773
        %v1775 = vpop.f32.mrb[0].mxu0
        %1776 = vmatprep.mubr.f32.mxu0 0.0
        %1777 = vmatmul.mubr.f32.gmra.mrb[0].mxu0 %v1660
        %v1778 = vpop.f32.mrb[0].mxu0
        %v1779 = vadd.f32 %v1583, %v1778
        %v1780 = vpop.f32.mrb[0].mxu0
        %1781 = vmatprep.mubr.f32.mxu0 0.0
        %1782 = vmatmul.mubr.f32.gmra.mrb[0].mxu0 %v1663
        %v1783 = vpop.f32.mrb[0].mxu0
        %v1784 = vadd.f32 %v1588, %v1783
        %v1785 = vpop.f32.mrb[0].mxu0
        %1786 = vmatprep.mubr.f32.mxu0 0.0
        %1787 = vmatmul.mubr.f32.gmra.mrb[0].mxu0 %v1666
        %v1788 = vpop.f32.mrb[0].mxu0
        %v1789 = vadd.f32 %v1593, %v1788
        %v1790 = vpop.f32.mrb[0].mxu0
        %1791 = vmatprep.mubr.f32.mxu0 0.0
        %1792 = vmatmul.mubr.f32.gmra.mrb[0].mxu0 %v1669
        %v1793 = vpop.f32.mrb[0].mxu0
        %v1794 = vadd.f32 %v1598, %v1793
        %v1795 = vpop.f32.mrb[0].mxu0
        %1796 = vmatprep.mubr.f32.mxu0 0.0
        %1797 = vmatmul.mubr.f32.gmra.mrb[0].mxu0 %v1672
        %v1798 = vpop.f32.mrb[0].mxu0
        %v1799 = vadd.f32 %v1603, %v1798
        %v1800 = vpop.f32.mrb[0].mxu0
        %1801 = vmatprep.mubr.f32.mxu0 0.0
        %1802 = vmatmul.mubr.f32.gmra.mrb[0].mxu0 %v1675
        %v1803 = vpop.f32.mrb[0].mxu0
        %v1804 = vadd.f32 %v1608, %v1803
        %v1805 = vpop.f32.mrb[0].mxu0
        %1806 = vmatprep.mubr.f32.mxu0 0.0
        %1807 = vmatmul.mubr.f32.gmra.mrb[0].mxu0 %v1678
        %v1808 = vpop.f32.mrb[0].mxu0
        %v1809 = vadd.f32 %v1613, %v1808
        %v1810 = vpop.f32.mrb[0].mxu0
        %1811 = vmatprep.mubr.f32.mxu0 0.0
        %1812 = vmatmul.mubr.f32.gmra.mrb[0].mxu0 %v1681
        %v1813 = vpop.f32.mrb[0].mxu0
        %v1814 = vadd.f32 %v1618, %v1813
        %v1815 = vpop.f32.mrb[0].mxu0
        %1816 = vmatprep.mubr.f32.mxu0 0.0
        %1817 = vmatmul.mubr.f32.gmra.mrb[0].mxu0 %v1684
        %v1818 = vpop.f32.mrb[0].mxu0
        %v1819 = vadd.f32 %v1623, %v1818
        %v1820 = vpop.f32.mrb[0].mxu0
        %1821 = vmatprep.mubr.f32.mxu0 0.0
        %1822 = vmatmul.mubr.f32.gmra.mrb[0].mxu0 %v1687
        %v1823 = vpop.f32.mrb[0].mxu0
        %v1824 = vadd.f32 %v1628, %v1823
        %v1825 = vpop.f32.mrb[0].mxu0
        %1826 = vmatprep.mubr.f32.mxu0 0.0
        %1827 = vmatmul.mubr.f32.gmra.mrb[0].mxu0 %v1690
        %v1828 = vpop.f32.mrb[0].mxu0
        %v1829 = vadd.f32 %v1633, %v1828
        %v1830 = vpop.f32.mrb[0].mxu0
        %1831 = vmatprep.mubr.f32.mxu0 0.0
        %1832 = vmatmul.mubr.f32.gmra.mrb[0].mxu0 %v1693
        %v1833 = vpop.f32.mrb[0].mxu0
        %v1834 = vadd.f32 %v1638, %v1833
        %v1835 = vpop.f32.mrb[0].mxu0
        %1836 = vmatprep.mubr.f32.mxu0 0.0
        %1837 = vmatmul.mubr.f32.gmra.mrb[0].mxu0 %v1696
        %v1838 = vpop.f32.mrb[0].mxu0
        %v1839 = vadd.f32 %v1643, %v1838
        %v1840 = vpop.f32.mrb[0].mxu0
        %1841 = vmatprep.mubr.f32.mxu0 0.0
        %1842 = vmatmul.mubr.f32.gmra.mrb[0].mxu0 %v1699
        %v1843 = vpop.f32.mrb[0].mxu0
        %v1844 = vadd.f32 %v1648, %v1843
        %v1845 = vpop.f32.mrb[0].mxu0
        %1846 = vmatprep.mubr.f32.mxu0 0.0
        %1847 = vmatmul.mubr.f32.gmra.mrb[0].mxu0 %v1702
        %v1848 = vpop.f32.mrb[0].mxu0
        %v1849 = vadd.f32 %v1653, %v1848
        %v1850 = vpop.f32.mrb[0].mxu0
        %1851 = vdwg.mxu0
        %v1852 = vld [vmem:[%s925 + $0x1] sm:$0xff]
        %v1853 = vld [vmem:[%s925 + $0x9] sm:$0xff]
        %v1854 = vld [vmem:[%s925 + $0x19] sm:$0xff]
        %v1855 = vld [vmem:[%s925 + $0x21] sm:$0xff]
        %v1856 = vld [vmem:[%s925 + $0x31] sm:$0xff]
        %v1857 = vld [vmem:[%s925 + $0x39] sm:$0xff]
        %v1858 = vld [vmem:[%s925 + $0x49] sm:$0xff]
        %v1859 = vld [vmem:[%s925 + $0x51] sm:$0xff]
        %v1860 = vld [vmem:[%s925 + $0x61] sm:$0xff]
        %v1861 = vld [vmem:[%s925 + $0x69] sm:$0xff]
        %v1862 = vld [vmem:[%s925 + $0x79] sm:$0xff]
        %v1863 = vld [vmem:[%s925 + $0x81] sm:$0xff]
        %v1864 = vld [vmem:[%s925 + $0x91] sm:$0xff]
        %v1865 = vld [vmem:[%s925 + $0x99] sm:$0xff]
        %v1866 = vld [vmem:[%s925 + $0xa9] sm:$0xff]
        %v1867 = vld [vmem:[%s925 + $0xb1] sm:$0xff]
        %s1868 = scalar_lea.vmem [#allocation9], 24
        %v1869 = vld [vmem:[%s1868] sm:$0xf]
        %v1871 = vsel %vm456, %v1852, 0
        %v1874 = vsel %vm456, %v1853, 0
        %v1877 = vsel %vm456, %v1854, 0
        %v1880 = vsel %vm456, %v1855, 0
        %v1883 = vsel %vm456, %v1856, 0
        %v1886 = vsel %vm456, %v1857, 0
        %v1889 = vsel %vm456, %v1858, 0
        %v1892 = vsel %vm456, %v1859, 0
        %v1895 = vsel %vm456, %v1860, 0
        %v1898 = vsel %vm456, %v1861, 0
        %v1901 = vsel %vm456, %v1862, 0
        %v1904 = vsel %vm456, %v1863, 0
        %v1907 = vsel %vm456, %v1864, 0
        %v1910 = vsel %vm456, %v1865, 0
        %v1913 = vsel %vm456, %v1866, 0
        %v1916 = vsel %vm456, %v1867, 0
        %v1919 = vsel %vm580, %v1869, 0
        %1921 = vmatprep.subr.mxu0 0.0
        %1922 = vmatpush1.msra.mxu0 %v1919
        %1923 = vmatprep.subr.mxu0 0.0
        %1924 = vmatpush1.msra.mxu0 0.0
        %1925 = vmatprep.subr.mxu0 0.0
        %1926 = vmatpush1.msra.mxu0 0.0
        %1927 = vmatprep.subr.mxu0 0.0
        %1928 = vmatpush1.msra.mxu0 0.0
        %1929 = vmatprep.subr.mxu0 0.0
        %1930 = vmatpush1.msra.mxu0 0.0
        %1931 = vmatprep.subr.mxu0 0.0
        %1932 = vmatpush1.msra.mxu0 0.0
        %1933 = vmatprep.subr.mxu0 0.0
        %1934 = vmatpush1.msra.mxu0 0.0
        %1935 = vmatprep.subr.mxu0 0.0
        %1936 = vmatpush1.msra.mxu0 0.0
        %1937 = vmatprep.subr.mxu0 0.0
        %1938 = vmatpush1.msra.mxu0 0.0
        %1939 = vmatprep.subr.mxu0 0.0
        %1940 = vmatpush1.msra.mxu0 0.0
        %1941 = vmatprep.subr.mxu0 0.0
        %1942 = vmatpush1.msra.mxu0 0.0
        %1943 = vmatprep.subr.mxu0 0.0
        %1944 = vmatpush1.msra.mxu0 0.0
        %1945 = vmatprep.subr.mxu0 0.0
        %1946 = vmatpush1.msra.mxu0 0.0
        %1947 = vmatprep.subr.mxu0 0.0
        %1948 = vmatpush1.msra.mxu0 0.0
        %1949 = vmatprep.subr.mxu0 0.0
        %1950 = vmatpush1.msra.mxu0 0.0
        %1951 = vmatprep.subr.mxu0 0.0
        %1952 = vmatpush1.msra.mxu0 0.0
        %1953 = vmatprep.subr.mxu0 0.0
        %1954 = vmatpush1.msra.mxu0 0.0
        %1955 = vmatprep.subr.mxu0 0.0
        %1956 = vmatpush1.msra.mxu0 0.0
        %1957 = vmatprep.subr.mxu0 0.0
        %1958 = vmatpush1.msra.mxu0 0.0
        %1959 = vmatprep.subr.mxu0 0.0
        %1960 = vmatpush1.msra.mxu0 0.0
        %1961 = vmatprep.subr.mxu0 0.0
        %1962 = vmatpush1.msra.mxu0 0.0
        %1963 = vmatprep.subr.mxu0 0.0
        %1964 = vmatpush1.msra.mxu0 0.0
        %1965 = vmatprep.subr.mxu0 0.0
        %1966 = vmatpush1.msra.mxu0 0.0
        %1967 = vmatprep.subr.mxu0 0.0
        %1968 = vmatpush1.msra.mxu0 0.0
        %1969 = vmatprep.subr.mxu0 0.0
        %1970 = vmatpush1.msra.mxu0 0.0
        %1971 = vmatprep.subr.mxu0 0.0
        %1972 = vmatpush1.msra.mxu0 0.0
        %1973 = vmatprep.subr.mxu0 0.0
        %1974 = vmatpush1.msra.mxu0 0.0
        %1975 = vmatprep.subr.mxu0 0.0
        %1976 = vmatpush1.msra.mxu0 0.0
        %1977 = vmatprep.subr.mxu0 0.0
        %1978 = vmatpush1.msra.mxu0 0.0
        %1979 = vmatprep.subr.mxu0 0.0
        %1980 = vmatpush1.msra.mxu0 0.0
        %1981 = vmatprep.subr.mxu0 0.0
        %1982 = vmatpush1.msra.mxu0 0.0
        %1983 = vmatprep.subr.mxu0 0.0
        %1984 = vmatpush1.msra.mxu0 0.0
        %1985 = vmatprep.mubr.f32.mxu0 0.0
        %1986 = vmatmul.mubr.f32.gmra.mrb[0].mxu0 %v1871
        %v1987 = vpop.f32.mrb[0].mxu0
        %v1988 = vadd.f32 0.0, %v1987
        %v1989 = vpop.f32.mrb[0].mxu0
        %1990 = vmatprep.mubr.f32.mxu0 0.0
        %1991 = vmatmul.mubr.f32.gmra.mrb[0].mxu0 %v1874
        %v1992 = vpop.f32.mrb[0].mxu0
        %v1993 = vadd.f32 0.0, %v1992
        %v1994 = vpop.f32.mrb[0].mxu0
        %1995 = vmatprep.mubr.f32.mxu0 0.0
        %1996 = vmatmul.mubr.f32.gmra.mrb[0].mxu0 %v1877
        %v1997 = vpop.f32.mrb[0].mxu0
        %v1998 = vadd.f32 0.0, %v1997
        %v1999 = vpop.f32.mrb[0].mxu0
        %2000 = vmatprep.mubr.f32.mxu0 0.0
        %2001 = vmatmul.mubr.f32.gmra.mrb[0].mxu0 %v1880
        %v2002 = vpop.f32.mrb[0].mxu0
        %v2003 = vadd.f32 0.0, %v2002
        %v2004 = vpop.f32.mrb[0].mxu0
        %2005 = vmatprep.mubr.f32.mxu0 0.0
        %2006 = vmatmul.mubr.f32.gmra.mrb[0].mxu0 %v1883
        %v2007 = vpop.f32.mrb[0].mxu0
        %v2008 = vadd.f32 0.0, %v2007
        %v2009 = vpop.f32.mrb[0].mxu0
        %2010 = vmatprep.mubr.f32.mxu0 0.0
        %2011 = vmatmul.mubr.f32.gmra.mrb[0].mxu0 %v1886
        %v2012 = vpop.f32.mrb[0].mxu0
        %v2013 = vadd.f32 0.0, %v2012
        %v2014 = vpop.f32.mrb[0].mxu0
        %2015 = vmatprep.mubr.f32.mxu0 0.0
        %2016 = vmatmul.mubr.f32.gmra.mrb[0].mxu0 %v1889
        %v2017 = vpop.f32.mrb[0].mxu0
        %v2018 = vadd.f32 0.0, %v2017
        %v2019 = vpop.f32.mrb[0].mxu0
        %2020 = vmatprep.mubr.f32.mxu0 0.0
        %2021 = vmatmul.mubr.f32.gmra.mrb[0].mxu0 %v1892
        %v2022 = vpop.f32.mrb[0].mxu0
        %v2023 = vadd.f32 0.0, %v2022
        %v2024 = vpop.f32.mrb[0].mxu0
        %2025 = vmatprep.mubr.f32.mxu0 0.0
        %2026 = vmatmul.mubr.f32.gmra.mrb[0].mxu0 %v1895
        %v2027 = vpop.f32.mrb[0].mxu0
        %v2028 = vadd.f32 0.0, %v2027
        %v2029 = vpop.f32.mrb[0].mxu0
        %2030 = vmatprep.mubr.f32.mxu0 0.0
        %2031 = vmatmul.mubr.f32.gmra.mrb[0].mxu0 %v1898
        %v2032 = vpop.f32.mrb[0].mxu0
        %v2033 = vadd.f32 0.0, %v2032
        %v2034 = vpop.f32.mrb[0].mxu0
        %2035 = vmatprep.mubr.f32.mxu0 0.0
        %2036 = vmatmul.mubr.f32.gmra.mrb[0].mxu0 %v1901
        %v2037 = vpop.f32.mrb[0].mxu0
        %v2038 = vadd.f32 0.0, %v2037
        %v2039 = vpop.f32.mrb[0].mxu0
        %2040 = vmatprep.mubr.f32.mxu0 0.0
        %2041 = vmatmul.mubr.f32.gmra.mrb[0].mxu0 %v1904
        %v2042 = vpop.f32.mrb[0].mxu0
        %v2043 = vadd.f32 0.0, %v2042
        %v2044 = vpop.f32.mrb[0].mxu0
        %2045 = vmatprep.mubr.f32.mxu0 0.0
        %2046 = vmatmul.mubr.f32.gmra.mrb[0].mxu0 %v1907
        %v2047 = vpop.f32.mrb[0].mxu0
        %v2048 = vadd.f32 0.0, %v2047
        %v2049 = vpop.f32.mrb[0].mxu0
        %2050 = vmatprep.mubr.f32.mxu0 0.0
        %2051 = vmatmul.mubr.f32.gmra.mrb[0].mxu0 %v1910
        %v2052 = vpop.f32.mrb[0].mxu0
        %v2053 = vadd.f32 0.0, %v2052
        %v2054 = vpop.f32.mrb[0].mxu0
        %2055 = vmatprep.mubr.f32.mxu0 0.0
        %2056 = vmatmul.mubr.f32.gmra.mrb[0].mxu0 %v1913
        %v2057 = vpop.f32.mrb[0].mxu0
        %v2058 = vadd.f32 0.0, %v2057
        %v2059 = vpop.f32.mrb[0].mxu0
        %2060 = vmatprep.mubr.f32.mxu0 0.0
        %2061 = vmatmul.mubr.f32.gmra.mrb[0].mxu0 %v1916
        %v2062 = vpop.f32.mrb[0].mxu0
        %v2063 = vadd.f32 0.0, %v2062
        %v2064 = vpop.f32.mrb[0].mxu0
        %2065 = vdwg.mxu0
        %v2066 = vadd.f32 %v1774, %v1988
        %v2067 = vadd.f32 %v1779, %v1993
        %v2068 = vadd.f32 %v1784, %v1998
        %v2069 = vadd.f32 %v1789, %v2003
        %v2070 = vadd.f32 %v1794, %v2008
        %v2071 = vadd.f32 %v1799, %v2013
        %v2072 = vadd.f32 %v1804, %v2018
        %v2073 = vadd.f32 %v1809, %v2023
        %v2074 = vadd.f32 %v1814, %v2028
        %v2075 = vadd.f32 %v1819, %v2033
        %v2076 = vadd.f32 %v1824, %v2038
        %v2077 = vadd.f32 %v1829, %v2043
        %v2078 = vadd.f32 %v1834, %v2048
        %v2079 = vadd.f32 %v1839, %v2053
        %v2080 = vadd.f32 %v1844, %v2058
        %v2081 = vadd.f32 %v1849, %v2063
        %v2082 = vld [vmem:[%s925 + $0x2] sm:$0xff]
        %v2083 = vld [vmem:[%s925 + $0xa] sm:$0xff]
        %v2084 = vld [vmem:[%s925 + $0x1a] sm:$0xff]
        %v2085 = vld [vmem:[%s925 + $0x22] sm:$0xff]
        %v2086 = vld [vmem:[%s925 + $0x32] sm:$0xff]
        %v2087 = vld [vmem:[%s925 + $0x3a] sm:$0xff]
        %v2088 = vld [vmem:[%s925 + $0x4a] sm:$0xff]
        %v2089 = vld [vmem:[%s925 + $0x52] sm:$0xff]
        %v2090 = vld [vmem:[%s925 + $0x62] sm:$0xff]
        %v2091 = vld [vmem:[%s925 + $0x6a] sm:$0xff]
        %v2092 = vld [vmem:[%s925 + $0x7a] sm:$0xff]
        %v2093 = vld [vmem:[%s925 + $0x82] sm:$0xff]
        %v2094 = vld [vmem:[%s925 + $0x92] sm:$0xff]
        %v2095 = vld [vmem:[%s925 + $0x9a] sm:$0xff]
        %v2096 = vld [vmem:[%s925 + $0xaa] sm:$0xff]
        %v2097 = vld [vmem:[%s925 + $0xb2] sm:$0xff]
        %s2098 = scalar_lea.vmem [#allocation9], 28
        %v2099 = vld [vmem:[%s2098] sm:$0xf]
        %v2101 = vsel %vm456, %v2082, 0
        %v2104 = vsel %vm456, %v2083, 0
        %v2107 = vsel %vm456, %v2084, 0
        %v2110 = vsel %vm456, %v2085, 0
        %v2113 = vsel %vm456, %v2086, 0
        %v2116 = vsel %vm456, %v2087, 0
        %v2119 = vsel %vm456, %v2088, 0
        %v2122 = vsel %vm456, %v2089, 0
        %v2125 = vsel %vm456, %v2090, 0
        %v2128 = vsel %vm456, %v2091, 0
        %v2131 = vsel %vm456, %v2092, 0
        %v2134 = vsel %vm456, %v2093, 0
        %v2137 = vsel %vm456, %v2094, 0
        %v2140 = vsel %vm456, %v2095, 0
        %v2143 = vsel %vm456, %v2096, 0
        %v2146 = vsel %vm456, %v2097, 0
        %v2149 = vsel %vm580, %v2099, 0
        %2151 = vmatprep.subr.mxu0 0.0
        %2152 = vmatpush1.msra.mxu0 %v2149
        %2153 = vmatprep.subr.mxu0 0.0
        %2154 = vmatpush1.msra.mxu0 0.0
        %2155 = vmatprep.subr.mxu0 0.0
        %2156 = vmatpush1.msra.mxu0 0.0
        %2157 = vmatprep.subr.mxu0 0.0
        %2158 = vmatpush1.msra.mxu0 0.0
        %2159 = vmatprep.subr.mxu0 0.0
        %2160 = vmatpush1.msra.mxu0 0.0
        %2161 = vmatprep.subr.mxu0 0.0
        %2162 = vmatpush1.msra.mxu0 0.0
        %2163 = vmatprep.subr.mxu0 0.0
        %2164 = vmatpush1.msra.mxu0 0.0
        %2165 = vmatprep.subr.mxu0 0.0
        %2166 = vmatpush1.msra.mxu0 0.0
        %2167 = vmatprep.subr.mxu0 0.0
        %2168 = vmatpush1.msra.mxu0 0.0
        %2169 = vmatprep.subr.mxu0 0.0
        %2170 = vmatpush1.msra.mxu0 0.0
        %2171 = vmatprep.subr.mxu0 0.0
        %2172 = vmatpush1.msra.mxu0 0.0
        %2173 = vmatprep.subr.mxu0 0.0
        %2174 = vmatpush1.msra.mxu0 0.0
        %2175 = vmatprep.subr.mxu0 0.0
        %2176 = vmatpush1.msra.mxu0 0.0
        %2177 = vmatprep.subr.mxu0 0.0
        %2178 = vmatpush1.msra.mxu0 0.0
        %2179 = vmatprep.subr.mxu0 0.0
        %2180 = vmatpush1.msra.mxu0 0.0
        %2181 = vmatprep.subr.mxu0 0.0
        %2182 = vmatpush1.msra.mxu0 0.0
        %2183 = vmatprep.subr.mxu0 0.0
        %2184 = vmatpush1.msra.mxu0 0.0
        %2185 = vmatprep.subr.mxu0 0.0
        %2186 = vmatpush1.msra.mxu0 0.0
        %2187 = vmatprep.subr.mxu0 0.0
        %2188 = vmatpush1.msra.mxu0 0.0
        %2189 = vmatprep.subr.mxu0 0.0
        %2190 = vmatpush1.msra.mxu0 0.0
        %2191 = vmatprep.subr.mxu0 0.0
        %2192 = vmatpush1.msra.mxu0 0.0
        %2193 = vmatprep.subr.mxu0 0.0
        %2194 = vmatpush1.msra.mxu0 0.0
        %2195 = vmatprep.subr.mxu0 0.0
        %2196 = vmatpush1.msra.mxu0 0.0
        %2197 = vmatprep.subr.mxu0 0.0
        %2198 = vmatpush1.msra.mxu0 0.0
        %2199 = vmatprep.subr.mxu0 0.0
        %2200 = vmatpush1.msra.mxu0 0.0
        %2201 = vmatprep.subr.mxu0 0.0
        %2202 = vmatpush1.msra.mxu0 0.0
        %2203 = vmatprep.subr.mxu0 0.0
        %2204 = vmatpush1.msra.mxu0 0.0
        %2205 = vmatprep.subr.mxu0 0.0
        %2206 = vmatpush1.msra.mxu0 0.0
        %2207 = vmatprep.subr.mxu0 0.0
        %2208 = vmatpush1.msra.mxu0 0.0
        %2209 = vmatprep.subr.mxu0 0.0
        %2210 = vmatpush1.msra.mxu0 0.0
        %2211 = vmatprep.subr.mxu0 0.0
        %2212 = vmatpush1.msra.mxu0 0.0
        %2213 = vmatprep.subr.mxu0 0.0
        %2214 = vmatpush1.msra.mxu0 0.0
        %2215 = vmatprep.mubr.f32.mxu0 0.0
        %2216 = vmatmul.mubr.f32.gmra.mrb[0].mxu0 %v2101
        %v2217 = vpop.f32.mrb[0].mxu0
        %v2218 = vadd.f32 0.0, %v2217
        %v2219 = vpop.f32.mrb[0].mxu0
        %2220 = vmatprep.mubr.f32.mxu0 0.0
        %2221 = vmatmul.mubr.f32.gmra.mrb[0].mxu0 %v2104
        %v2222 = vpop.f32.mrb[0].mxu0
        %v2223 = vadd.f32 0.0, %v2222
        %v2224 = vpop.f32.mrb[0].mxu0
        %2225 = vmatprep.mubr.f32.mxu0 0.0
        %2226 = vmatmul.mubr.f32.gmra.mrb[0].mxu0 %v2107
        %v2227 = vpop.f32.mrb[0].mxu0
        %v2228 = vadd.f32 0.0, %v2227
        %v2229 = vpop.f32.mrb[0].mxu0
        %2230 = vmatprep.mubr.f32.mxu0 0.0
        %2231 = vmatmul.mubr.f32.gmra.mrb[0].mxu0 %v2110
        %v2232 = vpop.f32.mrb[0].mxu0
        %v2233 = vadd.f32 0.0, %v2232
        %v2234 = vpop.f32.mrb[0].mxu0
        %2235 = vmatprep.mubr.f32.mxu0 0.0
        %2236 = vmatmul.mubr.f32.gmra.mrb[0].mxu0 %v2113
        %v2237 = vpop.f32.mrb[0].mxu0
        %v2238 = vadd.f32 0.0, %v2237
        %v2239 = vpop.f32.mrb[0].mxu0
        %2240 = vmatprep.mubr.f32.mxu0 0.0
        %2241 = vmatmul.mubr.f32.gmra.mrb[0].mxu0 %v2116
        %v2242 = vpop.f32.mrb[0].mxu0
        %v2243 = vadd.f32 0.0, %v2242
        %v2244 = vpop.f32.mrb[0].mxu0
        %2245 = vmatprep.mubr.f32.mxu0 0.0
        %2246 = vmatmul.mubr.f32.gmra.mrb[0].mxu0 %v2119
        %v2247 = vpop.f32.mrb[0].mxu0
        %v2248 = vadd.f32 0.0, %v2247
        %v2249 = vpop.f32.mrb[0].mxu0
        %2250 = vmatprep.mubr.f32.mxu0 0.0
        %2251 = vmatmul.mubr.f32.gmra.mrb[0].mxu0 %v2122
        %v2252 = vpop.f32.mrb[0].mxu0
        %v2253 = vadd.f32 0.0, %v2252
        %v2254 = vpop.f32.mrb[0].mxu0
        %2255 = vmatprep.mubr.f32.mxu0 0.0
        %2256 = vmatmul.mubr.f32.gmra.mrb[0].mxu0 %v2125
        %v2257 = vpop.f32.mrb[0].mxu0
        %v2258 = vadd.f32 0.0, %v2257
        %v2259 = vpop.f32.mrb[0].mxu0
        %2260 = vmatprep.mubr.f32.mxu0 0.0
        %2261 = vmatmul.mubr.f32.gmra.mrb[0].mxu0 %v2128
        %v2262 = vpop.f32.mrb[0].mxu0
        %v2263 = vadd.f32 0.0, %v2262
        %v2264 = vpop.f32.mrb[0].mxu0
        %2265 = vmatprep.mubr.f32.mxu0 0.0
        %2266 = vmatmul.mubr.f32.gmra.mrb[0].mxu0 %v2131
        %v2267 = vpop.f32.mrb[0].mxu0
        %v2268 = vadd.f32 0.0, %v2267
        %v2269 = vpop.f32.mrb[0].mxu0
        %2270 = vmatprep.mubr.f32.mxu0 0.0
        %2271 = vmatmul.mubr.f32.gmra.mrb[0].mxu0 %v2134
        %v2272 = vpop.f32.mrb[0].mxu0
        %v2273 = vadd.f32 0.0, %v2272
        %v2274 = vpop.f32.mrb[0].mxu0
        %2275 = vmatprep.mubr.f32.mxu0 0.0
        %2276 = vmatmul.mubr.f32.gmra.mrb[0].mxu0 %v2137
        %v2277 = vpop.f32.mrb[0].mxu0
        %v2278 = vadd.f32 0.0, %v2277
        %v2279 = vpop.f32.mrb[0].mxu0
        %2280 = vmatprep.mubr.f32.mxu0 0.0
        %2281 = vmatmul.mubr.f32.gmra.mrb[0].mxu0 %v2140
        %v2282 = vpop.f32.mrb[0].mxu0
        %v2283 = vadd.f32 0.0, %v2282
        %v2284 = vpop.f32.mrb[0].mxu0
        %2285 = vmatprep.mubr.f32.mxu0 0.0
        %2286 = vmatmul.mubr.f32.gmra.mrb[0].mxu0 %v2143
        %v2287 = vpop.f32.mrb[0].mxu0
        %v2288 = vadd.f32 0.0, %v2287
        %v2289 = vpop.f32.mrb[0].mxu0
        %2290 = vmatprep.mubr.f32.mxu0 0.0
        %2291 = vmatmul.mubr.f32.gmra.mrb[0].mxu0 %v2146
        %v2292 = vpop.f32.mrb[0].mxu0
        %v2293 = vadd.f32 0.0, %v2292
        %v2294 = vpop.f32.mrb[0].mxu0
        %2295 = vdwg.mxu0
        %v2296 = vadd.f32 %v2066, %v2218
        %v2297 = vadd.f32 %v2067, %v2223
        %v2298 = vadd.f32 %v2068, %v2228
        %v2299 = vadd.f32 %v2069, %v2233
        %v2300 = vadd.f32 %v2070, %v2238
        %v2301 = vadd.f32 %v2071, %v2243
        %v2302 = vadd.f32 %v2072, %v2248
        %v2303 = vadd.f32 %v2073, %v2253
        %v2304 = vadd.f32 %v2074, %v2258
        %v2305 = vadd.f32 %v2075, %v2263
        %v2306 = vadd.f32 %v2076, %v2268
        %v2307 = vadd.f32 %v2077, %v2273
        %v2308 = vadd.f32 %v2078, %v2278
        %v2309 = vadd.f32 %v2079, %v2283
        %v2310 = vadd.f32 %v2080, %v2288
        %v2311 = vadd.f32 %v2081, %v2293
        %v2312 = vadd.f32 %v2296, %v1390
        %v2313 = vadd.f32 %v2297, %v1390
        %v2314 = vadd.f32 %v2298, %v1390
        %v2315 = vadd.f32 %v2299, %v1390
        %v2316 = vadd.f32 %v2300, %v1390
        %v2317 = vadd.f32 %v2301, %v1390
        %v2318 = vadd.f32 %v2302, %v1390
        %v2319 = vadd.f32 %v2303, %v1390
        %v2320 = vadd.f32 %v2304, %v1390
        %v2321 = vadd.f32 %v2305, %v1390
        %v2322 = vadd.f32 %v2306, %v1390
        %v2323 = vadd.f32 %v2307, %v1390
        %v2324 = vadd.f32 %v2308, %v1390
        %v2325 = vadd.f32 %v2309, %v1390
        %v2326 = vadd.f32 %v2310, %v1390
        %v2327 = vadd.f32 %v2311, %v1390
        %s2328 = scalar_lea.vmem %s419, 128 [#allocation12]
        %2329 = vst.msk [vmem:[%s2328] sm:$0xff] %vm456, %v2312
        %2330 = vst.msk [vmem:[%s2328 + $0x8] sm:$0xff] %vm456, %v2313
        %2331 = vst.msk [vmem:[%s2328 + $0x10] sm:$0xff] %vm456, %v2314
        %2332 = vst.msk [vmem:[%s2328 + $0x18] sm:$0xff] %vm456, %v2315
        %2333 = vst.msk [vmem:[%s2328 + $0x20] sm:$0xff] %vm456, %v2316
        %2334 = vst.msk [vmem:[%s2328 + $0x28] sm:$0xff] %vm456, %v2317
        %2335 = vst.msk [vmem:[%s2328 + $0x30] sm:$0xff] %vm456, %v2318
        %2336 = vst.msk [vmem:[%s2328 + $0x38] sm:$0xff] %vm456, %v2319
        %2337 = vst.msk [vmem:[%s2328 + $0x40] sm:$0xff] %vm456, %v2320
        %2338 = vst.msk [vmem:[%s2328 + $0x48] sm:$0xff] %vm456, %v2321
        %2339 = vst.msk [vmem:[%s2328 + $0x50] sm:$0xff] %vm456, %v2322
        %2340 = vst.msk [vmem:[%s2328 + $0x58] sm:$0xff] %vm456, %v2323
        %2341 = vst.msk [vmem:[%s2328 + $0x60] sm:$0xff] %vm456, %v2324
        %2342 = vst.msk [vmem:[%s2328 + $0x68] sm:$0xff] %vm456, %v2325
        %2343 = vst.msk [vmem:[%s2328 + $0x70] sm:$0xff] %vm456, %v2326
        %2344 = vst.msk [vmem:[%s2328 + $0x78] sm:$0xff] %vm456, %v2327
        %v2345 = vld [vmem:[%s925] sm:$0xff]
        %v2346 = vld [vmem:[%s925 + $0x8] sm:$0xff]
        %v2347 = vld [vmem:[%s925 + $0x18] sm:$0xff]
        %v2348 = vld [vmem:[%s925 + $0x20] sm:$0xff]
        %v2349 = vld [vmem:[%s925 + $0x30] sm:$0xff]
        %v2350 = vld [vmem:[%s925 + $0x38] sm:$0xff]
        %v2351 = vld [vmem:[%s925 + $0x48] sm:$0xff]
        %v2352 = vld [vmem:[%s925 + $0x50] sm:$0xff]
        %v2353 = vld [vmem:[%s925 + $0x60] sm:$0xff]
        %v2354 = vld [vmem:[%s925 + $0x68] sm:$0xff]
        %v2355 = vld [vmem:[%s925 + $0x78] sm:$0xff]
        %v2356 = vld [vmem:[%s925 + $0x80] sm:$0xff]
        %v2357 = vld [vmem:[%s925 + $0x90] sm:$0xff]
        %v2358 = vld [vmem:[%s925 + $0x98] sm:$0xff]
        %v2359 = vld [vmem:[%s925 + $0xa8] sm:$0xff]
        %v2360 = vld [vmem:[%s925 + $0xb0] sm:$0xff]
        %s2361 = scalar_lea.vmem [#allocation9], 32
        %v2362 = vld [vmem:[%s2361] sm:$0xf]
        %v2363 = vld [vmem:[%s925 + $0x1] sm:$0xff]
        %v2364 = vld [vmem:[%s925 + $0x9] sm:$0xff]
        %v2365 = vld [vmem:[%s925 + $0x19] sm:$0xff]
        %v2366 = vld [vmem:[%s925 + $0x21] sm:$0xff]
        %v2367 = vld [vmem:[%s925 + $0x31] sm:$0xff]
        %v2368 = vld [vmem:[%s925 + $0x39] sm:$0xff]
        %v2369 = vld [vmem:[%s925 + $0x49] sm:$0xff]
        %v2370 = vld [vmem:[%s925 + $0x51] sm:$0xff]
        %v2371 = vld [vmem:[%s925 + $0x61] sm:$0xff]
        %v2372 = vld [vmem:[%s925 + $0x69] sm:$0xff]
        %v2373 = vld [vmem:[%s925 + $0x79] sm:$0xff]
        %v2374 = vld [vmem:[%s925 + $0x81] sm:$0xff]
        %v2375 = vld [vmem:[%s925 + $0x91] sm:$0xff]
        %v2376 = vld [vmem:[%s925 + $0x99] sm:$0xff]
        %v2377 = vld [vmem:[%s925 + $0xa9] sm:$0xff]
        %v2378 = vld [vmem:[%s925 + $0xb1] sm:$0xff]
        %s2379 = scalar_lea.vmem [#allocation9], 36
        %v2380 = vld [vmem:[%s2379] sm:$0xf]
        %v2382 = vsel %vm456, %v2363, 0
        %v2385 = vsel %vm456, %v2364, 0
        %v2388 = vsel %vm456, %v2365, 0
        %v2391 = vsel %vm456, %v2366, 0
        %v2394 = vsel %vm456, %v2367, 0
        %v2397 = vsel %vm456, %v2368, 0
        %v2400 = vsel %vm456, %v2369, 0
        %v2403 = vsel %vm456, %v2370, 0
        %v2406 = vsel %vm456, %v2371, 0
        %v2409 = vsel %vm456, %v2372, 0
        %v2412 = vsel %vm456, %v2373, 0
        %v2415 = vsel %vm456, %v2374, 0
        %v2418 = vsel %vm456, %v2375, 0
        %v2421 = vsel %vm456, %v2376, 0
        %v2424 = vsel %vm456, %v2377, 0
        %v2427 = vsel %vm456, %v2378, 0
        %v2430 = vsel %vm580, %v2380, 0
        %2432 = vmatprep.subr.mxu0 0.0
        %2433 = vmatpush1.msra.mxu0 %v2430
        %2434 = vmatprep.subr.mxu0 0.0
        %2435 = vmatpush1.msra.mxu0 0.0
        %2436 = vmatprep.subr.mxu0 0.0
        %2437 = vmatpush1.msra.mxu0 0.0
        %2438 = vmatprep.subr.mxu0 0.0
        %2439 = vmatpush1.msra.mxu0 0.0
        %2440 = vmatprep.subr.mxu0 0.0
        %2441 = vmatpush1.msra.mxu0 0.0
        %2442 = vmatprep.subr.mxu0 0.0
        %2443 = vmatpush1.msra.mxu0 0.0
        %2444 = vmatprep.subr.mxu0 0.0
        %2445 = vmatpush1.msra.mxu0 0.0
        %2446 = vmatprep.subr.mxu0 0.0
        %2447 = vmatpush1.msra.mxu0 0.0
        %2448 = vmatprep.subr.mxu0 0.0
        %2449 = vmatpush1.msra.mxu0 0.0
        %2450 = vmatprep.subr.mxu0 0.0
        %2451 = vmatpush1.msra.mxu0 0.0
        %2452 = vmatprep.subr.mxu0 0.0
        %2453 = vmatpush1.msra.mxu0 0.0
        %2454 = vmatprep.subr.mxu0 0.0
        %2455 = vmatpush1.msra.mxu0 0.0
        %2456 = vmatprep.subr.mxu0 0.0
        %2457 = vmatpush1.msra.mxu0 0.0
        %2458 = vmatprep.subr.mxu0 0.0
        %2459 = vmatpush1.msra.mxu0 0.0
        %2460 = vmatprep.subr.mxu0 0.0
        %2461 = vmatpush1.msra.mxu0 0.0
        %2462 = vmatprep.subr.mxu0 0.0
        %2463 = vmatpush1.msra.mxu0 0.0
        %2464 = vmatprep.subr.mxu0 0.0
        %2465 = vmatpush1.msra.mxu0 0.0
        %2466 = vmatprep.subr.mxu0 0.0
        %2467 = vmatpush1.msra.mxu0 0.0
        %2468 = vmatprep.subr.mxu0 0.0
        %2469 = vmatpush1.msra.mxu0 0.0
        %2470 = vmatprep.subr.mxu0 0.0
        %2471 = vmatpush1.msra.mxu0 0.0
        %2472 = vmatprep.subr.mxu0 0.0
        %2473 = vmatpush1.msra.mxu0 0.0
        %2474 = vmatprep.subr.mxu0 0.0
        %2475 = vmatpush1.msra.mxu0 0.0
        %2476 = vmatprep.subr.mxu0 0.0
        %2477 = vmatpush1.msra.mxu0 0.0
        %2478 = vmatprep.subr.mxu0 0.0
        %2479 = vmatpush1.msra.mxu0 0.0
        %2480 = vmatprep.subr.mxu0 0.0
        %2481 = vmatpush1.msra.mxu0 0.0
        %2482 = vmatprep.subr.mxu0 0.0
        %2483 = vmatpush1.msra.mxu0 0.0
        %2484 = vmatprep.subr.mxu0 0.0
        %2485 = vmatpush1.msra.mxu0 0.0
        %2486 = vmatprep.subr.mxu0 0.0
        %2487 = vmatpush1.msra.mxu0 0.0
        %2488 = vmatprep.subr.mxu0 0.0
        %2489 = vmatpush1.msra.mxu0 0.0
        %2490 = vmatprep.subr.mxu0 0.0
        %2491 = vmatpush1.msra.mxu0 0.0
        %2492 = vmatprep.subr.mxu0 0.0
        %2493 = vmatpush1.msra.mxu0 0.0
        %2494 = vmatprep.subr.mxu0 0.0
        %2495 = vmatpush1.msra.mxu0 0.0
        %2496 = vmatprep.mubr.f32.mxu0 0.0
        %2497 = vmatmul.mubr.f32.gmra.mrb[0].mxu0 %v2382
        %v2498 = vpop.f32.mrb[0].mxu0
        %v2499 = vadd.f32 0.0, %v2498
        %v2500 = vpop.f32.mrb[0].mxu0
        %2501 = vmatprep.mubr.f32.mxu0 0.0
        %2502 = vmatmul.mubr.f32.gmra.mrb[0].mxu0 %v2385
        %v2503 = vpop.f32.mrb[0].mxu0
        %v2504 = vadd.f32 0.0, %v2503
        %v2505 = vpop.f32.mrb[0].mxu0
        %2506 = vmatprep.mubr.f32.mxu0 0.0
        %2507 = vmatmul.mubr.f32.gmra.mrb[0].mxu0 %v2388
        %v2508 = vpop.f32.mrb[0].mxu0
        %v2509 = vadd.f32 0.0, %v2508
        %v2510 = vpop.f32.mrb[0].mxu0
        %2511 = vmatprep.mubr.f32.mxu0 0.0
        %2512 = vmatmul.mubr.f32.gmra.mrb[0].mxu0 %v2391
        %v2513 = vpop.f32.mrb[0].mxu0
        %v2514 = vadd.f32 0.0, %v2513
        %v2515 = vpop.f32.mrb[0].mxu0
        %2516 = vmatprep.mubr.f32.mxu0 0.0
        %2517 = vmatmul.mubr.f32.gmra.mrb[0].mxu0 %v2394
        %v2518 = vpop.f32.mrb[0].mxu0
        %v2519 = vadd.f32 0.0, %v2518
        %v2520 = vpop.f32.mrb[0].mxu0
        %2521 = vmatprep.mubr.f32.mxu0 0.0
        %2522 = vmatmul.mubr.f32.gmra.mrb[0].mxu0 %v2397
        %v2523 = vpop.f32.mrb[0].mxu0
        %v2524 = vadd.f32 0.0, %v2523
        %v2525 = vpop.f32.mrb[0].mxu0
        %2526 = vmatprep.mubr.f32.mxu0 0.0
        %2527 = vmatmul.mubr.f32.gmra.mrb[0].mxu0 %v2400
        %v2528 = vpop.f32.mrb[0].mxu0
        %v2529 = vadd.f32 0.0, %v2528
        %v2530 = vpop.f32.mrb[0].mxu0
        %2531 = vmatprep.mubr.f32.mxu0 0.0
        %2532 = vmatmul.mubr.f32.gmra.mrb[0].mxu0 %v2403
        %v2533 = vpop.f32.mrb[0].mxu0
        %v2534 = vadd.f32 0.0, %v2533
        %v2535 = vpop.f32.mrb[0].mxu0
        %2536 = vmatprep.mubr.f32.mxu0 0.0
        %2537 = vmatmul.mubr.f32.gmra.mrb[0].mxu0 %v2406
        %v2538 = vpop.f32.mrb[0].mxu0
        %v2539 = vadd.f32 0.0, %v2538
        %v2540 = vpop.f32.mrb[0].mxu0
        %2541 = vmatprep.mubr.f32.mxu0 0.0
        %2542 = vmatmul.mubr.f32.gmra.mrb[0].mxu0 %v2409
        %v2543 = vpop.f32.mrb[0].mxu0
        %v2544 = vadd.f32 0.0, %v2543
        %v2545 = vpop.f32.mrb[0].mxu0
        %2546 = vmatprep.mubr.f32.mxu0 0.0
        %2547 = vmatmul.mubr.f32.gmra.mrb[0].mxu0 %v2412
        %v2548 = vpop.f32.mrb[0].mxu0
        %v2549 = vadd.f32 0.0, %v2548
        %v2550 = vpop.f32.mrb[0].mxu0
        %2551 = vmatprep.mubr.f32.mxu0 0.0
        %2552 = vmatmul.mubr.f32.gmra.mrb[0].mxu0 %v2415
        %v2553 = vpop.f32.mrb[0].mxu0
        %v2554 = vadd.f32 0.0, %v2553
        %v2555 = vpop.f32.mrb[0].mxu0
        %2556 = vmatprep.mubr.f32.mxu0 0.0
        %2557 = vmatmul.mubr.f32.gmra.mrb[0].mxu0 %v2418
        %v2558 = vpop.f32.mrb[0].mxu0
        %v2559 = vadd.f32 0.0, %v2558
        %v2560 = vpop.f32.mrb[0].mxu0
        %2561 = vmatprep.mubr.f32.mxu0 0.0
        %2562 = vmatmul.mubr.f32.gmra.mrb[0].mxu0 %v2421
        %v2563 = vpop.f32.mrb[0].mxu0
        %v2564 = vadd.f32 0.0, %v2563
        %v2565 = vpop.f32.mrb[0].mxu0
        %2566 = vmatprep.mubr.f32.mxu0 0.0
        %2567 = vmatmul.mubr.f32.gmra.mrb[0].mxu0 %v2424
        %v2568 = vpop.f32.mrb[0].mxu0
        %v2569 = vadd.f32 0.0, %v2568
        %v2570 = vpop.f32.mrb[0].mxu0
        %2571 = vmatprep.mubr.f32.mxu0 0.0
        %2572 = vmatmul.mubr.f32.gmra.mrb[0].mxu0 %v2427
        %v2573 = vpop.f32.mrb[0].mxu0
        %v2574 = vadd.f32 0.0, %v2573
        %v2575 = vpop.f32.mrb[0].mxu0
        %2576 = vdwg.mxu0
        %v2578 = vsel %vm456, %v2345, 0
        %v2581 = vsel %vm456, %v2346, 0
        %v2584 = vsel %vm456, %v2347, 0
        %v2587 = vsel %vm456, %v2348, 0
        %v2590 = vsel %vm456, %v2349, 0
        %v2593 = vsel %vm456, %v2350, 0
        %v2596 = vsel %vm456, %v2351, 0
        %v2599 = vsel %vm456, %v2352, 0
        %v2602 = vsel %vm456, %v2353, 0
        %v2605 = vsel %vm456, %v2354, 0
        %v2608 = vsel %vm456, %v2355, 0
        %v2611 = vsel %vm456, %v2356, 0
        %v2614 = vsel %vm456, %v2357, 0
        %v2617 = vsel %vm456, %v2358, 0
        %v2620 = vsel %vm456, %v2359, 0
        %v2623 = vsel %vm456, %v2360, 0
        %v2626 = vsel %vm580, %v2362, 0
        %2628 = vmatprep.subr.mxu0 0.0
        %2629 = vmatpush1.msra.mxu0 %v2626
        %2630 = vmatprep.subr.mxu0 0.0
        %2631 = vmatpush1.msra.mxu0 0.0
        %2632 = vmatprep.subr.mxu0 0.0
        %2633 = vmatpush1.msra.mxu0 0.0
        %2634 = vmatprep.subr.mxu0 0.0
        %2635 = vmatpush1.msra.mxu0 0.0
        %2636 = vmatprep.subr.mxu0 0.0
        %2637 = vmatpush1.msra.mxu0 0.0
        %2638 = vmatprep.subr.mxu0 0.0
        %2639 = vmatpush1.msra.mxu0 0.0
        %2640 = vmatprep.subr.mxu0 0.0
        %2641 = vmatpush1.msra.mxu0 0.0
        %2642 = vmatprep.subr.mxu0 0.0
        %2643 = vmatpush1.msra.mxu0 0.0
        %2644 = vmatprep.subr.mxu0 0.0
        %2645 = vmatpush1.msra.mxu0 0.0
        %2646 = vmatprep.subr.mxu0 0.0
        %2647 = vmatpush1.msra.mxu0 0.0
        %2648 = vmatprep.subr.mxu0 0.0
        %2649 = vmatpush1.msra.mxu0 0.0
        %2650 = vmatprep.subr.mxu0 0.0
        %2651 = vmatpush1.msra.mxu0 0.0
        %2652 = vmatprep.subr.mxu0 0.0
        %2653 = vmatpush1.msra.mxu0 0.0
        %2654 = vmatprep.subr.mxu0 0.0
        %2655 = vmatpush1.msra.mxu0 0.0
        %2656 = vmatprep.subr.mxu0 0.0
        %2657 = vmatpush1.msra.mxu0 0.0
        %2658 = vmatprep.subr.mxu0 0.0
        %2659 = vmatpush1.msra.mxu0 0.0
        %2660 = vmatprep.subr.mxu0 0.0
        %2661 = vmatpush1.msra.mxu0 0.0
        %2662 = vmatprep.subr.mxu0 0.0
        %2663 = vmatpush1.msra.mxu0 0.0
        %2664 = vmatprep.subr.mxu0 0.0
        %2665 = vmatpush1.msra.mxu0 0.0
        %2666 = vmatprep.subr.mxu0 0.0
        %2667 = vmatpush1.msra.mxu0 0.0
        %2668 = vmatprep.subr.mxu0 0.0
        %2669 = vmatpush1.msra.mxu0 0.0
        %2670 = vmatprep.subr.mxu0 0.0
        %2671 = vmatpush1.msra.mxu0 0.0
        %2672 = vmatprep.subr.mxu0 0.0
        %2673 = vmatpush1.msra.mxu0 0.0
        %2674 = vmatprep.subr.mxu0 0.0
        %2675 = vmatpush1.msra.mxu0 0.0
        %2676 = vmatprep.subr.mxu0 0.0
        %2677 = vmatpush1.msra.mxu0 0.0
        %2678 = vmatprep.subr.mxu0 0.0
        %2679 = vmatpush1.msra.mxu0 0.0
        %2680 = vmatprep.subr.mxu0 0.0
        %2681 = vmatpush1.msra.mxu0 0.0
        %2682 = vmatprep.subr.mxu0 0.0
        %2683 = vmatpush1.msra.mxu0 0.0
        %2684 = vmatprep.subr.mxu0 0.0
        %2685 = vmatpush1.msra.mxu0 0.0
        %2686 = vmatprep.subr.mxu0 0.0
        %2687 = vmatpush1.msra.mxu0 0.0
        %2688 = vmatprep.subr.mxu0 0.0
        %2689 = vmatpush1.msra.mxu0 0.0
        %2690 = vmatprep.subr.mxu0 0.0
        %2691 = vmatpush1.msra.mxu0 0.0
        %2692 = vmatprep.mubr.f32.mxu0 0.0
        %2693 = vmatmul.mubr.f32.gmra.mrb[0].mxu0 %v2578
        %v2694 = vpop.f32.mrb[0].mxu0
        %v2695 = vadd.f32 %v2499, %v2694
        %v2696 = vpop.f32.mrb[0].mxu0
        %2697 = vmatprep.mubr.f32.mxu0 0.0
        %2698 = vmatmul.mubr.f32.gmra.mrb[0].mxu0 %v2581
        %v2699 = vpop.f32.mrb[0].mxu0
        %v2700 = vadd.f32 %v2504, %v2699
        %v2701 = vpop.f32.mrb[0].mxu0
        %2702 = vmatprep.mubr.f32.mxu0 0.0
        %2703 = vmatmul.mubr.f32.gmra.mrb[0].mxu0 %v2584
        %v2704 = vpop.f32.mrb[0].mxu0
        %v2705 = vadd.f32 %v2509, %v2704
        %v2706 = vpop.f32.mrb[0].mxu0
        %2707 = vmatprep.mubr.f32.mxu0 0.0
        %2708 = vmatmul.mubr.f32.gmra.mrb[0].mxu0 %v2587
        %v2709 = vpop.f32.mrb[0].mxu0
        %v2710 = vadd.f32 %v2514, %v2709
        %v2711 = vpop.f32.mrb[0].mxu0
        %2712 = vmatprep.mubr.f32.mxu0 0.0
        %2713 = vmatmul.mubr.f32.gmra.mrb[0].mxu0 %v2590
        %v2714 = vpop.f32.mrb[0].mxu0
        %v2715 = vadd.f32 %v2519, %v2714
        %v2716 = vpop.f32.mrb[0].mxu0
        %2717 = vmatprep.mubr.f32.mxu0 0.0
        %2718 = vmatmul.mubr.f32.gmra.mrb[0].mxu0 %v2593
        %v2719 = vpop.f32.mrb[0].mxu0
        %v2720 = vadd.f32 %v2524, %v2719
        %v2721 = vpop.f32.mrb[0].mxu0
        %2722 = vmatprep.mubr.f32.mxu0 0.0
        %2723 = vmatmul.mubr.f32.gmra.mrb[0].mxu0 %v2596
        %v2724 = vpop.f32.mrb[0].mxu0
        %v2725 = vadd.f32 %v2529, %v2724
        %v2726 = vpop.f32.mrb[0].mxu0
        %2727 = vmatprep.mubr.f32.mxu0 0.0
        %2728 = vmatmul.mubr.f32.gmra.mrb[0].mxu0 %v2599
        %v2729 = vpop.f32.mrb[0].mxu0
        %v2730 = vadd.f32 %v2534, %v2729
        %v2731 = vpop.f32.mrb[0].mxu0
        %2732 = vmatprep.mubr.f32.mxu0 0.0
        %2733 = vmatmul.mubr.f32.gmra.mrb[0].mxu0 %v2602
        %v2734 = vpop.f32.mrb[0].mxu0
        %v2735 = vadd.f32 %v2539, %v2734
        %v2736 = vpop.f32.mrb[0].mxu0
        %2737 = vmatprep.mubr.f32.mxu0 0.0
        %2738 = vmatmul.mubr.f32.gmra.mrb[0].mxu0 %v2605
        %v2739 = vpop.f32.mrb[0].mxu0
        %v2740 = vadd.f32 %v2544, %v2739
        %v2741 = vpop.f32.mrb[0].mxu0
        %2742 = vmatprep.mubr.f32.mxu0 0.0
        %2743 = vmatmul.mubr.f32.gmra.mrb[0].mxu0 %v2608
        %v2744 = vpop.f32.mrb[0].mxu0
        %v2745 = vadd.f32 %v2549, %v2744
        %v2746 = vpop.f32.mrb[0].mxu0
        %2747 = vmatprep.mubr.f32.mxu0 0.0
        %2748 = vmatmul.mubr.f32.gmra.mrb[0].mxu0 %v2611
        %v2749 = vpop.f32.mrb[0].mxu0
        %v2750 = vadd.f32 %v2554, %v2749
        %v2751 = vpop.f32.mrb[0].mxu0
        %2752 = vmatprep.mubr.f32.mxu0 0.0
        %2753 = vmatmul.mubr.f32.gmra.mrb[0].mxu0 %v2614
        %v2754 = vpop.f32.mrb[0].mxu0
        %v2755 = vadd.f32 %v2559, %v2754
        %v2756 = vpop.f32.mrb[0].mxu0
        %2757 = vmatprep.mubr.f32.mxu0 0.0
        %2758 = vmatmul.mubr.f32.gmra.mrb[0].mxu0 %v2617
        %v2759 = vpop.f32.mrb[0].mxu0
        %v2760 = vadd.f32 %v2564, %v2759
        %v2761 = vpop.f32.mrb[0].mxu0
        %2762 = vmatprep.mubr.f32.mxu0 0.0
        %2763 = vmatmul.mubr.f32.gmra.mrb[0].mxu0 %v2620
        %v2764 = vpop.f32.mrb[0].mxu0
        %v2765 = vadd.f32 %v2569, %v2764
        %v2766 = vpop.f32.mrb[0].mxu0
        %2767 = vmatprep.mubr.f32.mxu0 0.0
        %2768 = vmatmul.mubr.f32.gmra.mrb[0].mxu0 %v2623
        %v2769 = vpop.f32.mrb[0].mxu0
        %v2770 = vadd.f32 %v2574, %v2769
        %v2771 = vpop.f32.mrb[0].mxu0
        %2772 = vdwg.mxu0
        %s2773 = scalar_lea.vmem [#allocation2], 48
        %v2774 = vld [vmem:[%s2773] sm:$0xff]
        %v2775 = vld [vmem:[%s2773 + $0x8] sm:$0xff]
        %v2776 = vld [vmem:[%s2773 + $0x18] sm:$0xff]
        %v2777 = vld [vmem:[%s2773 + $0x20] sm:$0xff]
        %v2778 = vld [vmem:[%s2773 + $0x30] sm:$0xff]
        %v2779 = vld [vmem:[%s2773 + $0x38] sm:$0xff]
        %v2780 = vld [vmem:[%s2773 + $0x48] sm:$0xff]
        %v2781 = vld [vmem:[%s2773 + $0x50] sm:$0xff]
        %v2782 = vld [vmem:[%s2773 + $0x60] sm:$0xff]
        %v2783 = vld [vmem:[%s2773 + $0x68] sm:$0xff]
        %v2784 = vld [vmem:[%s2773 + $0x78] sm:$0xff]
        %v2785 = vld [vmem:[%s2773 + $0x80] sm:$0xff]
        %v2786 = vld [vmem:[%s2773 + $0x90] sm:$0xff]
        %v2787 = vld [vmem:[%s2773 + $0x98] sm:$0xff]
        %v2788 = vld [vmem:[%s2773 + $0xa8] sm:$0xff]
        %v2789 = vld [vmem:[%s2773 + $0xb0] sm:$0xff]
        %s2790 = scalar_lea.vmem [#allocation9], 40
        %v2791 = vld [vmem:[%s2790] sm:$0xf]
        %v2793 = vsel %vm456, %v2774, 0
        %v2796 = vsel %vm456, %v2775, 0
        %v2799 = vsel %vm456, %v2776, 0
        %v2802 = vsel %vm456, %v2777, 0
        %v2805 = vsel %vm456, %v2778, 0
        %v2808 = vsel %vm456, %v2779, 0
        %v2811 = vsel %vm456, %v2780, 0
        %v2814 = vsel %vm456, %v2781, 0
        %v2817 = vsel %vm456, %v2782, 0
        %v2820 = vsel %vm456, %v2783, 0
        %v2823 = vsel %vm456, %v2784, 0
        %v2826 = vsel %vm456, %v2785, 0
        %v2829 = vsel %vm456, %v2786, 0
        %v2832 = vsel %vm456, %v2787, 0
        %v2835 = vsel %vm456, %v2788, 0
        %v2838 = vsel %vm456, %v2789, 0
        %v2841 = vsel %vm580, %v2791, 0
        %2843 = vmatprep.subr.mxu0 0.0
        %2844 = vmatpush1.msra.mxu0 %v2841
        %2845 = vmatprep.subr.mxu0 0.0
        %2846 = vmatpush1.msra.mxu0 0.0
        %2847 = vmatprep.subr.mxu0 0.0
        %2848 = vmatpush1.msra.mxu0 0.0
        %2849 = vmatprep.subr.mxu0 0.0
        %2850 = vmatpush1.msra.mxu0 0.0
        %2851 = vmatprep.subr.mxu0 0.0
        %2852 = vmatpush1.msra.mxu0 0.0
        %2853 = vmatprep.subr.mxu0 0.0
        %2854 = vmatpush1.msra.mxu0 0.0
        %2855 = vmatprep.subr.mxu0 0.0
        %2856 = vmatpush1.msra.mxu0 0.0
        %2857 = vmatprep.subr.mxu0 0.0
        %2858 = vmatpush1.msra.mxu0 0.0
        %2859 = vmatprep.subr.mxu0 0.0
        %2860 = vmatpush1.msra.mxu0 0.0
        %2861 = vmatprep.subr.mxu0 0.0
        %2862 = vmatpush1.msra.mxu0 0.0
        %2863 = vmatprep.subr.mxu0 0.0
        %2864 = vmatpush1.msra.mxu0 0.0
        %2865 = vmatprep.subr.mxu0 0.0
        %2866 = vmatpush1.msra.mxu0 0.0
        %2867 = vmatprep.subr.mxu0 0.0
        %2868 = vmatpush1.msra.mxu0 0.0
        %2869 = vmatprep.subr.mxu0 0.0
        %2870 = vmatpush1.msra.mxu0 0.0
        %2871 = vmatprep.subr.mxu0 0.0
        %2872 = vmatpush1.msra.mxu0 0.0
        %2873 = vmatprep.subr.mxu0 0.0
        %2874 = vmatpush1.msra.mxu0 0.0
        %2875 = vmatprep.subr.mxu0 0.0
        %2876 = vmatpush1.msra.mxu0 0.0
        %2877 = vmatprep.subr.mxu0 0.0
        %2878 = vmatpush1.msra.mxu0 0.0
        %2879 = vmatprep.subr.mxu0 0.0
        %2880 = vmatpush1.msra.mxu0 0.0
        %2881 = vmatprep.subr.mxu0 0.0
        %2882 = vmatpush1.msra.mxu0 0.0
        %2883 = vmatprep.subr.mxu0 0.0
        %2884 = vmatpush1.msra.mxu0 0.0
        %2885 = vmatprep.subr.mxu0 0.0
        %2886 = vmatpush1.msra.mxu0 0.0
        %2887 = vmatprep.subr.mxu0 0.0
        %2888 = vmatpush1.msra.mxu0 0.0
        %2889 = vmatprep.subr.mxu0 0.0
        %2890 = vmatpush1.msra.mxu0 0.0
        %2891 = vmatprep.subr.mxu0 0.0
        %2892 = vmatpush1.msra.mxu0 0.0
        %2893 = vmatprep.subr.mxu0 0.0
        %2894 = vmatpush1.msra.mxu0 0.0
        %2895 = vmatprep.subr.mxu0 0.0
        %2896 = vmatpush1.msra.mxu0 0.0
        %2897 = vmatprep.subr.mxu0 0.0
        %2898 = vmatpush1.msra.mxu0 0.0
        %2899 = vmatprep.subr.mxu0 0.0
        %2900 = vmatpush1.msra.mxu0 0.0
        %2901 = vmatprep.subr.mxu0 0.0
        %2902 = vmatpush1.msra.mxu0 0.0
        %2903 = vmatprep.subr.mxu0 0.0
        %2904 = vmatpush1.msra.mxu0 0.0
        %2905 = vmatprep.subr.mxu0 0.0
        %2906 = vmatpush1.msra.mxu0 0.0
        %2907 = vmatprep.mubr.f32.mxu0 0.0
        %2908 = vmatmul.mubr.f32.gmra.mrb[0].mxu0 %v2793
        %v2909 = vpop.f32.mrb[0].mxu0
        %v2910 = vadd.f32 0.0, %v2909
        %v2911 = vpop.f32.mrb[0].mxu0
        %2912 = vmatprep.mubr.f32.mxu0 0.0
        %2913 = vmatmul.mubr.f32.gmra.mrb[0].mxu0 %v2796
        %v2914 = vpop.f32.mrb[0].mxu0
        %v2915 = vadd.f32 0.0, %v2914
        %v2916 = vpop.f32.mrb[0].mxu0
        %2917 = vmatprep.mubr.f32.mxu0 0.0
        %2918 = vmatmul.mubr.f32.gmra.mrb[0].mxu0 %v2799
        %v2919 = vpop.f32.mrb[0].mxu0
        %v2920 = vadd.f32 0.0, %v2919
        %v2921 = vpop.f32.mrb[0].mxu0
        %2922 = vmatprep.mubr.f32.mxu0 0.0
        %2923 = vmatmul.mubr.f32.gmra.mrb[0].mxu0 %v2802
        %v2924 = vpop.f32.mrb[0].mxu0
        %v2925 = vadd.f32 0.0, %v2924
        %v2926 = vpop.f32.mrb[0].mxu0
        %2927 = vmatprep.mubr.f32.mxu0 0.0
        %2928 = vmatmul.mubr.f32.gmra.mrb[0].mxu0 %v2805
        %v2929 = vpop.f32.mrb[0].mxu0
        %v2930 = vadd.f32 0.0, %v2929
        %v2931 = vpop.f32.mrb[0].mxu0
        %2932 = vmatprep.mubr.f32.mxu0 0.0
        %2933 = vmatmul.mubr.f32.gmra.mrb[0].mxu0 %v2808
        %v2934 = vpop.f32.mrb[0].mxu0
        %v2935 = vadd.f32 0.0, %v2934
        %v2936 = vpop.f32.mrb[0].mxu0
        %2937 = vmatprep.mubr.f32.mxu0 0.0
        %2938 = vmatmul.mubr.f32.gmra.mrb[0].mxu0 %v2811
        %v2939 = vpop.f32.mrb[0].mxu0
        %v2940 = vadd.f32 0.0, %v2939
        %v2941 = vpop.f32.mrb[0].mxu0
        %2942 = vmatprep.mubr.f32.mxu0 0.0
        %2943 = vmatmul.mubr.f32.gmra.mrb[0].mxu0 %v2814
        %v2944 = vpop.f32.mrb[0].mxu0
        %v2945 = vadd.f32 0.0, %v2944
        %v2946 = vpop.f32.mrb[0].mxu0
        %2947 = vmatprep.mubr.f32.mxu0 0.0
        %2948 = vmatmul.mubr.f32.gmra.mrb[0].mxu0 %v2817
        %v2949 = vpop.f32.mrb[0].mxu0
        %v2950 = vadd.f32 0.0, %v2949
        %v2951 = vpop.f32.mrb[0].mxu0
        %2952 = vmatprep.mubr.f32.mxu0 0.0
        %2953 = vmatmul.mubr.f32.gmra.mrb[0].mxu0 %v2820
        %v2954 = vpop.f32.mrb[0].mxu0
        %v2955 = vadd.f32 0.0, %v2954
        %v2956 = vpop.f32.mrb[0].mxu0
        %2957 = vmatprep.mubr.f32.mxu0 0.0
        %2958 = vmatmul.mubr.f32.gmra.mrb[0].mxu0 %v2823
        %v2959 = vpop.f32.mrb[0].mxu0
        %v2960 = vadd.f32 0.0, %v2959
        %v2961 = vpop.f32.mrb[0].mxu0
        %2962 = vmatprep.mubr.f32.mxu0 0.0
        %2963 = vmatmul.mubr.f32.gmra.mrb[0].mxu0 %v2826
        %v2964 = vpop.f32.mrb[0].mxu0
        %v2965 = vadd.f32 0.0, %v2964
        %v2966 = vpop.f32.mrb[0].mxu0
        %2967 = vmatprep.mubr.f32.mxu0 0.0
        %2968 = vmatmul.mubr.f32.gmra.mrb[0].mxu0 %v2829
        %v2969 = vpop.f32.mrb[0].mxu0
        %v2970 = vadd.f32 0.0, %v2969
        %v2971 = vpop.f32.mrb[0].mxu0
        %2972 = vmatprep.mubr.f32.mxu0 0.0
        %2973 = vmatmul.mubr.f32.gmra.mrb[0].mxu0 %v2832
        %v2974 = vpop.f32.mrb[0].mxu0
        %v2975 = vadd.f32 0.0, %v2974
        %v2976 = vpop.f32.mrb[0].mxu0
        %2977 = vmatprep.mubr.f32.mxu0 0.0
        %2978 = vmatmul.mubr.f32.gmra.mrb[0].mxu0 %v2835
        %v2979 = vpop.f32.mrb[0].mxu0
        %v2980 = vadd.f32 0.0, %v2979
        %v2981 = vpop.f32.mrb[0].mxu0
        %2982 = vmatprep.mubr.f32.mxu0 0.0
        %2983 = vmatmul.mubr.f32.gmra.mrb[0].mxu0 %v2838
        %v2984 = vpop.f32.mrb[0].mxu0
        %v2985 = vadd.f32 0.0, %v2984
        %v2986 = vpop.f32.mrb[0].mxu0
        %2987 = vdwg.mxu0
        %v2988 = vadd.f32 %v2695, %v2910
        %v2989 = vadd.f32 %v2700, %v2915
        %v2990 = vadd.f32 %v2705, %v2920
        %v2991 = vadd.f32 %v2710, %v2925
        %v2992 = vadd.f32 %v2715, %v2930
        %v2993 = vadd.f32 %v2720, %v2935
        %v2994 = vadd.f32 %v2725, %v2940
        %v2995 = vadd.f32 %v2730, %v2945
        %v2996 = vadd.f32 %v2735, %v2950
        %v2997 = vadd.f32 %v2740, %v2955
        %v2998 = vadd.f32 %v2745, %v2960
        %v2999 = vadd.f32 %v2750, %v2965
        %v3000 = vadd.f32 %v2755, %v2970
        %v3001 = vadd.f32 %v2760, %v2975
        %v3002 = vadd.f32 %v2765, %v2980
        %v3003 = vadd.f32 %v2770, %v2985
        %v3004 = vld [vmem:[%s2773 + $0x1] sm:$0xff]
        %v3005 = vld [vmem:[%s2773 + $0x9] sm:$0xff]
        %v3006 = vld [vmem:[%s2773 + $0x19] sm:$0xff]
        %v3007 = vld [vmem:[%s2773 + $0x21] sm:$0xff]
        %v3008 = vld [vmem:[%s2773 + $0x31] sm:$0xff]
        %v3009 = vld [vmem:[%s2773 + $0x39] sm:$0xff]
        %v3010 = vld [vmem:[%s2773 + $0x49] sm:$0xff]
        %v3011 = vld [vmem:[%s2773 + $0x51] sm:$0xff]
        %v3012 = vld [vmem:[%s2773 + $0x61] sm:$0xff]
        %v3013 = vld [vmem:[%s2773 + $0x69] sm:$0xff]
        %v3014 = vld [vmem:[%s2773 + $0x79] sm:$0xff]
        %v3015 = vld [vmem:[%s2773 + $0x81] sm:$0xff]
        %v3016 = vld [vmem:[%s2773 + $0x91] sm:$0xff]
        %v3017 = vld [vmem:[%s2773 + $0x99] sm:$0xff]
        %v3018 = vld [vmem:[%s2773 + $0xa9] sm:$0xff]
        %v3019 = vld [vmem:[%s2773 + $0xb1] sm:$0xff]
        %s3020 = scalar_lea.vmem [#allocation9], 44
        %v3021 = vld [vmem:[%s3020] sm:$0xf]
        %v3023 = vsel %vm456, %v3004, 0
        %v3026 = vsel %vm456, %v3005, 0
        %v3029 = vsel %vm456, %v3006, 0
        %v3032 = vsel %vm456, %v3007, 0
        %v3035 = vsel %vm456, %v3008, 0
        %v3038 = vsel %vm456, %v3009, 0
        %v3041 = vsel %vm456, %v3010, 0
        %v3044 = vsel %vm456, %v3011, 0
        %v3047 = vsel %vm456, %v3012, 0
        %v3050 = vsel %vm456, %v3013, 0
        %v3053 = vsel %vm456, %v3014, 0
        %v3056 = vsel %vm456, %v3015, 0
        %v3059 = vsel %vm456, %v3016, 0
        %v3062 = vsel %vm456, %v3017, 0
        %v3065 = vsel %vm456, %v3018, 0
        %v3068 = vsel %vm456, %v3019, 0
        %v3071 = vsel %vm580, %v3021, 0
        %3073 = vmatprep.subr.mxu0 0.0
        %3074 = vmatpush1.msra.mxu0 %v3071
        %3075 = vmatprep.subr.mxu0 0.0
        %3076 = vmatpush1.msra.mxu0 0.0
        %3077 = vmatprep.subr.mxu0 0.0
        %3078 = vmatpush1.msra.mxu0 0.0
        %3079 = vmatprep.subr.mxu0 0.0
        %3080 = vmatpush1.msra.mxu0 0.0
        %3081 = vmatprep.subr.mxu0 0.0
        %3082 = vmatpush1.msra.mxu0 0.0
        %3083 = vmatprep.subr.mxu0 0.0
        %3084 = vmatpush1.msra.mxu0 0.0
        %3085 = vmatprep.subr.mxu0 0.0
        %3086 = vmatpush1.msra.mxu0 0.0
        %3087 = vmatprep.subr.mxu0 0.0
        %3088 = vmatpush1.msra.mxu0 0.0
        %3089 = vmatprep.subr.mxu0 0.0
        %3090 = vmatpush1.msra.mxu0 0.0
        %3091 = vmatprep.subr.mxu0 0.0
        %3092 = vmatpush1.msra.mxu0 0.0
        %3093 = vmatprep.subr.mxu0 0.0
        %3094 = vmatpush1.msra.mxu0 0.0
        %3095 = vmatprep.subr.mxu0 0.0
        %3096 = vmatpush1.msra.mxu0 0.0
        %3097 = vmatprep.subr.mxu0 0.0
        %3098 = vmatpush1.msra.mxu0 0.0
        %3099 = vmatprep.subr.mxu0 0.0
        %3100 = vmatpush1.msra.mxu0 0.0
        %3101 = vmatprep.subr.mxu0 0.0
        %3102 = vmatpush1.msra.mxu0 0.0
        %3103 = vmatprep.subr.mxu0 0.0
        %3104 = vmatpush1.msra.mxu0 0.0
        %3105 = vmatprep.subr.mxu0 0.0
        %3106 = vmatpush1.msra.mxu0 0.0
        %3107 = vmatprep.subr.mxu0 0.0
        %3108 = vmatpush1.msra.mxu0 0.0
        %3109 = vmatprep.subr.mxu0 0.0
        %3110 = vmatpush1.msra.mxu0 0.0
        %3111 = vmatprep.subr.mxu0 0.0
        %3112 = vmatpush1.msra.mxu0 0.0
        %3113 = vmatprep.subr.mxu0 0.0
        %3114 = vmatpush1.msra.mxu0 0.0
        %3115 = vmatprep.subr.mxu0 0.0
        %3116 = vmatpush1.msra.mxu0 0.0
        %3117 = vmatprep.subr.mxu0 0.0
        %3118 = vmatpush1.msra.mxu0 0.0
        %3119 = vmatprep.subr.mxu0 0.0
        %3120 = vmatpush1.msra.mxu0 0.0
        %3121 = vmatprep.subr.mxu0 0.0
        %3122 = vmatpush1.msra.mxu0 0.0
        %3123 = vmatprep.subr.mxu0 0.0
        %3124 = vmatpush1.msra.mxu0 0.0
        %3125 = vmatprep.subr.mxu0 0.0
        %3126 = vmatpush1.msra.mxu0 0.0
        %3127 = vmatprep.subr.mxu0 0.0
        %3128 = vmatpush1.msra.mxu0 0.0
        %3129 = vmatprep.subr.mxu0 0.0
        %3130 = vmatpush1.msra.mxu0 0.0
        %3131 = vmatprep.subr.mxu0 0.0
        %3132 = vmatpush1.msra.mxu0 0.0
        %3133 = vmatprep.subr.mxu0 0.0
        %3134 = vmatpush1.msra.mxu0 0.0
        %3135 = vmatprep.subr.mxu0 0.0
        %3136 = vmatpush1.msra.mxu0 0.0
        %3137 = vmatprep.mubr.f32.mxu0 0.0
        %3138 = vmatmul.mubr.f32.gmra.mrb[0].mxu0 %v3023
        %v3139 = vpop.f32.mrb[0].mxu0
        %v3140 = vadd.f32 0.0, %v3139
        %v3141 = vpop.f32.mrb[0].mxu0
        %3142 = vmatprep.mubr.f32.mxu0 0.0
        %3143 = vmatmul.mubr.f32.gmra.mrb[0].mxu0 %v3026
        %v3144 = vpop.f32.mrb[0].mxu0
        %v3145 = vadd.f32 0.0, %v3144
        %v3146 = vpop.f32.mrb[0].mxu0
        %3147 = vmatprep.mubr.f32.mxu0 0.0
        %3148 = vmatmul.mubr.f32.gmra.mrb[0].mxu0 %v3029
        %v3149 = vpop.f32.mrb[0].mxu0
        %v3150 = vadd.f32 0.0, %v3149
        %v3151 = vpop.f32.mrb[0].mxu0
        %3152 = vmatprep.mubr.f32.mxu0 0.0
        %3153 = vmatmul.mubr.f32.gmra.mrb[0].mxu0 %v3032
        %v3154 = vpop.f32.mrb[0].mxu0
        %v3155 = vadd.f32 0.0, %v3154
        %v3156 = vpop.f32.mrb[0].mxu0
        %3157 = vmatprep.mubr.f32.mxu0 0.0
        %3158 = vmatmul.mubr.f32.gmra.mrb[0].mxu0 %v3035
        %v3159 = vpop.f32.mrb[0].mxu0
        %v3160 = vadd.f32 0.0, %v3159
        %v3161 = vpop.f32.mrb[0].mxu0
        %3162 = vmatprep.mubr.f32.mxu0 0.0
        %3163 = vmatmul.mubr.f32.gmra.mrb[0].mxu0 %v3038
        %v3164 = vpop.f32.mrb[0].mxu0
        %v3165 = vadd.f32 0.0, %v3164
        %v3166 = vpop.f32.mrb[0].mxu0
        %3167 = vmatprep.mubr.f32.mxu0 0.0
        %3168 = vmatmul.mubr.f32.gmra.mrb[0].mxu0 %v3041
        %v3169 = vpop.f32.mrb[0].mxu0
        %v3170 = vadd.f32 0.0, %v3169
        %v3171 = vpop.f32.mrb[0].mxu0
        %3172 = vmatprep.mubr.f32.mxu0 0.0
        %3173 = vmatmul.mubr.f32.gmra.mrb[0].mxu0 %v3044
        %v3174 = vpop.f32.mrb[0].mxu0
        %v3175 = vadd.f32 0.0, %v3174
        %v3176 = vpop.f32.mrb[0].mxu0
        %3177 = vmatprep.mubr.f32.mxu0 0.0
        %3178 = vmatmul.mubr.f32.gmra.mrb[0].mxu0 %v3047
        %v3179 = vpop.f32.mrb[0].mxu0
        %v3180 = vadd.f32 0.0, %v3179
        %v3181 = vpop.f32.mrb[0].mxu0
        %3182 = vmatprep.mubr.f32.mxu0 0.0
        %3183 = vmatmul.mubr.f32.gmra.mrb[0].mxu0 %v3050
        %v3184 = vpop.f32.mrb[0].mxu0
        %v3185 = vadd.f32 0.0, %v3184
        %v3186 = vpop.f32.mrb[0].mxu0
        %3187 = vmatprep.mubr.f32.mxu0 0.0
        %3188 = vmatmul.mubr.f32.gmra.mrb[0].mxu0 %v3053
        %v3189 = vpop.f32.mrb[0].mxu0
        %v3190 = vadd.f32 0.0, %v3189
        %v3191 = vpop.f32.mrb[0].mxu0
        %3192 = vmatprep.mubr.f32.mxu0 0.0
        %3193 = vmatmul.mubr.f32.gmra.mrb[0].mxu0 %v3056
        %v3194 = vpop.f32.mrb[0].mxu0
        %v3195 = vadd.f32 0.0, %v3194
        %v3196 = vpop.f32.mrb[0].mxu0
        %3197 = vmatprep.mubr.f32.mxu0 0.0
        %3198 = vmatmul.mubr.f32.gmra.mrb[0].mxu0 %v3059
        %v3199 = vpop.f32.mrb[0].mxu0
        %v3200 = vadd.f32 0.0, %v3199
        %v3201 = vpop.f32.mrb[0].mxu0
        %3202 = vmatprep.mubr.f32.mxu0 0.0
        %3203 = vmatmul.mubr.f32.gmra.mrb[0].mxu0 %v3062
        %v3204 = vpop.f32.mrb[0].mxu0
        %v3205 = vadd.f32 0.0, %v3204
        %v3206 = vpop.f32.mrb[0].mxu0
        %3207 = vmatprep.mubr.f32.mxu0 0.0
        %3208 = vmatmul.mubr.f32.gmra.mrb[0].mxu0 %v3065
        %v3209 = vpop.f32.mrb[0].mxu0
        %v3210 = vadd.f32 0.0, %v3209
        %v3211 = vpop.f32.mrb[0].mxu0
        %3212 = vmatprep.mubr.f32.mxu0 0.0
        %3213 = vmatmul.mubr.f32.gmra.mrb[0].mxu0 %v3068
        %v3214 = vpop.f32.mrb[0].mxu0
        %v3215 = vadd.f32 0.0, %v3214
        %v3216 = vpop.f32.mrb[0].mxu0
        %3217 = vdwg.mxu0
        %v3218 = vadd.f32 %v2988, %v3140
        %v3219 = vadd.f32 %v2989, %v3145
        %v3220 = vadd.f32 %v2990, %v3150
        %v3221 = vadd.f32 %v2991, %v3155
        %v3222 = vadd.f32 %v2992, %v3160
        %v3223 = vadd.f32 %v2993, %v3165
        %v3224 = vadd.f32 %v2994, %v3170
        %v3225 = vadd.f32 %v2995, %v3175
        %v3226 = vadd.f32 %v2996, %v3180
        %v3227 = vadd.f32 %v2997, %v3185
        %v3228 = vadd.f32 %v2998, %v3190
        %v3229 = vadd.f32 %v2999, %v3195
        %v3230 = vadd.f32 %v3000, %v3200
        %v3231 = vadd.f32 %v3001, %v3205
        %v3232 = vadd.f32 %v3002, %v3210
        %v3233 = vadd.f32 %v3003, %v3215
        %v3234 = vadd.f32 %v3218, %v1390
        %v3235 = vadd.f32 %v3219, %v1390
        %v3236 = vadd.f32 %v3220, %v1390
        %v3237 = vadd.f32 %v3221, %v1390
        %v3238 = vadd.f32 %v3222, %v1390
        %v3239 = vadd.f32 %v3223, %v1390
        %v3240 = vadd.f32 %v3224, %v1390
        %v3241 = vadd.f32 %v3225, %v1390
        %v3242 = vadd.f32 %v3226, %v1390
        %v3243 = vadd.f32 %v3227, %v1390
        %v3244 = vadd.f32 %v3228, %v1390
        %v3245 = vadd.f32 %v3229, %v1390
        %v3246 = vadd.f32 %v3230, %v1390
        %v3247 = vadd.f32 %v3231, %v1390
        %v3248 = vadd.f32 %v3232, %v1390
        %v3249 = vadd.f32 %v3233, %v1390
        %s3250 = scalar_lea.vmem %s419, 256 [#allocation12]
        %3251 = vst.msk [vmem:[%s3250] sm:$0xff] %vm456, %v3234
        %3252 = vst.msk [vmem:[%s3250 + $0x8] sm:$0xff] %vm456, %v3235
        %3253 = vst.msk [vmem:[%s3250 + $0x10] sm:$0xff] %vm456, %v3236
        %3254 = vst.msk [vmem:[%s3250 + $0x18] sm:$0xff] %vm456, %v3237
        %3255 = vst.msk [vmem:[%s3250 + $0x20] sm:$0xff] %vm456, %v3238
        %3256 = vst.msk [vmem:[%s3250 + $0x28] sm:$0xff] %vm456, %v3239
        %3257 = vst.msk [vmem:[%s3250 + $0x30] sm:$0xff] %vm456, %v3240
        %3258 = vst.msk [vmem:[%s3250 + $0x38] sm:$0xff] %vm456, %v3241
        %3259 = vst.msk [vmem:[%s3250 + $0x40] sm:$0xff] %vm456, %v3242
        %3260 = vst.msk [vmem:[%s3250 + $0x48] sm:$0xff] %vm456, %v3243
        %3261 = vst.msk [vmem:[%s3250 + $0x50] sm:$0xff] %vm456, %v3244
        %3262 = vst.msk [vmem:[%s3250 + $0x58] sm:$0xff] %vm456, %v3245
        %3263 = vst.msk [vmem:[%s3250 + $0x60] sm:$0xff] %vm456, %v3246
        %3264 = vst.msk [vmem:[%s3250 + $0x68] sm:$0xff] %vm456, %v3247
        %3265 = vst.msk [vmem:[%s3250 + $0x70] sm:$0xff] %vm456, %v3248
        %3266 = vst.msk [vmem:[%s3250 + $0x78] sm:$0xff] %vm456, %v3249
        %v3267 = vld [vmem:[%s925 + $0x1] sm:$0xff]
        %v3268 = vld [vmem:[%s925 + $0x9] sm:$0xff]
        %v3269 = vld [vmem:[%s925 + $0x19] sm:$0xff]
        %v3270 = vld [vmem:[%s925 + $0x21] sm:$0xff]
        %v3271 = vld [vmem:[%s925 + $0x31] sm:$0xff]
        %v3272 = vld [vmem:[%s925 + $0x39] sm:$0xff]
        %v3273 = vld [vmem:[%s925 + $0x49] sm:$0xff]
        %v3274 = vld [vmem:[%s925 + $0x51] sm:$0xff]
        %v3275 = vld [vmem:[%s925 + $0x61] sm:$0xff]
        %v3276 = vld [vmem:[%s925 + $0x69] sm:$0xff]
        %v3277 = vld [vmem:[%s925 + $0x79] sm:$0xff]
        %v3278 = vld [vmem:[%s925 + $0x81] sm:$0xff]
        %v3279 = vld [vmem:[%s925 + $0x91] sm:$0xff]
        %v3280 = vld [vmem:[%s925 + $0x99] sm:$0xff]
        %v3281 = vld [vmem:[%s925 + $0xa9] sm:$0xff]
        %v3282 = vld [vmem:[%s925 + $0xb1] sm:$0xff]
        %s3283 = scalar_lea.vmem [#allocation9], 48
        %v3284 = vld [vmem:[%s3283] sm:$0xf]
        %v3285 = vld [vmem:[%s925 + $0x2] sm:$0xff]
        %v3286 = vld [vmem:[%s925 + $0xa] sm:$0xff]
        %v3287 = vld [vmem:[%s925 + $0x1a] sm:$0xff]
        %v3288 = vld [vmem:[%s925 + $0x22] sm:$0xff]
        %v3289 = vld [vmem:[%s925 + $0x32] sm:$0xff]
        %v3290 = vld [vmem:[%s925 + $0x3a] sm:$0xff]
        %v3291 = vld [vmem:[%s925 + $0x4a] sm:$0xff]
        %v3292 = vld [vmem:[%s925 + $0x52] sm:$0xff]
        %v3293 = vld [vmem:[%s925 + $0x62] sm:$0xff]
        %v3294 = vld [vmem:[%s925 + $0x6a] sm:$0xff]
        %v3295 = vld [vmem:[%s925 + $0x7a] sm:$0xff]
        %v3296 = vld [vmem:[%s925 + $0x82] sm:$0xff]
        %v3297 = vld [vmem:[%s925 + $0x92] sm:$0xff]
        %v3298 = vld [vmem:[%s925 + $0x9a] sm:$0xff]
        %v3299 = vld [vmem:[%s925 + $0xaa] sm:$0xff]
        %v3300 = vld [vmem:[%s925 + $0xb2] sm:$0xff]
        %s3301 = scalar_lea.vmem [#allocation9], 52
        %v3302 = vld [vmem:[%s3301] sm:$0xf]
        %v3304 = vsel %vm456, %v3285, 0
        %v3307 = vsel %vm456, %v3286, 0
        %v3310 = vsel %vm456, %v3287, 0
        %v3313 = vsel %vm456, %v3288, 0
        %v3316 = vsel %vm456, %v3289, 0
        %v3319 = vsel %vm456, %v3290, 0
        %v3322 = vsel %vm456, %v3291, 0
        %v3325 = vsel %vm456, %v3292, 0
        %v3328 = vsel %vm456, %v3293, 0
        %v3331 = vsel %vm456, %v3294, 0
        %v3334 = vsel %vm456, %v3295, 0
        %v3337 = vsel %vm456, %v3296, 0
        %v3340 = vsel %vm456, %v3297, 0
        %v3343 = vsel %vm456, %v3298, 0
        %v3346 = vsel %vm456, %v3299, 0
        %v3349 = vsel %vm456, %v3300, 0
        %v3352 = vsel %vm580, %v3302, 0
        %3354 = vmatprep.subr.mxu0 0.0
        %3355 = vmatpush1.msra.mxu0 %v3352
        %3356 = vmatprep.subr.mxu0 0.0
        %3357 = vmatpush1.msra.mxu0 0.0
        %3358 = vmatprep.subr.mxu0 0.0
        %3359 = vmatpush1.msra.mxu0 0.0
        %3360 = vmatprep.subr.mxu0 0.0
        %3361 = vmatpush1.msra.mxu0 0.0
        %3362 = vmatprep.subr.mxu0 0.0
        %3363 = vmatpush1.msra.mxu0 0.0
        %3364 = vmatprep.subr.mxu0 0.0
        %3365 = vmatpush1.msra.mxu0 0.0
        %3366 = vmatprep.subr.mxu0 0.0
        %3367 = vmatpush1.msra.mxu0 0.0
        %3368 = vmatprep.subr.mxu0 0.0
        %3369 = vmatpush1.msra.mxu0 0.0
        %3370 = vmatprep.subr.mxu0 0.0
        %3371 = vmatpush1.msra.mxu0 0.0
        %3372 = vmatprep.subr.mxu0 0.0
        %3373 = vmatpush1.msra.mxu0 0.0
        %3374 = vmatprep.subr.mxu0 0.0
        %3375 = vmatpush1.msra.mxu0 0.0
        %3376 = vmatprep.subr.mxu0 0.0
        %3377 = vmatpush1.msra.mxu0 0.0
        %3378 = vmatprep.subr.mxu0 0.0
        %3379 = vmatpush1.msra.mxu0 0.0
        %3380 = vmatprep.subr.mxu0 0.0
        %3381 = vmatpush1.msra.mxu0 0.0
        %3382 = vmatprep.subr.mxu0 0.0
        %3383 = vmatpush1.msra.mxu0 0.0
        %3384 = vmatprep.subr.mxu0 0.0
        %3385 = vmatpush1.msra.mxu0 0.0
        %3386 = vmatprep.subr.mxu0 0.0
        %3387 = vmatpush1.msra.mxu0 0.0
        %3388 = vmatprep.subr.mxu0 0.0
        %3389 = vmatpush1.msra.mxu0 0.0
        %3390 = vmatprep.subr.mxu0 0.0
        %3391 = vmatpush1.msra.mxu0 0.0
        %3392 = vmatprep.subr.mxu0 0.0
        %3393 = vmatpush1.msra.mxu0 0.0
        %3394 = vmatprep.subr.mxu0 0.0
        %3395 = vmatpush1.msra.mxu0 0.0
        %3396 = vmatprep.subr.mxu0 0.0
        %3397 = vmatpush1.msra.mxu0 0.0
        %3398 = vmatprep.subr.mxu0 0.0
        %3399 = vmatpush1.msra.mxu0 0.0
        %3400 = vmatprep.subr.mxu0 0.0
        %3401 = vmatpush1.msra.mxu0 0.0
        %3402 = vmatprep.subr.mxu0 0.0
        %3403 = vmatpush1.msra.mxu0 0.0
        %3404 = vmatprep.subr.mxu0 0.0
        %3405 = vmatpush1.msra.mxu0 0.0
        %3406 = vmatprep.subr.mxu0 0.0
        %3407 = vmatpush1.msra.mxu0 0.0
        %3408 = vmatprep.subr.mxu0 0.0
        %3409 = vmatpush1.msra.mxu0 0.0
        %3410 = vmatprep.subr.mxu0 0.0
        %3411 = vmatpush1.msra.mxu0 0.0
        %3412 = vmatprep.subr.mxu0 0.0
        %3413 = vmatpush1.msra.mxu0 0.0
        %3414 = vmatprep.subr.mxu0 0.0
        %3415 = vmatpush1.msra.mxu0 0.0
        %3416 = vmatprep.subr.mxu0 0.0
        %3417 = vmatpush1.msra.mxu0 0.0
        %3418 = vmatprep.mubr.f32.mxu0 0.0
        %3419 = vmatmul.mubr.f32.gmra.mrb[0].mxu0 %v3304
        %v3420 = vpop.f32.mrb[0].mxu0
        %v3421 = vadd.f32 0.0, %v3420
        %v3422 = vpop.f32.mrb[0].mxu0
        %3423 = vmatprep.mubr.f32.mxu0 0.0
        %3424 = vmatmul.mubr.f32.gmra.mrb[0].mxu0 %v3307
        %v3425 = vpop.f32.mrb[0].mxu0
        %v3426 = vadd.f32 0.0, %v3425
        %v3427 = vpop.f32.mrb[0].mxu0
        %3428 = vmatprep.mubr.f32.mxu0 0.0
        %3429 = vmatmul.mubr.f32.gmra.mrb[0].mxu0 %v3310
        %v3430 = vpop.f32.mrb[0].mxu0
        %v3431 = vadd.f32 0.0, %v3430
        %v3432 = vpop.f32.mrb[0].mxu0
        %3433 = vmatprep.mubr.f32.mxu0 0.0
        %3434 = vmatmul.mubr.f32.gmra.mrb[0].mxu0 %v3313
        %v3435 = vpop.f32.mrb[0].mxu0
        %v3436 = vadd.f32 0.0, %v3435
        %v3437 = vpop.f32.mrb[0].mxu0
        %3438 = vmatprep.mubr.f32.mxu0 0.0
        %3439 = vmatmul.mubr.f32.gmra.mrb[0].mxu0 %v3316
        %v3440 = vpop.f32.mrb[0].mxu0
        %v3441 = vadd.f32 0.0, %v3440
        %v3442 = vpop.f32.mrb[0].mxu0
        %3443 = vmatprep.mubr.f32.mxu0 0.0
        %3444 = vmatmul.mubr.f32.gmra.mrb[0].mxu0 %v3319
        %v3445 = vpop.f32.mrb[0].mxu0
        %v3446 = vadd.f32 0.0, %v3445
        %v3447 = vpop.f32.mrb[0].mxu0
        %3448 = vmatprep.mubr.f32.mxu0 0.0
        %3449 = vmatmul.mubr.f32.gmra.mrb[0].mxu0 %v3322
        %v3450 = vpop.f32.mrb[0].mxu0
        %v3451 = vadd.f32 0.0, %v3450
        %v3452 = vpop.f32.mrb[0].mxu0
        %3453 = vmatprep.mubr.f32.mxu0 0.0
        %3454 = vmatmul.mubr.f32.gmra.mrb[0].mxu0 %v3325
        %v3455 = vpop.f32.mrb[0].mxu0
        %v3456 = vadd.f32 0.0, %v3455
        %v3457 = vpop.f32.mrb[0].mxu0
        %3458 = vmatprep.mubr.f32.mxu0 0.0
        %3459 = vmatmul.mubr.f32.gmra.mrb[0].mxu0 %v3328
        %v3460 = vpop.f32.mrb[0].mxu0
        %v3461 = vadd.f32 0.0, %v3460
        %v3462 = vpop.f32.mrb[0].mxu0
        %3463 = vmatprep.mubr.f32.mxu0 0.0
        %3464 = vmatmul.mubr.f32.gmra.mrb[0].mxu0 %v3331
        %v3465 = vpop.f32.mrb[0].mxu0
        %v3466 = vadd.f32 0.0, %v3465
        %v3467 = vpop.f32.mrb[0].mxu0
        %3468 = vmatprep.mubr.f32.mxu0 0.0
        %3469 = vmatmul.mubr.f32.gmra.mrb[0].mxu0 %v3334
        %v3470 = vpop.f32.mrb[0].mxu0
        %v3471 = vadd.f32 0.0, %v3470
        %v3472 = vpop.f32.mrb[0].mxu0
        %3473 = vmatprep.mubr.f32.mxu0 0.0
        %3474 = vmatmul.mubr.f32.gmra.mrb[0].mxu0 %v3337
        %v3475 = vpop.f32.mrb[0].mxu0
        %v3476 = vadd.f32 0.0, %v3475
        %v3477 = vpop.f32.mrb[0].mxu0
        %3478 = vmatprep.mubr.f32.mxu0 0.0
        %3479 = vmatmul.mubr.f32.gmra.mrb[0].mxu0 %v3340
        %v3480 = vpop.f32.mrb[0].mxu0
        %v3481 = vadd.f32 0.0, %v3480
        %v3482 = vpop.f32.mrb[0].mxu0
        %3483 = vmatprep.mubr.f32.mxu0 0.0
        %3484 = vmatmul.mubr.f32.gmra.mrb[0].mxu0 %v3343
        %v3485 = vpop.f32.mrb[0].mxu0
        %v3486 = vadd.f32 0.0, %v3485
        %v3487 = vpop.f32.mrb[0].mxu0
        %3488 = vmatprep.mubr.f32.mxu0 0.0
        %3489 = vmatmul.mubr.f32.gmra.mrb[0].mxu0 %v3346
        %v3490 = vpop.f32.mrb[0].mxu0
        %v3491 = vadd.f32 0.0, %v3490
        %v3492 = vpop.f32.mrb[0].mxu0
        %3493 = vmatprep.mubr.f32.mxu0 0.0
        %3494 = vmatmul.mubr.f32.gmra.mrb[0].mxu0 %v3349
        %v3495 = vpop.f32.mrb[0].mxu0
        %v3496 = vadd.f32 0.0, %v3495
        %v3497 = vpop.f32.mrb[0].mxu0
        %3498 = vdwg.mxu0
        %v3500 = vsel %vm456, %v3267, 0
        %v3503 = vsel %vm456, %v3268, 0
        %v3506 = vsel %vm456, %v3269, 0
        %v3509 = vsel %vm456, %v3270, 0
        %v3512 = vsel %vm456, %v3271, 0
        %v3515 = vsel %vm456, %v3272, 0
        %v3518 = vsel %vm456, %v3273, 0
        %v3521 = vsel %vm456, %v3274, 0
        %v3524 = vsel %vm456, %v3275, 0
        %v3527 = vsel %vm456, %v3276, 0
        %v3530 = vsel %vm456, %v3277, 0
        %v3533 = vsel %vm456, %v3278, 0
        %v3536 = vsel %vm456, %v3279, 0
        %v3539 = vsel %vm456, %v3280, 0
        %v3542 = vsel %vm456, %v3281, 0
        %v3545 = vsel %vm456, %v3282, 0
        %v3548 = vsel %vm580, %v3284, 0
        %3550 = vmatprep.subr.mxu0 0.0
        %3551 = vmatpush1.msra.mxu0 %v3548
        %3552 = vmatprep.subr.mxu0 0.0
        %3553 = vmatpush1.msra.mxu0 0.0
        %3554 = vmatprep.subr.mxu0 0.0
        %3555 = vmatpush1.msra.mxu0 0.0
        %3556 = vmatprep.subr.mxu0 0.0
        %3557 = vmatpush1.msra.mxu0 0.0
        %3558 = vmatprep.subr.mxu0 0.0
        %3559 = vmatpush1.msra.mxu0 0.0
        %3560 = vmatprep.subr.mxu0 0.0
        %3561 = vmatpush1.msra.mxu0 0.0
        %3562 = vmatprep.subr.mxu0 0.0
        %3563 = vmatpush1.msra.mxu0 0.0
        %3564 = vmatprep.subr.mxu0 0.0
        %3565 = vmatpush1.msra.mxu0 0.0
        %3566 = vmatprep.subr.mxu0 0.0
        %3567 = vmatpush1.msra.mxu0 0.0
        %3568 = vmatprep.subr.mxu0 0.0
        %3569 = vmatpush1.msra.mxu0 0.0
        %3570 = vmatprep.subr.mxu0 0.0
        %3571 = vmatpush1.msra.mxu0 0.0
        %3572 = vmatprep.subr.mxu0 0.0
        %3573 = vmatpush1.msra.mxu0 0.0
        %3574 = vmatprep.subr.mxu0 0.0
        %3575 = vmatpush1.msra.mxu0 0.0
        %3576 = vmatprep.subr.mxu0 0.0
        %3577 = vmatpush1.msra.mxu0 0.0
        %3578 = vmatprep.subr.mxu0 0.0
        %3579 = vmatpush1.msra.mxu0 0.0
        %3580 = vmatprep.subr.mxu0 0.0
        %3581 = vmatpush1.msra.mxu0 0.0
        %3582 = vmatprep.subr.mxu0 0.0
        %3583 = vmatpush1.msra.mxu0 0.0
        %3584 = vmatprep.subr.mxu0 0.0
        %3585 = vmatpush1.msra.mxu0 0.0
        %3586 = vmatprep.subr.mxu0 0.0
        %3587 = vmatpush1.msra.mxu0 0.0
        %3588 = vmatprep.subr.mxu0 0.0
        %3589 = vmatpush1.msra.mxu0 0.0
        %3590 = vmatprep.subr.mxu0 0.0
        %3591 = vmatpush1.msra.mxu0 0.0
        %3592 = vmatprep.subr.mxu0 0.0
        %3593 = vmatpush1.msra.mxu0 0.0
        %3594 = vmatprep.subr.mxu0 0.0
        %3595 = vmatpush1.msra.mxu0 0.0
        %3596 = vmatprep.subr.mxu0 0.0
        %3597 = vmatpush1.msra.mxu0 0.0
        %3598 = vmatprep.subr.mxu0 0.0
        %3599 = vmatpush1.msra.mxu0 0.0
        %3600 = vmatprep.subr.mxu0 0.0
        %3601 = vmatpush1.msra.mxu0 0.0
        %3602 = vmatprep.subr.mxu0 0.0
        %3603 = vmatpush1.msra.mxu0 0.0
        %3604 = vmatprep.subr.mxu0 0.0
        %3605 = vmatpush1.msra.mxu0 0.0
        %3606 = vmatprep.subr.mxu0 0.0
        %3607 = vmatpush1.msra.mxu0 0.0
        %3608 = vmatprep.subr.mxu0 0.0
        %3609 = vmatpush1.msra.mxu0 0.0
        %3610 = vmatprep.subr.mxu0 0.0
        %3611 = vmatpush1.msra.mxu0 0.0
        %3612 = vmatprep.subr.mxu0 0.0
        %3613 = vmatpush1.msra.mxu0 0.0
        %3614 = vmatprep.mubr.f32.mxu0 0.0
        %3615 = vmatmul.mubr.f32.gmra.mrb[0].mxu0 %v3500
        %v3616 = vpop.f32.mrb[0].mxu0
        %v3617 = vadd.f32 %v3421, %v3616
        %v3618 = vpop.f32.mrb[0].mxu0
        %3619 = vmatprep.mubr.f32.mxu0 0.0
        %3620 = vmatmul.mubr.f32.gmra.mrb[0].mxu0 %v3503
        %v3621 = vpop.f32.mrb[0].mxu0
        %v3622 = vadd.f32 %v3426, %v3621
        %v3623 = vpop.f32.mrb[0].mxu0
        %3624 = vmatprep.mubr.f32.mxu0 0.0
        %3625 = vmatmul.mubr.f32.gmra.mrb[0].mxu0 %v3506
        %v3626 = vpop.f32.mrb[0].mxu0
        %v3627 = vadd.f32 %v3431, %v3626
        %v3628 = vpop.f32.mrb[0].mxu0
        %3629 = vmatprep.mubr.f32.mxu0 0.0
        %3630 = vmatmul.mubr.f32.gmra.mrb[0].mxu0 %v3509
        %v3631 = vpop.f32.mrb[0].mxu0
        %v3632 = vadd.f32 %v3436, %v3631
        %v3633 = vpop.f32.mrb[0].mxu0
        %3634 = vmatprep.mubr.f32.mxu0 0.0
        %3635 = vmatmul.mubr.f32.gmra.mrb[0].mxu0 %v3512
        %v3636 = vpop.f32.mrb[0].mxu0
        %v3637 = vadd.f32 %v3441, %v3636
        %v3638 = vpop.f32.mrb[0].mxu0
        %3639 = vmatprep.mubr.f32.mxu0 0.0
        %3640 = vmatmul.mubr.f32.gmra.mrb[0].mxu0 %v3515
        %v3641 = vpop.f32.mrb[0].mxu0
        %v3642 = vadd.f32 %v3446, %v3641
        %v3643 = vpop.f32.mrb[0].mxu0
        %3644 = vmatprep.mubr.f32.mxu0 0.0
        %3645 = vmatmul.mubr.f32.gmra.mrb[0].mxu0 %v3518
        %v3646 = vpop.f32.mrb[0].mxu0
        %v3647 = vadd.f32 %v3451, %v3646
        %v3648 = vpop.f32.mrb[0].mxu0
        %3649 = vmatprep.mubr.f32.mxu0 0.0
        %3650 = vmatmul.mubr.f32.gmra.mrb[0].mxu0 %v3521
        %v3651 = vpop.f32.mrb[0].mxu0
        %v3652 = vadd.f32 %v3456, %v3651
        %v3653 = vpop.f32.mrb[0].mxu0
        %3654 = vmatprep.mubr.f32.mxu0 0.0
        %3655 = vmatmul.mubr.f32.gmra.mrb[0].mxu0 %v3524
        %v3656 = vpop.f32.mrb[0].mxu0
        %v3657 = vadd.f32 %v3461, %v3656
        %v3658 = vpop.f32.mrb[0].mxu0
        %3659 = vmatprep.mubr.f32.mxu0 0.0
        %3660 = vmatmul.mubr.f32.gmra.mrb[0].mxu0 %v3527
        %v3661 = vpop.f32.mrb[0].mxu0
        %v3662 = vadd.f32 %v3466, %v3661
        %v3663 = vpop.f32.mrb[0].mxu0
        %3664 = vmatprep.mubr.f32.mxu0 0.0
        %3665 = vmatmul.mubr.f32.gmra.mrb[0].mxu0 %v3530
        %v3666 = vpop.f32.mrb[0].mxu0
        %v3667 = vadd.f32 %v3471, %v3666
        %v3668 = vpop.f32.mrb[0].mxu0
        %3669 = vmatprep.mubr.f32.mxu0 0.0
        %3670 = vmatmul.mubr.f32.gmra.mrb[0].mxu0 %v3533
        %v3671 = vpop.f32.mrb[0].mxu0
        %v3672 = vadd.f32 %v3476, %v3671
        %v3673 = vpop.f32.mrb[0].mxu0
        %3674 = vmatprep.mubr.f32.mxu0 0.0
        %3675 = vmatmul.mubr.f32.gmra.mrb[0].mxu0 %v3536
        %v3676 = vpop.f32.mrb[0].mxu0
        %v3677 = vadd.f32 %v3481, %v3676
        %v3678 = vpop.f32.mrb[0].mxu0
        %3679 = vmatprep.mubr.f32.mxu0 0.0
        %3680 = vmatmul.mubr.f32.gmra.mrb[0].mxu0 %v3539
        %v3681 = vpop.f32.mrb[0].mxu0
        %v3682 = vadd.f32 %v3486, %v3681
        %v3683 = vpop.f32.mrb[0].mxu0
        %3684 = vmatprep.mubr.f32.mxu0 0.0
        %3685 = vmatmul.mubr.f32.gmra.mrb[0].mxu0 %v3542
        %v3686 = vpop.f32.mrb[0].mxu0
        %v3687 = vadd.f32 %v3491, %v3686
        %v3688 = vpop.f32.mrb[0].mxu0
        %3689 = vmatprep.mubr.f32.mxu0 0.0
        %3690 = vmatmul.mubr.f32.gmra.mrb[0].mxu0 %v3545
        %v3691 = vpop.f32.mrb[0].mxu0
        %v3692 = vadd.f32 %v3496, %v3691
        %v3693 = vpop.f32.mrb[0].mxu0
        %3694 = vdwg.mxu0
        %v3695 = vld [vmem:[%s2773 + $0x1] sm:$0xff]
        %v3696 = vld [vmem:[%s2773 + $0x9] sm:$0xff]
        %v3697 = vld [vmem:[%s2773 + $0x19] sm:$0xff]
        %v3698 = vld [vmem:[%s2773 + $0x21] sm:$0xff]
        %v3699 = vld [vmem:[%s2773 + $0x31] sm:$0xff]
        %v3700 = vld [vmem:[%s2773 + $0x39] sm:$0xff]
        %v3701 = vld [vmem:[%s2773 + $0x49] sm:$0xff]
        %v3702 = vld [vmem:[%s2773 + $0x51] sm:$0xff]
        %v3703 = vld [vmem:[%s2773 + $0x61] sm:$0xff]
        %v3704 = vld [vmem:[%s2773 + $0x69] sm:$0xff]
        %v3705 = vld [vmem:[%s2773 + $0x79] sm:$0xff]
        %v3706 = vld [vmem:[%s2773 + $0x81] sm:$0xff]
        %v3707 = vld [vmem:[%s2773 + $0x91] sm:$0xff]
        %v3708 = vld [vmem:[%s2773 + $0x99] sm:$0xff]
        %v3709 = vld [vmem:[%s2773 + $0xa9] sm:$0xff]
        %v3710 = vld [vmem:[%s2773 + $0xb1] sm:$0xff]
        %s3711 = scalar_lea.vmem [#allocation9], 56
        %v3712 = vld [vmem:[%s3711] sm:$0xf]
        %v3714 = vsel %vm456, %v3695, 0
        %v3717 = vsel %vm456, %v3696, 0
        %v3720 = vsel %vm456, %v3697, 0
        %v3723 = vsel %vm456, %v3698, 0
        %v3726 = vsel %vm456, %v3699, 0
        %v3729 = vsel %vm456, %v3700, 0
        %v3732 = vsel %vm456, %v3701, 0
        %v3735 = vsel %vm456, %v3702, 0
        %v3738 = vsel %vm456, %v3703, 0
        %v3741 = vsel %vm456, %v3704, 0
        %v3744 = vsel %vm456, %v3705, 0
        %v3747 = vsel %vm456, %v3706, 0
        %v3750 = vsel %vm456, %v3707, 0
        %v3753 = vsel %vm456, %v3708, 0
        %v3756 = vsel %vm456, %v3709, 0
        %v3759 = vsel %vm456, %v3710, 0
        %v3762 = vsel %vm580, %v3712, 0
        %3764 = vmatprep.subr.mxu0 0.0
        %3765 = vmatpush1.msra.mxu0 %v3762
        %3766 = vmatprep.subr.mxu0 0.0
        %3767 = vmatpush1.msra.mxu0 0.0
        %3768 = vmatprep.subr.mxu0 0.0
        %3769 = vmatpush1.msra.mxu0 0.0
        %3770 = vmatprep.subr.mxu0 0.0
        %3771 = vmatpush1.msra.mxu0 0.0
        %3772 = vmatprep.subr.mxu0 0.0
        %3773 = vmatpush1.msra.mxu0 0.0
        %3774 = vmatprep.subr.mxu0 0.0
        %3775 = vmatpush1.msra.mxu0 0.0
        %3776 = vmatprep.subr.mxu0 0.0
        %3777 = vmatpush1.msra.mxu0 0.0
        %3778 = vmatprep.subr.mxu0 0.0
        %3779 = vmatpush1.msra.mxu0 0.0
        %3780 = vmatprep.subr.mxu0 0.0
        %3781 = vmatpush1.msra.mxu0 0.0
        %3782 = vmatprep.subr.mxu0 0.0
        %3783 = vmatpush1.msra.mxu0 0.0
        %3784 = vmatprep.subr.mxu0 0.0
        %3785 = vmatpush1.msra.mxu0 0.0
        %3786 = vmatprep.subr.mxu0 0.0
        %3787 = vmatpush1.msra.mxu0 0.0
        %3788 = vmatprep.subr.mxu0 0.0
        %3789 = vmatpush1.msra.mxu0 0.0
        %3790 = vmatprep.subr.mxu0 0.0
        %3791 = vmatpush1.msra.mxu0 0.0
        %3792 = vmatprep.subr.mxu0 0.0
        %3793 = vmatpush1.msra.mxu0 0.0
        %3794 = vmatprep.subr.mxu0 0.0
        %3795 = vmatpush1.msra.mxu0 0.0
        %3796 = vmatprep.subr.mxu0 0.0
        %3797 = vmatpush1.msra.mxu0 0.0
        %3798 = vmatprep.subr.mxu0 0.0
        %3799 = vmatpush1.msra.mxu0 0.0
        %3800 = vmatprep.subr.mxu0 0.0
        %3801 = vmatpush1.msra.mxu0 0.0
        %3802 = vmatprep.subr.mxu0 0.0
        %3803 = vmatpush1.msra.mxu0 0.0
        %3804 = vmatprep.subr.mxu0 0.0
        %3805 = vmatpush1.msra.mxu0 0.0
        %3806 = vmatprep.subr.mxu0 0.0
        %3807 = vmatpush1.msra.mxu0 0.0
        %3808 = vmatprep.subr.mxu0 0.0
        %3809 = vmatpush1.msra.mxu0 0.0
        %3810 = vmatprep.subr.mxu0 0.0
        %3811 = vmatpush1.msra.mxu0 0.0
        %3812 = vmatprep.subr.mxu0 0.0
        %3813 = vmatpush1.msra.mxu0 0.0
        %3814 = vmatprep.subr.mxu0 0.0
        %3815 = vmatpush1.msra.mxu0 0.0
        %3816 = vmatprep.subr.mxu0 0.0
        %3817 = vmatpush1.msra.mxu0 0.0
        %3818 = vmatprep.subr.mxu0 0.0
        %3819 = vmatpush1.msra.mxu0 0.0
        %3820 = vmatprep.subr.mxu0 0.0
        %3821 = vmatpush1.msra.mxu0 0.0
        %3822 = vmatprep.subr.mxu0 0.0
        %3823 = vmatpush1.msra.mxu0 0.0
        %3824 = vmatprep.subr.mxu0 0.0
        %3825 = vmatpush1.msra.mxu0 0.0
        %3826 = vmatprep.subr.mxu0 0.0
        %3827 = vmatpush1.msra.mxu0 0.0
        %3828 = vmatprep.mubr.f32.mxu0 0.0
        %3829 = vmatmul.mubr.f32.gmra.mrb[0].mxu0 %v3714
        %v3830 = vpop.f32.mrb[0].mxu0
        %v3831 = vadd.f32 0.0, %v3830
        %v3832 = vpop.f32.mrb[0].mxu0
        %3833 = vmatprep.mubr.f32.mxu0 0.0
        %3834 = vmatmul.mubr.f32.gmra.mrb[0].mxu0 %v3717
        %v3835 = vpop.f32.mrb[0].mxu0
        %v3836 = vadd.f32 0.0, %v3835
        %v3837 = vpop.f32.mrb[0].mxu0
        %3838 = vmatprep.mubr.f32.mxu0 0.0
        %3839 = vmatmul.mubr.f32.gmra.mrb[0].mxu0 %v3720
        %v3840 = vpop.f32.mrb[0].mxu0
        %v3841 = vadd.f32 0.0, %v3840
        %v3842 = vpop.f32.mrb[0].mxu0
        %3843 = vmatprep.mubr.f32.mxu0 0.0
        %3844 = vmatmul.mubr.f32.gmra.mrb[0].mxu0 %v3723
        %v3845 = vpop.f32.mrb[0].mxu0
        %v3846 = vadd.f32 0.0, %v3845
        %v3847 = vpop.f32.mrb[0].mxu0
        %3848 = vmatprep.mubr.f32.mxu0 0.0
        %3849 = vmatmul.mubr.f32.gmra.mrb[0].mxu0 %v3726
        %v3850 = vpop.f32.mrb[0].mxu0
        %v3851 = vadd.f32 0.0, %v3850
        %v3852 = vpop.f32.mrb[0].mxu0
        %3853 = vmatprep.mubr.f32.mxu0 0.0
        %3854 = vmatmul.mubr.f32.gmra.mrb[0].mxu0 %v3729
        %v3855 = vpop.f32.mrb[0].mxu0
        %v3856 = vadd.f32 0.0, %v3855
        %v3857 = vpop.f32.mrb[0].mxu0
        %3858 = vmatprep.mubr.f32.mxu0 0.0
        %3859 = vmatmul.mubr.f32.gmra.mrb[0].mxu0 %v3732
        %v3860 = vpop.f32.mrb[0].mxu0
        %v3861 = vadd.f32 0.0, %v3860
        %v3862 = vpop.f32.mrb[0].mxu0
        %3863 = vmatprep.mubr.f32.mxu0 0.0
        %3864 = vmatmul.mubr.f32.gmra.mrb[0].mxu0 %v3735
        %v3865 = vpop.f32.mrb[0].mxu0
        %v3866 = vadd.f32 0.0, %v3865
        %v3867 = vpop.f32.mrb[0].mxu0
        %3868 = vmatprep.mubr.f32.mxu0 0.0
        %3869 = vmatmul.mubr.f32.gmra.mrb[0].mxu0 %v3738
        %v3870 = vpop.f32.mrb[0].mxu0
        %v3871 = vadd.f32 0.0, %v3870
        %v3872 = vpop.f32.mrb[0].mxu0
        %3873 = vmatprep.mubr.f32.mxu0 0.0
        %3874 = vmatmul.mubr.f32.gmra.mrb[0].mxu0 %v3741
        %v3875 = vpop.f32.mrb[0].mxu0
        %v3876 = vadd.f32 0.0, %v3875
        %v3877 = vpop.f32.mrb[0].mxu0
        %3878 = vmatprep.mubr.f32.mxu0 0.0
        %3879 = vmatmul.mubr.f32.gmra.mrb[0].mxu0 %v3744
        %v3880 = vpop.f32.mrb[0].mxu0
        %v3881 = vadd.f32 0.0, %v3880
        %v3882 = vpop.f32.mrb[0].mxu0
        %3883 = vmatprep.mubr.f32.mxu0 0.0
        %3884 = vmatmul.mubr.f32.gmra.mrb[0].mxu0 %v3747
        %v3885 = vpop.f32.mrb[0].mxu0
        %v3886 = vadd.f32 0.0, %v3885
        %v3887 = vpop.f32.mrb[0].mxu0
        %3888 = vmatprep.mubr.f32.mxu0 0.0
        %3889 = vmatmul.mubr.f32.gmra.mrb[0].mxu0 %v3750
        %v3890 = vpop.f32.mrb[0].mxu0
        %v3891 = vadd.f32 0.0, %v3890
        %v3892 = vpop.f32.mrb[0].mxu0
        %3893 = vmatprep.mubr.f32.mxu0 0.0
        %3894 = vmatmul.mubr.f32.gmra.mrb[0].mxu0 %v3753
        %v3895 = vpop.f32.mrb[0].mxu0
        %v3896 = vadd.f32 0.0, %v3895
        %v3897 = vpop.f32.mrb[0].mxu0
        %3898 = vmatprep.mubr.f32.mxu0 0.0
        %3899 = vmatmul.mubr.f32.gmra.mrb[0].mxu0 %v3756
        %v3900 = vpop.f32.mrb[0].mxu0
        %v3901 = vadd.f32 0.0, %v3900
        %v3902 = vpop.f32.mrb[0].mxu0
        %3903 = vmatprep.mubr.f32.mxu0 0.0
        %3904 = vmatmul.mubr.f32.gmra.mrb[0].mxu0 %v3759
        %v3905 = vpop.f32.mrb[0].mxu0
        %v3906 = vadd.f32 0.0, %v3905
        %v3907 = vpop.f32.mrb[0].mxu0
        %3908 = vdwg.mxu0
        %v3909 = vadd.f32 %v3617, %v3831
        %v3910 = vadd.f32 %v3622, %v3836
        %v3911 = vadd.f32 %v3627, %v3841
        %v3912 = vadd.f32 %v3632, %v3846
        %v3913 = vadd.f32 %v3637, %v3851
        %v3914 = vadd.f32 %v3642, %v3856
        %v3915 = vadd.f32 %v3647, %v3861
        %v3916 = vadd.f32 %v3652, %v3866
        %v3917 = vadd.f32 %v3657, %v3871
        %v3918 = vadd.f32 %v3662, %v3876
        %v3919 = vadd.f32 %v3667, %v3881
        %v3920 = vadd.f32 %v3672, %v3886
        %v3921 = vadd.f32 %v3677, %v3891
        %v3922 = vadd.f32 %v3682, %v3896
        %v3923 = vadd.f32 %v3687, %v3901
        %v3924 = vadd.f32 %v3692, %v3906
        %v3925 = vld [vmem:[%s2773 + $0x2] sm:$0xff]
        %v3926 = vld [vmem:[%s2773 + $0xa] sm:$0xff]
        %v3927 = vld [vmem:[%s2773 + $0x1a] sm:$0xff]
        %v3928 = vld [vmem:[%s2773 + $0x22] sm:$0xff]
        %v3929 = vld [vmem:[%s2773 + $0x32] sm:$0xff]
        %v3930 = vld [vmem:[%s2773 + $0x3a] sm:$0xff]
        %v3931 = vld [vmem:[%s2773 + $0x4a] sm:$0xff]
        %v3932 = vld [vmem:[%s2773 + $0x52] sm:$0xff]
        %v3933 = vld [vmem:[%s2773 + $0x62] sm:$0xff]
        %v3934 = vld [vmem:[%s2773 + $0x6a] sm:$0xff]
        %v3935 = vld [vmem:[%s2773 + $0x7a] sm:$0xff]
        %v3936 = vld [vmem:[%s2773 + $0x82] sm:$0xff]
        %v3937 = vld [vmem:[%s2773 + $0x92] sm:$0xff]
        %v3938 = vld [vmem:[%s2773 + $0x9a] sm:$0xff]
        %v3939 = vld [vmem:[%s2773 + $0xaa] sm:$0xff]
        %v3940 = vld [vmem:[%s2773 + $0xb2] sm:$0xff]
        %s3941 = scalar_lea.vmem [#allocation9], 60
        %v3942 = vld [vmem:[%s3941] sm:$0xf]
        %v3944 = vsel %vm456, %v3925, 0
        %v3947 = vsel %vm456, %v3926, 0
        %v3950 = vsel %vm456, %v3927, 0
        %v3953 = vsel %vm456, %v3928, 0
        %v3956 = vsel %vm456, %v3929, 0
        %v3959 = vsel %vm456, %v3930, 0
        %v3962 = vsel %vm456, %v3931, 0
        %v3965 = vsel %vm456, %v3932, 0
        %v3968 = vsel %vm456, %v3933, 0
        %v3971 = vsel %vm456, %v3934, 0
        %v3974 = vsel %vm456, %v3935, 0
        %v3977 = vsel %vm456, %v3936, 0
        %v3980 = vsel %vm456, %v3937, 0
        %v3983 = vsel %vm456, %v3938, 0
        %v3986 = vsel %vm456, %v3939, 0
        %v3989 = vsel %vm456, %v3940, 0
        %v3992 = vsel %vm580, %v3942, 0
        %3994 = vmatprep.subr.mxu0 0.0
        %3995 = vmatpush1.msra.mxu0 %v3992
        %3996 = vmatprep.subr.mxu0 0.0
        %3997 = vmatpush1.msra.mxu0 0.0
        %3998 = vmatprep.subr.mxu0 0.0
        %3999 = vmatpush1.msra.mxu0 0.0
        %4000 = vmatprep.subr.mxu0 0.0
        %4001 = vmatpush1.msra.mxu0 0.0
        %4002 = vmatprep.subr.mxu0 0.0
        %4003 = vmatpush1.msra.mxu0 0.0
        %4004 = vmatprep.subr.mxu0 0.0
        %4005 = vmatpush1.msra.mxu0 0.0
        %4006 = vmatprep.subr.mxu0 0.0
        %4007 = vmatpush1.msra.mxu0 0.0
        %4008 = vmatprep.subr.mxu0 0.0
        %4009 = vmatpush1.msra.mxu0 0.0
        %4010 = vmatprep.subr.mxu0 0.0
        %4011 = vmatpush1.msra.mxu0 0.0
        %4012 = vmatprep.subr.mxu0 0.0
        %4013 = vmatpush1.msra.mxu0 0.0
        %4014 = vmatprep.subr.mxu0 0.0
        %4015 = vmatpush1.msra.mxu0 0.0
        %4016 = vmatprep.subr.mxu0 0.0
        %4017 = vmatpush1.msra.mxu0 0.0
        %4018 = vmatprep.subr.mxu0 0.0
        %4019 = vmatpush1.msra.mxu0 0.0
        %4020 = vmatprep.subr.mxu0 0.0
        %4021 = vmatpush1.msra.mxu0 0.0
        %4022 = vmatprep.subr.mxu0 0.0
        %4023 = vmatpush1.msra.mxu0 0.0
        %4024 = vmatprep.subr.mxu0 0.0
        %4025 = vmatpush1.msra.mxu0 0.0
        %4026 = vmatprep.subr.mxu0 0.0
        %4027 = vmatpush1.msra.mxu0 0.0
        %4028 = vmatprep.subr.mxu0 0.0
        %4029 = vmatpush1.msra.mxu0 0.0
        %4030 = vmatprep.subr.mxu0 0.0
        %4031 = vmatpush1.msra.mxu0 0.0
        %4032 = vmatprep.subr.mxu0 0.0
        %4033 = vmatpush1.msra.mxu0 0.0
        %4034 = vmatprep.subr.mxu0 0.0
        %4035 = vmatpush1.msra.mxu0 0.0
        %4036 = vmatprep.subr.mxu0 0.0
        %4037 = vmatpush1.msra.mxu0 0.0
        %4038 = vmatprep.subr.mxu0 0.0
        %4039 = vmatpush1.msra.mxu0 0.0
        %4040 = vmatprep.subr.mxu0 0.0
        %4041 = vmatpush1.msra.mxu0 0.0
        %4042 = vmatprep.subr.mxu0 0.0
        %4043 = vmatpush1.msra.mxu0 0.0
        %4044 = vmatprep.subr.mxu0 0.0
        %4045 = vmatpush1.msra.mxu0 0.0
        %4046 = vmatprep.subr.mxu0 0.0
        %4047 = vmatpush1.msra.mxu0 0.0
        %4048 = vmatprep.subr.mxu0 0.0
        %4049 = vmatpush1.msra.mxu0 0.0
        %4050 = vmatprep.subr.mxu0 0.0
        %4051 = vmatpush1.msra.mxu0 0.0
        %4052 = vmatprep.subr.mxu0 0.0
        %4053 = vmatpush1.msra.mxu0 0.0
        %4054 = vmatprep.subr.mxu0 0.0
        %4055 = vmatpush1.msra.mxu0 0.0
        %4056 = vmatprep.subr.mxu0 0.0
        %4057 = vmatpush1.msra.mxu0 0.0
        %4058 = vmatprep.mubr.f32.mxu0 0.0
        %4059 = vmatmul.mubr.f32.gmra.mrb[0].mxu0 %v3944
        %v4060 = vpop.f32.mrb[0].mxu0
        %v4061 = vadd.f32 0.0, %v4060
        %v4062 = vpop.f32.mrb[0].mxu0
        %4063 = vmatprep.mubr.f32.mxu0 0.0
        %4064 = vmatmul.mubr.f32.gmra.mrb[0].mxu0 %v3947
        %v4065 = vpop.f32.mrb[0].mxu0
        %v4066 = vadd.f32 0.0, %v4065
        %v4067 = vpop.f32.mrb[0].mxu0
        %4068 = vmatprep.mubr.f32.mxu0 0.0
        %4069 = vmatmul.mubr.f32.gmra.mrb[0].mxu0 %v3950
        %v4070 = vpop.f32.mrb[0].mxu0
        %v4071 = vadd.f32 0.0, %v4070
        %v4072 = vpop.f32.mrb[0].mxu0
        %4073 = vmatprep.mubr.f32.mxu0 0.0
        %4074 = vmatmul.mubr.f32.gmra.mrb[0].mxu0 %v3953
        %v4075 = vpop.f32.mrb[0].mxu0
        %v4076 = vadd.f32 0.0, %v4075
        %v4077 = vpop.f32.mrb[0].mxu0
        %4078 = vmatprep.mubr.f32.mxu0 0.0
        %4079 = vmatmul.mubr.f32.gmra.mrb[0].mxu0 %v3956
        %v4080 = vpop.f32.mrb[0].mxu0
        %v4081 = vadd.f32 0.0, %v4080
        %v4082 = vpop.f32.mrb[0].mxu0
        %4083 = vmatprep.mubr.f32.mxu0 0.0
        %4084 = vmatmul.mubr.f32.gmra.mrb[0].mxu0 %v3959
        %v4085 = vpop.f32.mrb[0].mxu0
        %v4086 = vadd.f32 0.0, %v4085
        %v4087 = vpop.f32.mrb[0].mxu0
        %4088 = vmatprep.mubr.f32.mxu0 0.0
        %4089 = vmatmul.mubr.f32.gmra.mrb[0].mxu0 %v3962
        %v4090 = vpop.f32.mrb[0].mxu0
        %v4091 = vadd.f32 0.0, %v4090
        %v4092 = vpop.f32.mrb[0].mxu0
        %4093 = vmatprep.mubr.f32.mxu0 0.0
        %4094 = vmatmul.mubr.f32.gmra.mrb[0].mxu0 %v3965
        %v4095 = vpop.f32.mrb[0].mxu0
        %v4096 = vadd.f32 0.0, %v4095
        %v4097 = vpop.f32.mrb[0].mxu0
        %4098 = vmatprep.mubr.f32.mxu0 0.0
        %4099 = vmatmul.mubr.f32.gmra.mrb[0].mxu0 %v3968
        %v4100 = vpop.f32.mrb[0].mxu0
        %v4101 = vadd.f32 0.0, %v4100
        %v4102 = vpop.f32.mrb[0].mxu0
        %4103 = vmatprep.mubr.f32.mxu0 0.0
        %4104 = vmatmul.mubr.f32.gmra.mrb[0].mxu0 %v3971
        %v4105 = vpop.f32.mrb[0].mxu0
        %v4106 = vadd.f32 0.0, %v4105
        %v4107 = vpop.f32.mrb[0].mxu0
        %4108 = vmatprep.mubr.f32.mxu0 0.0
        %4109 = vmatmul.mubr.f32.gmra.mrb[0].mxu0 %v3974
        %v4110 = vpop.f32.mrb[0].mxu0
        %v4111 = vadd.f32 0.0, %v4110
        %v4112 = vpop.f32.mrb[0].mxu0
        %4113 = vmatprep.mubr.f32.mxu0 0.0
        %4114 = vmatmul.mubr.f32.gmra.mrb[0].mxu0 %v3977
        %v4115 = vpop.f32.mrb[0].mxu0
        %v4116 = vadd.f32 0.0, %v4115
        %v4117 = vpop.f32.mrb[0].mxu0
        %4118 = vmatprep.mubr.f32.mxu0 0.0
        %4119 = vmatmul.mubr.f32.gmra.mrb[0].mxu0 %v3980
        %v4120 = vpop.f32.mrb[0].mxu0
        %v4121 = vadd.f32 0.0, %v4120
        %v4122 = vpop.f32.mrb[0].mxu0
        %4123 = vmatprep.mubr.f32.mxu0 0.0
        %4124 = vmatmul.mubr.f32.gmra.mrb[0].mxu0 %v3983
        %v4125 = vpop.f32.mrb[0].mxu0
        %v4126 = vadd.f32 0.0, %v4125
        %v4127 = vpop.f32.mrb[0].mxu0
        %4128 = vmatprep.mubr.f32.mxu0 0.0
        %4129 = vmatmul.mubr.f32.gmra.mrb[0].mxu0 %v3986
        %v4130 = vpop.f32.mrb[0].mxu0
        %v4131 = vadd.f32 0.0, %v4130
        %v4132 = vpop.f32.mrb[0].mxu0
        %4133 = vmatprep.mubr.f32.mxu0 0.0
        %4134 = vmatmul.mubr.f32.gmra.mrb[0].mxu0 %v3989
        %v4135 = vpop.f32.mrb[0].mxu0
        %v4136 = vadd.f32 0.0, %v4135
        %v4137 = vpop.f32.mrb[0].mxu0
        %4138 = vdwg.mxu0
        %v4139 = vadd.f32 %v3909, %v4061
        %v4140 = vadd.f32 %v3910, %v4066
        %v4141 = vadd.f32 %v3911, %v4071
        %v4142 = vadd.f32 %v3912, %v4076
        %v4143 = vadd.f32 %v3913, %v4081
        %v4144 = vadd.f32 %v3914, %v4086
        %v4145 = vadd.f32 %v3915, %v4091
        %v4146 = vadd.f32 %v3916, %v4096
        %v4147 = vadd.f32 %v3917, %v4101
        %v4148 = vadd.f32 %v3918, %v4106
        %v4149 = vadd.f32 %v3919, %v4111
        %v4150 = vadd.f32 %v3920, %v4116
        %v4151 = vadd.f32 %v3921, %v4121
        %v4152 = vadd.f32 %v3922, %v4126
        %v4153 = vadd.f32 %v3923, %v4131
        %v4154 = vadd.f32 %v3924, %v4136
        %v4155 = vadd.f32 %v4139, %v1390
        %v4156 = vadd.f32 %v4140, %v1390
        %v4157 = vadd.f32 %v4141, %v1390
        %v4158 = vadd.f32 %v4142, %v1390
        %v4159 = vadd.f32 %v4143, %v1390
        %v4160 = vadd.f32 %v4144, %v1390
        %v4161 = vadd.f32 %v4145, %v1390
        %v4162 = vadd.f32 %v4146, %v1390
        %v4163 = vadd.f32 %v4147, %v1390
        %v4164 = vadd.f32 %v4148, %v1390
        %v4165 = vadd.f32 %v4149, %v1390
        %v4166 = vadd.f32 %v4150, %v1390
        %v4167 = vadd.f32 %v4151, %v1390
        %v4168 = vadd.f32 %v4152, %v1390
        %v4169 = vadd.f32 %v4153, %v1390
        %v4170 = vadd.f32 %v4154, %v1390
        %s4171 = scalar_lea.vmem %s419, 384 [#allocation12]
        %4172 = vst.msk [vmem:[%s4171] sm:$0xff] %vm456, %v4155
        %4173 = vst.msk [vmem:[%s4171 + $0x8] sm:$0xff] %vm456, %v4156
        %4174 = vst.msk [vmem:[%s4171 + $0x10] sm:$0xff] %vm456, %v4157
        %4175 = vst.msk [vmem:[%s4171 + $0x18] sm:$0xff] %vm456, %v4158
        %4176 = vst.msk [vmem:[%s4171 + $0x20] sm:$0xff] %vm456, %v4159
        %4177 = vst.msk [vmem:[%s4171 + $0x28] sm:$0xff] %vm456, %v4160
        %4178 = vst.msk [vmem:[%s4171 + $0x30] sm:$0xff] %vm456, %v4161
        %4179 = vst.msk [vmem:[%s4171 + $0x38] sm:$0xff] %vm456, %v4162
        %4180 = vst.msk [vmem:[%s4171 + $0x40] sm:$0xff] %vm456, %v4163
        %4181 = vst.msk [vmem:[%s4171 + $0x48] sm:$0xff] %vm456, %v4164
        %4182 = vst.msk [vmem:[%s4171 + $0x50] sm:$0xff] %vm456, %v4165
        %4183 = vst.msk [vmem:[%s4171 + $0x58] sm:$0xff] %vm456, %v4166
        %4184 = vst.msk [vmem:[%s4171 + $0x60] sm:$0xff] %vm456, %v4167
        %4185 = vst.msk [vmem:[%s4171 + $0x68] sm:$0xff] %vm456, %v4168
        %4186 = vst.msk [vmem:[%s4171 + $0x70] sm:$0xff] %vm456, %v4169
        %4187 = vst.msk [vmem:[%s4171 + $0x78] sm:$0xff] %vm456, %v4170
        %s4188 = sand.u32 %s203, 1
        %s4189 = scalar_lea.sflag [#allocation5], %s4188
        %s4190 = sand.u32 %s203, 1
        %s4191 = smul.addr %s4190, 512
        %s4192 = scalar_lea.vmem [#allocation12], %s4191
        // Predicated region
        $region61: #{tpu_custom_call.1} parent=39 // pred_check
          %p4193 = pneg %p213
        $region62: #{tpu_custom_call.1} parent=39 // pred_check_branch
          %4195 = sbr.rel (%p4193) target = $region64
        $region63: #{tpu_custom_call.1} parent=39 // pred_region
          #allocation14 [shape = 'u32[6]{0}', space=smem, size = 0x18, scoped, tag = 'DMA stride descriptor']
          %s4196 = smul.u32 16, %s33
          %s4198 = ssub.s32 8192, 8192
          %4199 = vsyncadd %s4189, %s4198
          %s4200 = sadd.s32 %s32, %s4196
          %s4201 = smul.addr %s31, 128
          %s4202 = sadd.s32 %s4200, %s4201
          %s4203 = smul.addr %s4202, 128
          %s4204 = scalar_lea.hbm %s5, %s4203
          %s4206 = sshll.u32 1, 14
          %s4207 = sxor.u32 4294967295, %s4206
          %s4210 = sshll.u32 7, 18
          %s4211 = sxor.u32 4294967295, %s4210
          %s4212 = sand.u32 0, %s4211
          %s4214 = sor.u32 %s4212, 0
          %s4216 = sshll.u32 3, 24
          %s4217 = sxor.u32 4294967295, %s4216
          %s4218 = sand.u32 %s4214, %s4217
          %s4220 = sor.u32 %s4218, 0
          %s4221 = sshll.u32 %s4192, 4
          %s4222 = int_to_ptr.vmem [resolvable:$true] %s4221
          %4228 = sst [smem:[#allocation14]] 2048
          %s4229 = scalar_lea.smem [#allocation14], 1
          %4230 = sst [smem:[%s4229]] 4096
          %s4231 = scalar_lea.smem [#allocation14], 2
          %4232 = sst [smem:[%s4231]] 16
          %s4233 = scalar_lea.smem [#allocation14], 3
          %4234 = sst [smem:[%s4233]] 128
          %s4235 = scalar_lea.smem [#allocation14], 4
          %4236 = sst [smem:[%s4235]] 128
          %s4237 = scalar_lea.smem [#allocation14], 5
          %4238 = sst [smem:[%s4237]] 8
          %4240 = dma.general %s4222, 8192, %s4204, %s4189, [#allocation13], [#allocation14], %s4220, 0
        $region64: #{tpu_custom_call.1} parent=39 // pred_fallthru
          _
      $region40: #{tpu_custom_call.1} parent=5 // pred_fallthru
        _
      %p4241 = scmp.le.s32.totalorder 2, %s21
      // Predicated region
      $region65: #{tpu_custom_call.1} parent=5 // pred_check
        %p4242 = pneg %p4241
      $region66: #{tpu_custom_call.1} parent=5 // pred_check_branch
        %4244 = sbr.rel (%p4242) target = $region68
      $region67: #{tpu_custom_call.1} parent=5 // pred_region
        %s4245 = ssub.s32 %s21, 2
        // Predicated region
        $region69: #{tpu_custom_call.1} parent=67 // pred_check
          %p4246 = pneg %p219
        $region70: #{tpu_custom_call.1} parent=67 // pred_check_branch
          %4248 = sbr.rel (%p4246) target = $region72
        $region71: #{tpu_custom_call.1} parent=67 // pred_region
          %s4249 = sand.u32 %s204, 1
          %s4250 = scalar_lea.sflag [#allocation5], %s4249
          %s4251 = sand.u32 %s204, 1
          %s4252 = smul.addr %s4251, 512
          %s4253 = scalar_lea.vmem [#allocation12], %s4252
          %4254 = dma.done %s4250, 8192
        $region72: #{tpu_custom_call.1} parent=67 // pred_fallthru
          _
      $region68: #{tpu_custom_call.1} parent=5 // pred_fallthru
        _
    $region6: #{tpu_custom_call.1} parent=1 // loop_footer
      %s25 = sadd.s32 1, %s21
    $region7: #{tpu_custom_call.1} parent=1 // loop_footer_branch
      %20 = sbr.rel target = $region3
    $region8: #{tpu_custom_call.1} parent=1 // loop_exit
      _
    %4255 = vsyncpa [#allocation4], 1
    %s4256 = scalar_lea.sflag [#allocation4], 1
    %4257 = vsyncpa %s4256, 1
    %4258 = vsyncpa [#allocation7], 1
    %s4259 = scalar_lea.sflag [#allocation7], 1
    %4260 = vsyncpa %s4259, 1
    %4261 = vsyncpa [#allocation10], 1
    %4262 = vsyncpa [#allocation5], 1
    %s4263 = scalar_lea.sflag [#allocation5], 1
    %4264 = vsyncpa %s4263, 1

</llo_original>
